<compile_context>
chip_gen: v6e
topology: v6e:2x2x1
jax: 0.10.0
libtpu: 0.0.40
codegen_flags: <defaults>
</compile_context>

<pallas_src>
import math
import numpy as np
import jax
import jax.numpy as jnp
from jax import lax
from jax.experimental import pallas as pl
from jax.experimental.pallas import tpu as pltpu

# ---- problem sizes (small, consistent with module: size=D, ff_size=F, num_heads=H) ----
B = 2     # batch
T = 8     # target sequence length
S = 16    # source (memory) sequence length
D = 32    # model size
H = 4     # num heads
HD = D // H
F = 64    # feed-forward size
EPS = 1e-6
NEG = 1e30   # magnitude of the additive mask bias


# ------------------------- shared math helpers (pure jnp; used inside the kernel) -------------------------
def _layer_norm(v, g, b, eps=EPS):
    mu = jnp.mean(v, axis=-1, keepdims=True)
    var = jnp.mean((v - mu) ** 2, axis=-1, keepdims=True)
    return g * (v - mu) / jnp.sqrt(var + eps) + b


def _proj_t(w_t, b_t, x):
    """Transposed projection: w_t (Dout, Din), x (N, Din) -> (Dout, N).
    A @ B.T contraction pattern; keeps output features on sublanes so the
    per-head split is a free leading-dim reshape."""
    return lax.dot_general(w_t, x, (((1,), (1,)), ((), ())),
                           preferred_element_type=jnp.float32) + b_t


def _attn_ctx(qT, kT, vT, bias):
    """Head-batched attention core for one batch element.
    qT (D, Tq), kT/vT (D, Tk): features on sublanes, sequence on lanes.
    bias: additive mask bias broadcastable to (H, Tq, Tk).
    Returns per-head context (H, Tq, HD)."""
    qh = jnp.swapaxes(qT.reshape(H, HD, -1), 1, 2)           # (H, Tq, HD)
    kh = kT.reshape(H, HD, -1)                               # (H, HD, Tk)
    vh = vT.reshape(H, HD, -1)                               # (H, HD, Tk)
    # scores: batched (Tq, HD) @ (HD, Tk)
    s = lax.dot_general(qh, kh, (((2,), (1,)), ((0,), (0,))),
                        preferred_element_type=jnp.float32)  # (H, Tq, Tk)
    s = s + bias
    m = jnp.max(s, axis=-1, keepdims=True)
    e = jnp.exp(s - m)
    p = e * pl.reciprocal(jnp.sum(e, axis=-1, keepdims=True), approx=True)
    # context: batched (Tq, Tk) @ (Tk, HD)  via A @ B.T on (H, HD, Tk)
    return lax.dot_general(p, vh, (((2,), (2,)), ((0,), (0,))),
                           preferred_element_type=jnp.float32)  # (H, Tq, HD)


def _out_proj(ctx_all, wo_h, bo):
    """ctx_all (H, N, HD), wo_h (H, HD, D), bo (1, D) -> (N, D)."""
    oh = lax.dot_general(ctx_all, wo_h, (((2,), (1,)), ((0,), (0,))),
                         preferred_element_type=jnp.float32)    # (H, N, D)
    return jnp.sum(oh, axis=0) + bo


# ------------------------------------------ Pallas kernel ------------------------------------------
def decoder_layer_kernel(x_ref, mem_ref, tbias_ref, sbias_ref,
                         w_in_ref, b_in_ref, w_out_ref, w_ffn_ref,
                         vec_ref, b1_ref, o_ref):
    x = x_ref[...]            # (B*T, D)
    mem = mem_ref[...]        # (B*S, D)
    w_in = w_in_ref[...]      # (6D, D)
    b_in = b_in_ref[...]      # (6D, 1)
    w_out = w_out_ref[...]    # (2H, HD, D)
    vecs = vec_ref[...]       # (9, D)

    lnx_g, lnx_b = vecs[0:1, :], vecs[1:2, :]
    lnd_g, lnd_b = vecs[2:3, :], vecs[3:4, :]
    lnf_g, lnf_b = vecs[4:5, :], vecs[5:6, :]
    bo1, bo2, b2 = vecs[6:7, :], vecs[7:8, :], vecs[8:9, :]

    # --- self-attention block (fused QKV projection, whole batch at once) ---
    x_norm = _layer_norm(x, lnx_g, lnx_b)
    qkv1 = _proj_t(w_in[0:3 * D, :], b_in[0:3 * D, :], x_norm)           # (3D, B*T)
    ctx1 = []
    for b in range(B):   # static batch loop (B=2); heads are batched inside _attn_ctx
        blk = qkv1[:, b * T:(b + 1) * T]                                  # (3D, T)
        tb = tbias_ref[b * T:(b + 1) * T, :]                              # (T, T) additive bias
        ctx1.append(_attn_ctx(blk[0:D], blk[D:2 * D], blk[2 * D:3 * D], tb))
    ctx1 = jnp.concatenate(ctx1, axis=1)                                  # (H, B*T, HD)
    h1 = _out_proj(ctx1, w_out[0:H], bo1) + x                             # dropout = identity

    # --- cross-attention block: q from LN(h1), k/v from memory (fused KV) ---
    h1n = _layer_norm(h1, lnd_g, lnd_b)
    q2 = _proj_t(w_in[3 * D:4 * D, :], b_in[3 * D:4 * D, :], h1n)         # (D, B*T)
    kv2 = _proj_t(w_in[4 * D:6 * D, :], b_in[4 * D:6 * D, :], mem)        # (2D, B*S)
    ctx2 = []
    for b in range(B):
        kvb = kv2[:, b * S:(b + 1) * S]                                   # (2D, S)
        sb = sbias_ref[b:b + 1, :]                                        # (1, S) additive bias
        ctx2.append(_attn_ctx(q2[:, b * T:(b + 1) * T], kvb[0:D], kvb[D:2 * D], sb))
    ctx2 = jnp.concatenate(ctx2, axis=1)                                  # (H, B*T, HD)
    h2 = _out_proj(ctx2, w_out[H:2 * H], bo2)

    # --- position-wise feed-forward (pre-LN + residual) ---
    ffn_in = h2 + h1
    f_norm = _layer_norm(ffn_in, lnf_g, lnf_b)
    hff = jnp.maximum(
        jnp.dot(f_norm, w_ffn_ref[0], preferred_element_type=jnp.float32) + b1_ref[...],
        0.0)                                                              # (B*T, F)
    out = lax.dot_general(hff, w_ffn_ref[1], (((1,), (1,)), ((), ())),
                          preferred_element_type=jnp.float32) + b2 + ffn_in
    o_ref[...] = out


# ------------------------------------------ wrapper ------------------------------------------
def pack_inputs(x, memory, src_mask, trg_mask, p):
    scale = 1.0 / math.sqrt(HD)
    # attention input projections, transposed to (out, in); 1/sqrt(HD) folded into Q
    w_in = jnp.concatenate([
        (p["wq1"] * scale).T, p["wk1"].T, p["wv1"].T,
        (p["wq2"] * scale).T, p["wk2"].T, p["wv2"].T], axis=0)            # (6D, D)
    b_in = jnp.concatenate([
        p["bq1"] * scale, p["bk1"], p["bv1"],
        p["bq2"] * scale, p["bk2"], p["bv2"]], axis=1).T                  # (6D, 1)
    # per-head output projections, stacked
    w_out = jnp.concatenate([p["wo1"].reshape(H, HD, D),
                             p["wo2"].reshape(H, HD, D)], axis=0)          # (2H, HD, D)
    # FFN weights: w1 as-is, w2 transposed so both are (D, F)
    w_ffn = jnp.stack([p["w1"], p["w2"].T], axis=0)                        # (2, D, F)
    # all (1, D)-shaped vectors packed into one array
    vecs = jnp.concatenate([p["lnx_g"], p["lnx_b"], p["lnd_g"], p["lnd_b"],
                            p["lnf_g"], p["lnf_b"], p["bo1"], p["bo2"],
                            p["b2"]], axis=0)                              # (9, D)
    b1 = p["b1"]                                                           # (1, F)

    x_flat = x.reshape(B * T, D)
    mem_flat = memory.reshape(B * S, D)
    # additive mask biases: 0 where attend, -1e30 where masked
    tbias = ((trg_mask - 1.0) * NEG).reshape(B * T, T)
    sbias = ((src_mask - 1.0) * NEG).reshape(B, S)
    return (x_flat, mem_flat, tbias, sbias, w_in, b_in, w_out, w_ffn, vecs, b1)


def transformer_decoder_layer(x, memory, src_mask, trg_mask, params):
    args = pack_inputs(x, memory, src_mask, trg_mask, params)
    vmem = lambda: pl.BlockSpec(memory_space=pltpu.MemorySpace.VMEM)
    out_flat = pl.pallas_call(
        decoder_layer_kernel,
        out_shape=jax.ShapeDtypeStruct((B * T, D), jnp.float32),
        in_specs=[vmem() for _ in args],
        out_specs=vmem(),
    )(*args)
    return out_flat.reshape(B, T, D)


# ----------------------------------- pure-JAX reference (no Pallas) -----------------------------------
def _mha_ref(q_in, k_in, v_in, mask, wq, bq, wk, bk, wv, bv, wo, bo):
    q = q_in @ wq + bq
    k = k_in @ wk + bk
    v = v_in @ wv + bv
    scale = 1.0 / math.sqrt(HD)
    heads = []
    for h in range(H):
        lo = h * HD
        qh = q[:, lo:lo + HD] * scale
        kh = k[:, lo:lo + HD]
        vh = v[:, lo:lo + HD]
        s = qh @ kh.T
        s = jnp.where(mask > 0.0, s, -jnp.inf)
        a = jax.nn.softmax(s, axis=-1)
        heads.append(a @ vh)
    ctx = jnp.concatenate(heads, axis=-1)
    return ctx @ wo + bo


def reference_forward(x, memory, src_mask, trg_mask, p):
    def one(xb, mb, smb, tmb):
        x_norm = _layer_norm(xb, p["lnx_g"], p["lnx_b"])
        h1 = _mha_ref(x_norm, x_norm, x_norm, tmb,
                      p["wq1"], p["bq1"], p["wk1"], p["bk1"],
                      p["wv1"], p["bv1"], p["wo1"], p["bo1"])
        h1 = h1 + xb
        h1n = _layer_norm(h1, p["lnd_g"], p["lnd_b"])
        h2 = _mha_ref(h1n, mb, mb, smb,
                      p["wq2"], p["bq2"], p["wk2"], p["bk2"],
                      p["wv2"], p["bv2"], p["wo2"], p["bo2"])
        ffn_in = h2 + h1
        fn = _layer_norm(ffn_in, p["lnf_g"], p["lnf_b"])
        hff = jnp.maximum(fn @ p["w1"] + p["b1"], 0.0)
        return hff @ p["w2"] + p["b2"] + ffn_in

    return jax.vmap(one)(x, memory, src_mask, trg_mask)


# ------------------------------------------ main ------------------------------------------
def make_params(key):
    ks = iter(jax.random.split(key, 32))
    p = {}

    def lin(din, dout):
        return jax.random.normal(next(ks), (din, dout), jnp.float32) * 0.05

    def bias(dout):
        return jax.random.normal(next(ks), (1, dout), jnp.float32) * 0.02

    for name in ("lnx", "lnd", "lnf"):
        p[f"{name}_g"] = 1.0 + 0.1 * jax.random.normal(next(ks), (1, D), jnp.float32)
        p[f"{name}_b"] = 0.02 * jax.random.normal(next(ks), (1, D), jnp.float32)
    for n in ("q1", "k1", "v1", "o1"):
        p[f"w{n}"] = lin(D, D)
        p[f"b{n}"] = bias(D)
    for n in ("q2", "k2", "v2", "o2"):
        p[f"w{n}"] = lin(D, D)
        p[f"b{n}"] = bias(D)
    p["w1"] = lin(D, F)
    p["b1"] = bias(F)
    p["w2"] = lin(F, D)
    p["b2"] = bias(D)
    return p


if __name__ == "__main__":
    key = jax.random.PRNGKey(0)
    k_x, k_m, k_p = jax.random.split(key, 3)

    x = jax.random.normal(k_x, (B, T, D), jnp.float32)
    memory = jax.random.normal(k_m, (B, S, D), jnp.float32)

    # causal target mask, padded source mask (float {1.0 attend, 0.0 masked})
    trg_mask = jnp.broadcast_to(jnp.tril(jnp.ones((T, T), jnp.float32)), (B, T, T))
    src_lens = jnp.array([S, S - 4])
    src_mask = (jnp.arange(S)[None, :] < src_lens[:, None]).astype(jnp.float32)[:, None, :]

    params = make_params(k_p)

    out = transformer_decoder_layer(x, memory, src_mask, trg_mask, params)
    out = jax.block_until_ready(out)

    ref = jax.block_until_ready(reference_forward(x, memory, src_mask, trg_mask, params))
    assert out.shape == (B, T, D)
    np.testing.assert_allclose(np.asarray(out), np.asarray(ref), rtol=1e-2, atol=1e-2)

    print("KERNEL_OK")
</pallas_src>

<mosaic_0001>
module attributes {stable_mosaic.version = 11 : i64} {
  func.func @decoder_layer_kernel(%arg0: memref<16x32xf32, #tpu.memory_space<vmem>>, %arg1: memref<32x32xf32, #tpu.memory_space<vmem>>, %arg2: memref<16x8xf32, #tpu.memory_space<vmem>>, %arg3: memref<2x16xf32, #tpu.memory_space<vmem>>, %arg4: memref<192x32xf32, #tpu.memory_space<vmem>>, %arg5: memref<192x1xf32, #tpu.memory_space<vmem>>, %arg6: memref<8x8x32xf32, #tpu.memory_space<vmem>>, %arg7: memref<2x32x64xf32, #tpu.memory_space<vmem>>, %arg8: memref<9x32xf32, #tpu.memory_space<vmem>>, %arg9: memref<1x64xf32, #tpu.memory_space<vmem>>, %arg10: memref<16x32xf32, #tpu.memory_space<vmem>>) attributes {dimension_semantics = [], scalar_prefetch = 0 : i64, scratch_operands = 0 : i64, tpu.core_type = #tpu.core_type<tc>} {
    %c0 = arith.constant 0 : index
    %c0_0 = arith.constant 0 : index
    %0 = vector.load %arg0[%c0, %c0_0] : memref<16x32xf32, #tpu.memory_space<vmem>>, vector<16x32xf32>
    %c0_1 = arith.constant 0 : index
    %c0_2 = arith.constant 0 : index
    %1 = vector.load %arg1[%c0_1, %c0_2] : memref<32x32xf32, #tpu.memory_space<vmem>>, vector<32x32xf32>
    %c0_3 = arith.constant 0 : index
    %c0_4 = arith.constant 0 : index
    %2 = vector.load %arg4[%c0_3, %c0_4] : memref<192x32xf32, #tpu.memory_space<vmem>>, vector<192x32xf32>
    %c0_5 = arith.constant 0 : index
    %c0_6 = arith.constant 0 : index
    %3 = vector.load %arg5[%c0_5, %c0_6] : memref<192x1xf32, #tpu.memory_space<vmem>>, vector<192x1xf32>
    %c0_7 = arith.constant 0 : index
    %c0_8 = arith.constant 0 : index
    %c0_9 = arith.constant 0 : index
    %4 = vector.load %arg6[%c0_7, %c0_8, %c0_9] : memref<8x8x32xf32, #tpu.memory_space<vmem>>, vector<8x8x32xf32>
    %c0_10 = arith.constant 0 : index
    %c0_11 = arith.constant 0 : index
    %5 = vector.load %arg8[%c0_10, %c0_11] : memref<9x32xf32, #tpu.memory_space<vmem>>, vector<9x32xf32>
    %6 = vector.extract_strided_slice %5 {offsets = [0, 0], sizes = [1, 32], strides = [1, 1]} : vector<9x32xf32> to vector<1x32xf32>
    %7 = vector.extract_strided_slice %5 {offsets = [1, 0], sizes = [1, 32], strides = [1, 1]} : vector<9x32xf32> to vector<1x32xf32>
    %8 = vector.extract_strided_slice %5 {offsets = [2, 0], sizes = [1, 32], strides = [1, 1]} : vector<9x32xf32> to vector<1x32xf32>
    %9 = vector.extract_strided_slice %5 {offsets = [3, 0], sizes = [1, 32], strides = [1, 1]} : vector<9x32xf32> to vector<1x32xf32>
    %10 = vector.extract_strided_slice %5 {offsets = [4, 0], sizes = [1, 32], strides = [1, 1]} : vector<9x32xf32> to vector<1x32xf32>
    %11 = vector.extract_strided_slice %5 {offsets = [5, 0], sizes = [1, 32], strides = [1, 1]} : vector<9x32xf32> to vector<1x32xf32>
    %12 = vector.extract_strided_slice %5 {offsets = [6, 0], sizes = [1, 32], strides = [1, 1]} : vector<9x32xf32> to vector<1x32xf32>
    %13 = vector.extract_strided_slice %5 {offsets = [7, 0], sizes = [1, 32], strides = [1, 1]} : vector<9x32xf32> to vector<1x32xf32>
    %14 = vector.extract_strided_slice %5 {offsets = [8, 0], sizes = [1, 32], strides = [1, 1]} : vector<9x32xf32> to vector<1x32xf32>
    %cst = arith.constant dense<0.000000e+00> : vector<16xf32>
    %15 = vector.multi_reduction <add>, %0, %cst [1] : vector<16x32xf32> to vector<16xf32>
    %16 = vector.shape_cast %15 : vector<16xf32> to vector<16x1xf32>
    %cst_12 = arith.constant 3.200000e+01 : f32
    %17 = vector.broadcast %cst_12 : f32 to vector<16x1xf32>
    %18 = arith.divf %16, %17 : vector<16x1xf32>
    %19 = vector.broadcast %18 : vector<16x1xf32> to vector<16x32xf32>
    %20 = arith.subf %0, %19 : vector<16x32xf32>
    %21 = arith.mulf %20, %20 : vector<16x32xf32>
    %cst_13 = arith.constant dense<0.000000e+00> : vector<16xf32>
    %22 = vector.multi_reduction <add>, %21, %cst_13 [1] : vector<16x32xf32> to vector<16xf32>
    %23 = vector.shape_cast %22 : vector<16xf32> to vector<16x1xf32>
    %cst_14 = arith.constant 3.200000e+01 : f32
    %24 = vector.broadcast %cst_14 : f32 to vector<16x1xf32>
    %25 = arith.divf %23, %24 : vector<16x1xf32>
    %26 = vector.broadcast %18 : vector<16x1xf32> to vector<16x32xf32>
    %27 = arith.subf %0, %26 : vector<16x32xf32>
    %28 = vector.broadcast %6 : vector<1x32xf32> to vector<16x32xf32>
    %29 = arith.mulf %28, %27 : vector<16x32xf32>
    %cst_15 = arith.constant 9.99999997E-7 : f32
    %30 = vector.broadcast %cst_15 : f32 to vector<16x1xf32>
    %31 = arith.addf %25, %30 : vector<16x1xf32>
    %32 = math.sqrt %31 : vector<16x1xf32>
    %33 = vector.broadcast %32 : vector<16x1xf32> to vector<16x32xf32>
    %34 = arith.divf %29, %33 : vector<16x32xf32>
    %35 = vector.broadcast %7 : vector<1x32xf32> to vector<16x32xf32>
    %36 = arith.addf %34, %35 : vector<16x32xf32>
    %37 = vector.extract_strided_slice %2 {offsets = [0, 0], sizes = [96, 32], strides = [1, 1]} : vector<192x32xf32> to vector<96x32xf32>
    %38 = vector.extract_strided_slice %3 {offsets = [0, 0], sizes = [96, 1], strides = [1, 1]} : vector<192x1xf32> to vector<96x1xf32>
    %cst_16 = arith.constant dense<0.000000e+00> : vector<96x16xf32>
    %39 = tpu.matmul %37, %36, %cst_16 {dimension_numbers = #tpu.dot_dimension_numbers<[1], [1], [0], [0], [0, 0, 1, 0], [], []>} : vector<96x32xf32>, vector<16x32xf32>, vector<96x16xf32> -> vector<96x16xf32>
    %40 = vector.broadcast %38 : vector<96x1xf32> to vector<96x16xf32>
    %41 = arith.addf %39, %40 : vector<96x16xf32>
    %42 = vector.extract_strided_slice %41 {offsets = [0, 0], sizes = [96, 8], strides = [1, 1]} : vector<96x16xf32> to vector<96x8xf32>
    %c0_17 = arith.constant 0 : index
    %c0_18 = arith.constant 0 : index
    %43 = vector.load %arg2[%c0_17, %c0_18] : memref<16x8xf32, #tpu.memory_space<vmem>>, vector<8x8xf32>
    %44 = vector.extract_strided_slice %42 {offsets = [0, 0], sizes = [32, 8], strides = [1, 1]} : vector<96x8xf32> to vector<32x8xf32>
    %45 = vector.extract_strided_slice %42 {offsets = [32, 0], sizes = [32, 8], strides = [1, 1]} : vector<96x8xf32> to vector<32x8xf32>
    %46 = vector.extract_strided_slice %42 {offsets = [64, 0], sizes = [32, 8], strides = [1, 1]} : vector<96x8xf32> to vector<32x8xf32>
    %47 = vector.shape_cast %44 : vector<32x8xf32> to vector<4x8x8xf32>
    %48 = tpu.transpose %47, [0, 2, 1] : vector<4x8x8xf32> -> vector<4x8x8xf32>
    %49 = vector.shape_cast %45 : vector<32x8xf32> to vector<4x8x8xf32>
    %50 = vector.shape_cast %46 : vector<32x8xf32> to vector<4x8x8xf32>
    %cst_19 = arith.constant dense<0.000000e+00> : vector<4x8x8xf32>
    %51 = tpu.matmul %48, %49, %cst_19 {dimension_numbers = #tpu.dot_dimension_numbers<[2], [1], [1], [2], [0, 0, 0, 1, 1, 2], [0], [0]>} : vector<4x8x8xf32>, vector<4x8x8xf32>, vector<4x8x8xf32> -> vector<4x8x8xf32>
    %52 = vector.shape_cast %43 : vector<8x8xf32> to vector<1x8x8xf32>
    %53 = vector.broadcast %52 : vector<1x8x8xf32> to vector<4x8x8xf32>
    %54 = arith.addf %51, %53 : vector<4x8x8xf32>
    %cst_20 = arith.constant dense<0xFF800000> : vector<4x8xf32>
    %55 = vector.multi_reduction <maximumf>, %54, %cst_20 [2] : vector<4x8x8xf32> to vector<4x8xf32>
    %56 = vector.shape_cast %55 : vector<4x8xf32> to vector<4x8x1xf32>
    %57 = vector.broadcast %56 : vector<4x8x1xf32> to vector<4x8x8xf32>
    %58 = arith.subf %54, %57 : vector<4x8x8xf32>
    %59 = math.exp %58 : vector<4x8x8xf32>
    %cst_21 = arith.constant dense<0.000000e+00> : vector<4x8xf32>
    %60 = vector.multi_reduction <add>, %59, %cst_21 [2] : vector<4x8x8xf32> to vector<4x8xf32>
    %61 = vector.shape_cast %60 : vector<4x8xf32> to vector<4x8x1xf32>
    %62 = tpu.reciprocal %61 {approx = true} : vector<4x8x1xf32> -> vector<4x8x1xf32>
    %63 = vector.broadcast %62 : vector<4x8x1xf32> to vector<4x8x8xf32>
    %64 = arith.mulf %59, %63 : vector<4x8x8xf32>
    %cst_22 = arith.constant dense<0.000000e+00> : vector<4x8x8xf32>
    %65 = tpu.matmul %64, %50, %cst_22 {dimension_numbers = #tpu.dot_dimension_numbers<[2], [2], [1], [1], [0, 0, 0, 1, 1, 1], [0], [0]>} : vector<4x8x8xf32>, vector<4x8x8xf32>, vector<4x8x8xf32> -> vector<4x8x8xf32>
    %66 = vector.extract_strided_slice %41 {offsets = [0, 8], sizes = [96, 8], strides = [1, 1]} : vector<96x16xf32> to vector<96x8xf32>
    %c8 = arith.constant 8 : index
    %c0_23 = arith.constant 0 : index
    %67 = vector.load %arg2[%c8, %c0_23] : memref<16x8xf32, #tpu.memory_space<vmem>>, vector<8x8xf32>
    %68 = vector.extract_strided_slice %66 {offsets = [0, 0], sizes = [32, 8], strides = [1, 1]} : vector<96x8xf32> to vector<32x8xf32>
    %69 = vector.extract_strided_slice %66 {offsets = [32, 0], sizes = [32, 8], strides = [1, 1]} : vector<96x8xf32> to vector<32x8xf32>
    %70 = vector.extract_strided_slice %66 {offsets = [64, 0], sizes = [32, 8], strides = [1, 1]} : vector<96x8xf32> to vector<32x8xf32>
    %71 = vector.shape_cast %68 : vector<32x8xf32> to vector<4x8x8xf32>
    %72 = tpu.transpose %71, [0, 2, 1] : vector<4x8x8xf32> -> vector<4x8x8xf32>
    %73 = vector.shape_cast %69 : vector<32x8xf32> to vector<4x8x8xf32>
    %74 = vector.shape_cast %70 : vector<32x8xf32> to vector<4x8x8xf32>
    %cst_24 = arith.constant dense<0.000000e+00> : vector<4x8x8xf32>
    %75 = tpu.matmul %72, %73, %cst_24 {dimension_numbers = #tpu.dot_dimension_numbers<[2], [1], [1], [2], [0, 0, 0, 1, 1, 2], [0], [0]>} : vector<4x8x8xf32>, vector<4x8x8xf32>, vector<4x8x8xf32> -> vector<4x8x8xf32>
    %76 = vector.shape_cast %67 : vector<8x8xf32> to vector<1x8x8xf32>
    %77 = vector.broadcast %76 : vector<1x8x8xf32> to vector<4x8x8xf32>
    %78 = arith.addf %75, %77 : vector<4x8x8xf32>
    %cst_25 = arith.constant dense<0xFF800000> : vector<4x8xf32>
    %79 = vector.multi_reduction <maximumf>, %78, %cst_25 [2] : vector<4x8x8xf32> to vector<4x8xf32>
    %80 = vector.shape_cast %79 : vector<4x8xf32> to vector<4x8x1xf32>
    %81 = vector.broadcast %80 : vector<4x8x1xf32> to vector<4x8x8xf32>
    %82 = arith.subf %78, %81 : vector<4x8x8xf32>
    %83 = math.exp %82 : vector<4x8x8xf32>
    %cst_26 = arith.constant dense<0.000000e+00> : vector<4x8xf32>
    %84 = vector.multi_reduction <add>, %83, %cst_26 [2] : vector<4x8x8xf32> to vector<4x8xf32>
    %85 = vector.shape_cast %84 : vector<4x8xf32> to vector<4x8x1xf32>
    %86 = tpu.reciprocal %85 {approx = true} : vector<4x8x1xf32> -> vector<4x8x1xf32>
    %87 = vector.broadcast %86 : vector<4x8x1xf32> to vector<4x8x8xf32>
    %88 = arith.mulf %83, %87 : vector<4x8x8xf32>
    %cst_27 = arith.constant dense<0.000000e+00> : vector<4x8x8xf32>
    %89 = tpu.matmul %88, %74, %cst_27 {dimension_numbers = #tpu.dot_dimension_numbers<[2], [2], [1], [1], [0, 0, 0, 1, 1, 1], [0], [0]>} : vector<4x8x8xf32>, vector<4x8x8xf32>, vector<4x8x8xf32> -> vector<4x8x8xf32>
    %90 = tpu.concatenate %65, %89 in 1 : vector<4x8x8xf32>, vector<4x8x8xf32> -> vector<4x16x8xf32>
    %91 = vector.extract_strided_slice %4 {offsets = [0, 0, 0], sizes = [4, 8, 32], strides = [1, 1, 1]} : vector<8x8x32xf32> to vector<4x8x32xf32>
    %cst_28 = arith.constant dense<0.000000e+00> : vector<4x16x32xf32>
    %92 = tpu.matmul %90, %91, %cst_28 {dimension_numbers = #tpu.dot_dimension_numbers<[2], [1], [1], [2], [0, 0, 0, 1, 1, 2], [0], [0]>} : vector<4x16x8xf32>, vector<4x8x32xf32>, vector<4x16x32xf32> -> vector<4x16x32xf32>
    %cst_29 = arith.constant dense<0.000000e+00> : vector<16x32xf32>
    %93 = vector.multi_reduction <add>, %92, %cst_29 [0] : vector<4x16x32xf32> to vector<16x32xf32>
    %94 = vector.broadcast %12 : vector<1x32xf32> to vector<16x32xf32>
    %95 = arith.addf %93, %94 : vector<16x32xf32>
    %96 = arith.addf %95, %0 : vector<16x32xf32>
    %cst_30 = arith.constant dense<0.000000e+00> : vector<16xf32>
    %97 = vector.multi_reduction <add>, %96, %cst_30 [1] : vector<16x32xf32> to vector<16xf32>
    %98 = vector.shape_cast %97 : vector<16xf32> to vector<16x1xf32>
    %cst_31 = arith.constant 3.200000e+01 : f32
    %99 = vector.broadcast %cst_31 : f32 to vector<16x1xf32>
    %100 = arith.divf %98, %99 : vector<16x1xf32>
    %101 = vector.broadcast %100 : vector<16x1xf32> to vector<16x32xf32>
    %102 = arith.subf %96, %101 : vector<16x32xf32>
    %103 = arith.mulf %102, %102 : vector<16x32xf32>
    %cst_32 = arith.constant dense<0.000000e+00> : vector<16xf32>
    %104 = vector.multi_reduction <add>, %103, %cst_32 [1] : vector<16x32xf32> to vector<16xf32>
    %105 = vector.shape_cast %104 : vector<16xf32> to vector<16x1xf32>
    %cst_33 = arith.constant 3.200000e+01 : f32
    %106 = vector.broadcast %cst_33 : f32 to vector<16x1xf32>
    %107 = arith.divf %105, %106 : vector<16x1xf32>
    %108 = vector.broadcast %100 : vector<16x1xf32> to vector<16x32xf32>
    %109 = arith.subf %96, %108 : vector<16x32xf32>
    %110 = vector.broadcast %8 : vector<1x32xf32> to vector<16x32xf32>
    %111 = arith.mulf %110, %109 : vector<16x32xf32>
    %cst_34 = arith.constant 9.99999997E-7 : f32
    %112 = vector.broadcast %cst_34 : f32 to vector<16x1xf32>
    %113 = arith.addf %107, %112 : vector<16x1xf32>
    %114 = math.sqrt %113 : vector<16x1xf32>
    %115 = vector.broadcast %114 : vector<16x1xf32> to vector<16x32xf32>
    %116 = arith.divf %111, %115 : vector<16x32xf32>
    %117 = vector.broadcast %9 : vector<1x32xf32> to vector<16x32xf32>
    %118 = arith.addf %116, %117 : vector<16x32xf32>
    %119 = vector.extract_strided_slice %2 {offsets = [96, 0], sizes = [32, 32], strides = [1, 1]} : vector<192x32xf32> to vector<32x32xf32>
    %120 = vector.extract_strided_slice %3 {offsets = [96, 0], sizes = [32, 1], strides = [1, 1]} : vector<192x1xf32> to vector<32x1xf32>
    %cst_35 = arith.constant dense<0.000000e+00> : vector<32x16xf32>
    %121 = tpu.matmul %119, %118, %cst_35 {dimension_numbers = #tpu.dot_dimension_numbers<[1], [1], [0], [0], [0, 0, 1, 0], [], []>} : vector<32x32xf32>, vector<16x32xf32>, vector<32x16xf32> -> vector<32x16xf32>
    %122 = vector.broadcast %120 : vector<32x1xf32> to vector<32x16xf32>
    %123 = arith.addf %121, %122 : vector<32x16xf32>
    %124 = vector.extract_strided_slice %2 {offsets = [128, 0], sizes = [64, 32], strides = [1, 1]} : vector<192x32xf32> to vector<64x32xf32>
    %125 = vector.extract_strided_slice %3 {offsets = [128, 0], sizes = [64, 1], strides = [1, 1]} : vector<192x1xf32> to vector<64x1xf32>
    %cst_36 = arith.constant dense<0.000000e+00> : vector<64x32xf32>
    %126 = tpu.matmul %124, %1, %cst_36 {dimension_numbers = #tpu.dot_dimension_numbers<[1], [1], [0], [0], [0, 0, 1, 0], [], []>} : vector<64x32xf32>, vector<32x32xf32>, vector<64x32xf32> -> vector<64x32xf32>
    %127 = vector.broadcast %125 : vector<64x1xf32> to vector<64x32xf32>
    %128 = arith.addf %126, %127 : vector<64x32xf32>
    %129 = vector.extract_strided_slice %128 {offsets = [0, 0], sizes = [64, 16], strides = [1, 1]} : vector<64x32xf32> to vector<64x16xf32>
    %c0_37 = arith.constant 0 : index
    %c0_38 = arith.constant 0 : index
    %130 = vector.load %arg3[%c0_37, %c0_38] : memref<2x16xf32, #tpu.memory_space<vmem>>, vector<1x16xf32>
    %131 = vector.extract_strided_slice %123 {offsets = [0, 0], sizes = [32, 8], strides = [1, 1]} : vector<32x16xf32> to vector<32x8xf32>
    %132 = vector.extract_strided_slice %129 {offsets = [0, 0], sizes = [32, 16], strides = [1, 1]} : vector<64x16xf32> to vector<32x16xf32>
    %133 = vector.extract_strided_slice %129 {offsets = [32, 0], sizes = [32, 16], strides = [1, 1]} : vector<64x16xf32> to vector<32x16xf32>
    %134 = vector.shape_cast %131 : vector<32x8xf32> to vector<4x8x8xf32>
    %135 = tpu.transpose %134, [0, 2, 1] : vector<4x8x8xf32> -> vector<4x8x8xf32>
    %136 = vector.shape_cast %132 : vector<32x16xf32> to vector<4x8x16xf32>
    %137 = vector.shape_cast %133 : vector<32x16xf32> to vector<4x8x16xf32>
    %cst_39 = arith.constant dense<0.000000e+00> : vector<4x8x16xf32>
    %138 = tpu.matmul %135, %136, %cst_39 {dimension_numbers = #tpu.dot_dimension_numbers<[2], [1], [1], [2], [0, 0, 0, 1, 1, 2], [0], [0]>} : vector<4x8x8xf32>, vector<4x8x16xf32>, vector<4x8x16xf32> -> vector<4x8x16xf32>
    %139 = vector.shape_cast %130 : vector<1x16xf32> to vector<1x1x16xf32>
    %140 = vector.broadcast %139 : vector<1x1x16xf32> to vector<4x8x16xf32>
    %141 = arith.addf %138, %140 : vector<4x8x16xf32>
    %cst_40 = arith.constant dense<0xFF800000> : vector<4x8xf32>
    %142 = vector.multi_reduction <maximumf>, %141, %cst_40 [2] : vector<4x8x16xf32> to vector<4x8xf32>
    %143 = vector.shape_cast %142 : vector<4x8xf32> to vector<4x8x1xf32>
    %144 = vector.broadcast %143 : vector<4x8x1xf32> to vector<4x8x16xf32>
    %145 = arith.subf %141, %144 : vector<4x8x16xf32>
    %146 = math.exp %145 : vector<4x8x16xf32>
    %cst_41 = arith.constant dense<0.000000e+00> : vector<4x8xf32>
    %147 = vector.multi_reduction <add>, %146, %cst_41 [2] : vector<4x8x16xf32> to vector<4x8xf32>
    %148 = vector.shape_cast %147 : vector<4x8xf32> to vector<4x8x1xf32>
    %149 = tpu.reciprocal %148 {approx = true} : vector<4x8x1xf32> -> vector<4x8x1xf32>
    %150 = vector.broadcast %149 : vector<4x8x1xf32> to vector<4x8x16xf32>
    %151 = arith.mulf %146, %150 : vector<4x8x16xf32>
    %cst_42 = arith.constant dense<0.000000e+00> : vector<4x8x8xf32>
    %152 = tpu.matmul %151, %137, %cst_42 {dimension_numbers = #tpu.dot_dimension_numbers<[2], [2], [1], [1], [0, 0, 0, 1, 1, 1], [0], [0]>} : vector<4x8x16xf32>, vector<4x8x16xf32>, vector<4x8x8xf32> -> vector<4x8x8xf32>
    %153 = vector.extract_strided_slice %128 {offsets = [0, 16], sizes = [64, 16], strides = [1, 1]} : vector<64x32xf32> to vector<64x16xf32>
    %c1 = arith.constant 1 : index
    %c0_43 = arith.constant 0 : index
    %154 = vector.load %arg3[%c1, %c0_43] : memref<2x16xf32, #tpu.memory_space<vmem>>, vector<1x16xf32>
    %155 = vector.extract_strided_slice %123 {offsets = [0, 8], sizes = [32, 8], strides = [1, 1]} : vector<32x16xf32> to vector<32x8xf32>
    %156 = vector.extract_strided_slice %153 {offsets = [0, 0], sizes = [32, 16], strides = [1, 1]} : vector<64x16xf32> to vector<32x16xf32>
    %157 = vector.extract_strided_slice %153 {offsets = [32, 0], sizes = [32, 16], strides = [1, 1]} : vector<64x16xf32> to vector<32x16xf32>
    %158 = vector.shape_cast %155 : vector<32x8xf32> to vector<4x8x8xf32>
    %159 = tpu.transpose %158, [0, 2, 1] : vector<4x8x8xf32> -> vector<4x8x8xf32>
    %160 = vector.shape_cast %156 : vector<32x16xf32> to vector<4x8x16xf32>
    %161 = vector.shape_cast %157 : vector<32x16xf32> to vector<4x8x16xf32>
    %cst_44 = arith.constant dense<0.000000e+00> : vector<4x8x16xf32>
    %162 = tpu.matmul %159, %160, %cst_44 {dimension_numbers = #tpu.dot_dimension_numbers<[2], [1], [1], [2], [0, 0, 0, 1, 1, 2], [0], [0]>} : vector<4x8x8xf32>, vector<4x8x16xf32>, vector<4x8x16xf32> -> vector<4x8x16xf32>
    %163 = vector.shape_cast %154 : vector<1x16xf32> to vector<1x1x16xf32>
    %164 = vector.broadcast %163 : vector<1x1x16xf32> to vector<4x8x16xf32>
    %165 = arith.addf %162, %164 : vector<4x8x16xf32>
    %cst_45 = arith.constant dense<0xFF800000> : vector<4x8xf32>
    %166 = vector.multi_reduction <maximumf>, %165, %cst_45 [2] : vector<4x8x16xf32> to vector<4x8xf32>
    %167 = vector.shape_cast %166 : vector<4x8xf32> to vector<4x8x1xf32>
    %168 = vector.broadcast %167 : vector<4x8x1xf32> to vector<4x8x16xf32>
    %169 = arith.subf %165, %168 : vector<4x8x16xf32>
    %170 = math.exp %169 : vector<4x8x16xf32>
    %cst_46 = arith.constant dense<0.000000e+00> : vector<4x8xf32>
    %171 = vector.multi_reduction <add>, %170, %cst_46 [2] : vector<4x8x16xf32> to vector<4x8xf32>
    %172 = vector.shape_cast %171 : vector<4x8xf32> to vector<4x8x1xf32>
    %173 = tpu.reciprocal %172 {approx = true} : vector<4x8x1xf32> -> vector<4x8x1xf32>
    %174 = vector.broadcast %173 : vector<4x8x1xf32> to vector<4x8x16xf32>
    %175 = arith.mulf %170, %174 : vector<4x8x16xf32>
    %cst_47 = arith.constant dense<0.000000e+00> : vector<4x8x8xf32>
    %176 = tpu.matmul %175, %161, %cst_47 {dimension_numbers = #tpu.dot_dimension_numbers<[2], [2], [1], [1], [0, 0, 0, 1, 1, 1], [0], [0]>} : vector<4x8x16xf32>, vector<4x8x16xf32>, vector<4x8x8xf32> -> vector<4x8x8xf32>
    %177 = tpu.concatenate %152, %176 in 1 : vector<4x8x8xf32>, vector<4x8x8xf32> -> vector<4x16x8xf32>
    %178 = vector.extract_strided_slice %4 {offsets = [4, 0, 0], sizes = [4, 8, 32], strides = [1, 1, 1]} : vector<8x8x32xf32> to vector<4x8x32xf32>
    %cst_48 = arith.constant dense<0.000000e+00> : vector<4x16x32xf32>
    %179 = tpu.matmul %177, %178, %cst_48 {dimension_numbers = #tpu.dot_dimension_numbers<[2], [1], [1], [2], [0, 0, 0, 1, 1, 2], [0], [0]>} : vector<4x16x8xf32>, vector<4x8x32xf32>, vector<4x16x32xf32> -> vector<4x16x32xf32>
    %cst_49 = arith.constant dense<0.000000e+00> : vector<16x32xf32>
    %180 = vector.multi_reduction <add>, %179, %cst_49 [0] : vector<4x16x32xf32> to vector<16x32xf32>
    %181 = vector.broadcast %13 : vector<1x32xf32> to vector<16x32xf32>
    %182 = arith.addf %180, %181 : vector<16x32xf32>
    %183 = arith.addf %182, %96 : vector<16x32xf32>
    %cst_50 = arith.constant dense<0.000000e+00> : vector<16xf32>
    %184 = vector.multi_reduction <add>, %183, %cst_50 [1] : vector<16x32xf32> to vector<16xf32>
    %185 = vector.shape_cast %184 : vector<16xf32> to vector<16x1xf32>
    %cst_51 = arith.constant 3.200000e+01 : f32
    %186 = vector.broadcast %cst_51 : f32 to vector<16x1xf32>
    %187 = arith.divf %185, %186 : vector<16x1xf32>
    %188 = vector.broadcast %187 : vector<16x1xf32> to vector<16x32xf32>
    %189 = arith.subf %183, %188 : vector<16x32xf32>
    %190 = arith.mulf %189, %189 : vector<16x32xf32>
    %cst_52 = arith.constant dense<0.000000e+00> : vector<16xf32>
    %191 = vector.multi_reduction <add>, %190, %cst_52 [1] : vector<16x32xf32> to vector<16xf32>
    %192 = vector.shape_cast %191 : vector<16xf32> to vector<16x1xf32>
    %cst_53 = arith.constant 3.200000e+01 : f32
    %193 = vector.broadcast %cst_53 : f32 to vector<16x1xf32>
    %194 = arith.divf %192, %193 : vector<16x1xf32>
    %195 = vector.broadcast %187 : vector<16x1xf32> to vector<16x32xf32>
    %196 = arith.subf %183, %195 : vector<16x32xf32>
    %197 = vector.broadcast %10 : vector<1x32xf32> to vector<16x32xf32>
    %198 = arith.mulf %197, %196 : vector<16x32xf32>
    %cst_54 = arith.constant 9.99999997E-7 : f32
    %199 = vector.broadcast %cst_54 : f32 to vector<16x1xf32>
    %200 = arith.addf %194, %199 : vector<16x1xf32>
    %201 = math.sqrt %200 : vector<16x1xf32>
    %202 = vector.broadcast %201 : vector<16x1xf32> to vector<16x32xf32>
    %203 = arith.divf %198, %202 : vector<16x32xf32>
    %204 = vector.broadcast %11 : vector<1x32xf32> to vector<16x32xf32>
    %205 = arith.addf %203, %204 : vector<16x32xf32>
    %c0_55 = arith.constant 0 : index
    %c0_56 = arith.constant 0 : index
    %c0_57 = arith.constant 0 : index
    %206 = vector.load %arg7[%c0_55, %c0_56, %c0_57] : memref<2x32x64xf32, #tpu.memory_space<vmem>>, vector<1x32x64xf32>
    %207 = vector.shape_cast %206 : vector<1x32x64xf32> to vector<32x64xf32>
    %cst_58 = arith.constant dense<0.000000e+00> : vector<16x64xf32>
    %208 = tpu.matmul %205, %207, %cst_58 {dimension_numbers = #tpu.dot_dimension_numbers<[1], [0], [0], [1], [0, 0, 1, 1], [], []>} : vector<16x32xf32>, vector<32x64xf32>, vector<16x64xf32> -> vector<16x64xf32>
    %c0_59 = arith.constant 0 : index
    %c0_60 = arith.constant 0 : index
    %209 = vector.load %arg9[%c0_59, %c0_60] : memref<1x64xf32, #tpu.memory_space<vmem>>, vector<1x64xf32>
    %210 = vector.broadcast %209 : vector<1x64xf32> to vector<16x64xf32>
    %211 = arith.addf %208, %210 : vector<16x64xf32>
    %cst_61 = arith.constant 0.000000e+00 : f32
    %212 = vector.broadcast %cst_61 : f32 to vector<16x64xf32>
    %213 = arith.maximumf %211, %212 : vector<16x64xf32>
    %c1_62 = arith.constant 1 : index
    %c0_63 = arith.constant 0 : index
    %c0_64 = arith.constant 0 : index
    %214 = vector.load %arg7[%c1_62, %c0_63, %c0_64] : memref<2x32x64xf32, #tpu.memory_space<vmem>>, vector<1x32x64xf32>
    %215 = vector.shape_cast %214 : vector<1x32x64xf32> to vector<32x64xf32>
    %cst_65 = arith.constant dense<0.000000e+00> : vector<16x32xf32>
    %216 = tpu.matmul %213, %215, %cst_65 {dimension_numbers = #tpu.dot_dimension_numbers<[1], [1], [0], [0], [0, 0, 1, 0], [], []>} : vector<16x64xf32>, vector<32x64xf32>, vector<16x32xf32> -> vector<16x32xf32>
    %217 = vector.broadcast %14 : vector<1x32xf32> to vector<16x32xf32>
    %218 = arith.addf %216, %217 : vector<16x32xf32>
    %219 = arith.addf %218, %183 : vector<16x32xf32>
    %c0_66 = arith.constant 0 : index
    %c0_67 = arith.constant 0 : index
    %220 = vector.load %arg10[%c0_66, %c0_67] : memref<16x32xf32, #tpu.memory_space<vmem>>, vector<16x32xf32>
    tpu.vector_store %arg10[%c0_66, %c0_67], %219 {strides = array<i32>} : memref<16x32xf32, #tpu.memory_space<vmem>>, vector<16x32xf32>,
    return
  }
}

</mosaic_0001>

<llo_original>
// kernel: tpu_custom_call.1
$region0: #{tpu_custom_call.1}
  #allocation0 [shape = 'u32[]', space=smem, size = 0x4, offset = 0x4, fixed_abs, tag = 'smem constant byte address 0x4 - core index']
  #allocation1 [shape = 'u32[144,128]{1,0:T(1,128)}', space=vmem, size = 0x12000, scoped, tag = 'internal scratch']
  %s0 = inlined_call_operand.vmem [shape: f32[16,32], index: 0, kind: input, shape index: {}]
  %s1 = inlined_call_operand.vmem [shape: f32[32,32], index: 1, kind: input, shape index: {}]
  %s2 = inlined_call_operand.vmem [shape: f32[16,8], index: 2, kind: input, shape index: {}]
  %s3 = inlined_call_operand.vmem [shape: f32[2,16], index: 3, kind: input, shape index: {}]
  %s4 = inlined_call_operand.vmem [shape: f32[192,32], index: 4, kind: input, shape index: {}]
  %s5 = inlined_call_operand.vmem [shape: f32[192,1], index: 5, kind: input, shape index: {}]
  %s6 = inlined_call_operand.vmem [shape: f32[8,8,32], index: 6, kind: input, shape index: {}]
  %s7 = inlined_call_operand.vmem [shape: f32[2,32,64], index: 7, kind: input, shape index: {}]
  %s8 = inlined_call_operand.vmem [shape: f32[9,32], index: 8, kind: input, shape index: {}]
  %s9 = inlined_call_operand.vmem [shape: f32[1,64], index: 9, kind: input, shape index: {}]
  %s10 = inlined_call_operand.hbm [shape: f32[16,32], index: 10, kind: output, shape index: {}]
  %s11 = sld [smem:[#allocation0]]
  $region50: #{tpu_custom_call.1} parent=0
    _
  %s13 = ssub.s32 1, %s11
  %s14 = scalar_select 0, %s13, %s11
  $region1: #{tpu_custom_call.1} parent=0
    #allocation2 [shape = 'u8[8192]{0}', space=vmem, size = 0x2000, scoped, tag = 'output window, operand 0, single buffered']
    #allocation3 [shape = 's32[1]{0}', space=sflag, size = 0x4, scoped, tag = 'scoped memory for tpu_custom_call.1']
    %15 = vsyncpa [#allocation3], 0
    // Predicated region
    $region2: #{tpu_custom_call.1} parent=1 // pred_check
      _
    $region3: #{tpu_custom_call.1} parent=1 // pred_check_branch
      %17 = sbr.rel (0) target = $region5
    $region4: #{tpu_custom_call.1} parent=1 // pred_region
      _
    $region5: #{tpu_custom_call.1} parent=1 // pred_fallthru
      _
    // Predicated region
    $region6: #{tpu_custom_call.1} parent=1 // pred_check
      _
    $region7: #{tpu_custom_call.1} parent=1 // pred_check_branch
      %19 = sbr.rel (0) target = $region9
    $region8: #{tpu_custom_call.1} parent=1 // pred_region
      _
    $region9: #{tpu_custom_call.1} parent=1 // pred_fallthru
      _
    // Predicated region
    $region10: #{tpu_custom_call.1} parent=1 // pred_check
      _
    $region11: #{tpu_custom_call.1} parent=1 // pred_check_branch
      %21 = sbr.rel (0) target = $region13
    $region12: #{tpu_custom_call.1} parent=1 // pred_region
      _
    $region13: #{tpu_custom_call.1} parent=1 // pred_fallthru
      _
    // Predicated region
    $region14: #{tpu_custom_call.1} parent=1 // pred_check
      _
    $region15: #{tpu_custom_call.1} parent=1 // pred_check_branch
      %23 = sbr.rel (0) target = $region17
    $region16: #{tpu_custom_call.1} parent=1 // pred_region
      _
    $region17: #{tpu_custom_call.1} parent=1 // pred_fallthru
      _
    // Predicated region
    $region18: #{tpu_custom_call.1} parent=1 // pred_check
      _
    $region19: #{tpu_custom_call.1} parent=1 // pred_check_branch
      %25 = sbr.rel (0) target = $region21
    $region20: #{tpu_custom_call.1} parent=1 // pred_region
      _
    $region21: #{tpu_custom_call.1} parent=1 // pred_fallthru
      _
    // Predicated region
    $region22: #{tpu_custom_call.1} parent=1 // pred_check
      _
    $region23: #{tpu_custom_call.1} parent=1 // pred_check_branch
      %27 = sbr.rel (0) target = $region25
    $region24: #{tpu_custom_call.1} parent=1 // pred_region
      _
    $region25: #{tpu_custom_call.1} parent=1 // pred_fallthru
      _
    // Predicated region
    $region26: #{tpu_custom_call.1} parent=1 // pred_check
      _
    $region27: #{tpu_custom_call.1} parent=1 // pred_check_branch
      %29 = sbr.rel (0) target = $region29
    $region28: #{tpu_custom_call.1} parent=1 // pred_region
      _
    $region29: #{tpu_custom_call.1} parent=1 // pred_fallthru
      _
    // Predicated region
    $region30: #{tpu_custom_call.1} parent=1 // pred_check
      _
    $region31: #{tpu_custom_call.1} parent=1 // pred_check_branch
      %31 = sbr.rel (0) target = $region33
    $region32: #{tpu_custom_call.1} parent=1 // pred_region
      _
    $region33: #{tpu_custom_call.1} parent=1 // pred_fallthru
      _
    // Predicated region
    $region34: #{tpu_custom_call.1} parent=1 // pred_check
      _
    $region35: #{tpu_custom_call.1} parent=1 // pred_check_branch
      %33 = sbr.rel (0) target = $region37
    $region36: #{tpu_custom_call.1} parent=1 // pred_region
      _
    $region37: #{tpu_custom_call.1} parent=1 // pred_fallthru
      _
    // Predicated region
    $region38: #{tpu_custom_call.1} parent=1 // pred_check
      _
    $region39: #{tpu_custom_call.1} parent=1 // pred_check_branch
      %35 = sbr.rel (0) target = $region41
    $region40: #{tpu_custom_call.1} parent=1 // pred_region
      _
    $region41: #{tpu_custom_call.1} parent=1 // pred_fallthru
      _
    %v36 = vld [vmem:[%s0] sm:$0xff]
    %v37 = vld [vmem:[%s0 + $0x8] sm:$0xff]
    %v38 = vld [vmem:[%s1] sm:$0xff]
    %v39 = vld [vmem:[%s1 + $0x8] sm:$0xff]
    %v40 = vld [vmem:[%s1 + $0x10] sm:$0xff]
    %v41 = vld [vmem:[%s1 + $0x18] sm:$0xff]
    %v42 = vld [vmem:[%s4] sm:$0xff]
    %v43 = vld [vmem:[%s4 + $0x8] sm:$0xff]
    %v44 = vld [vmem:[%s4 + $0x10] sm:$0xff]
    %v45 = vld [vmem:[%s4 + $0x18] sm:$0xff]
    %v46 = vld [vmem:[%s4 + $0x20] sm:$0xff]
    %v47 = vld [vmem:[%s4 + $0x28] sm:$0xff]
    %v48 = vld [vmem:[%s4 + $0x30] sm:$0xff]
    %v49 = vld [vmem:[%s4 + $0x38] sm:$0xff]
    %v50 = vld [vmem:[%s4 + $0x40] sm:$0xff]
    %v51 = vld [vmem:[%s4 + $0x48] sm:$0xff]
    %v52 = vld [vmem:[%s4 + $0x50] sm:$0xff]
    %v53 = vld [vmem:[%s4 + $0x58] sm:$0xff]
    %v54 = vld [vmem:[%s4 + $0x60] sm:$0xff]
    %v55 = vld [vmem:[%s4 + $0x68] sm:$0xff]
    %v56 = vld [vmem:[%s4 + $0x70] sm:$0xff]
    %v57 = vld [vmem:[%s4 + $0x78] sm:$0xff]
    %v58 = vld [vmem:[%s4 + $0x80] sm:$0xff]
    %v59 = vld [vmem:[%s4 + $0x88] sm:$0xff]
    %v60 = vld [vmem:[%s4 + $0x90] sm:$0xff]
    %v61 = vld [vmem:[%s4 + $0x98] sm:$0xff]
    %v62 = vld [vmem:[%s4 + $0xa0] sm:$0xff]
    %v63 = vld [vmem:[%s4 + $0xa8] sm:$0xff]
    %v64 = vld [vmem:[%s4 + $0xb0] sm:$0xff]
    %v65 = vld [vmem:[%s4 + $0xb8] sm:$0xff]
    %v66 = vld [vmem:[%s5] sm:$0xff]
    %v67 = vld [vmem:[%s5 + $0x8] sm:$0xff]
    %v68 = vld [vmem:[%s5 + $0x10] sm:$0xff]
    %v69 = vld [vmem:[%s5 + $0x18] sm:$0xff]
    %v70 = vld [vmem:[%s5 + $0x20] sm:$0xff]
    %v71 = vld [vmem:[%s5 + $0x28] sm:$0xff]
    %v72 = vld [vmem:[%s5 + $0x30] sm:$0xff]
    %v73 = vld [vmem:[%s5 + $0x38] sm:$0xff]
    %v74 = vld [vmem:[%s5 + $0x40] sm:$0xff]
    %v75 = vld [vmem:[%s5 + $0x48] sm:$0xff]
    %v76 = vld [vmem:[%s5 + $0x50] sm:$0xff]
    %v77 = vld [vmem:[%s5 + $0x58] sm:$0xff]
    %v78 = vld [vmem:[%s5 + $0x60] sm:$0xff]
    %v79 = vld [vmem:[%s5 + $0x68] sm:$0xff]
    %v80 = vld [vmem:[%s5 + $0x70] sm:$0xff]
    %v81 = vld [vmem:[%s5 + $0x78] sm:$0xff]
    %v82 = vld [vmem:[%s5 + $0x80] sm:$0xff]
    %v83 = vld [vmem:[%s5 + $0x88] sm:$0xff]
    %v84 = vld [vmem:[%s5 + $0x90] sm:$0xff]
    %v85 = vld [vmem:[%s5 + $0x98] sm:$0xff]
    %v86 = vld [vmem:[%s5 + $0xa0] sm:$0xff]
    %v87 = vld [vmem:[%s5 + $0xa8] sm:$0xff]
    %v88 = vld [vmem:[%s5 + $0xb0] sm:$0xff]
    %v89 = vld [vmem:[%s5 + $0xb8] sm:$0xff]
    %v90 = vld [vmem:[%s6] sm:$0xff]
    %v91 = vld [vmem:[%s6 + $0x8] sm:$0xff]
    %v92 = vld [vmem:[%s6 + $0x10] sm:$0xff]
    %v93 = vld [vmem:[%s6 + $0x18] sm:$0xff]
    %v94 = vld [vmem:[%s6 + $0x20] sm:$0xff]
    %v95 = vld [vmem:[%s6 + $0x28] sm:$0xff]
    %v96 = vld [vmem:[%s6 + $0x30] sm:$0xff]
    %v97 = vld [vmem:[%s6 + $0x38] sm:$0xff]
    %v98 = vld [vmem:[%s8] sm:$0xff]
    %v99 = vld [vmem:[%s8 + $0x8] sm:$0x1]
    %vm100 = vcmask 261120
    %v101 = vsel %vm100, %v36, 0.0
    %102 = vadd.xlane.f32.xlu0 %v101
    %v103 = vpop.xlane.xlu0 %102
    %v104 = vsel %vm100, %v37, 0.0
    %105 = vadd.xlane.f32.xlu0 %v104
    %v106 = vpop.xlane.xlu0 %105
    %v107 = vrcp.pop 32.0
    %v108 = vmul.f32 %v103, %v107
    %v109 = vmul.f32 %v106, %v107
    %v110 = vsub.f32 %v36, %v108
    %v111 = vsub.f32 %v37, %v109
    %v112 = vmul.f32 %v110, %v110
    %v113 = vmul.f32 %v111, %v111
    %v114 = vsel %vm100, %v112, 0.0
    %115 = vadd.xlane.f32.xlu0 %v114
    %v116 = vpop.xlane.xlu0 %115
    %v117 = vsel %vm100, %v113, 0.0
    %118 = vadd.xlane.f32.xlu0 %v117
    %v119 = vpop.xlane.xlu0 %118
    %v120 = vmul.f32 %v116, %v107
    %v121 = vmul.f32 %v119, %v107
    %v122 = vlaneseq
    %v123 = vshrl.u32 %v122, 7
    %v124 = vsub.s32 0, %v123
    %v125 = vrot.slane %v98, %v124
    %v126 = vmul.f32 %v125, %v110
    %v127 = vmul.f32 %v125, %v111
    %v128 = vadd.f32 %v120, 1e-06
    %v129 = vadd.f32 %v121, 1e-06
    %v130 = vrsqrt.pop %v128
    %v131 = vmul.f32 %v128, %v130
    %vm132 = vcmp.eq.f32.partialorder %v128, inf
    %v133 = vsel %vm132, %v128, %v131
    %vm134 = vcmp.eq.f32.partialorder %v128, 0.0
    %v135 = vand.u32 %v128, 2147483648
    %v136 = vsel %vm134, %v135, %v133
    %v137 = vrsqrt.pop %v129
    %v138 = vmul.f32 %v129, %v137
    %vm139 = vcmp.eq.f32.partialorder %v129, inf
    %v140 = vsel %vm139, %v129, %v138
    %vm141 = vcmp.eq.f32.partialorder %v129, 0.0
    %v142 = vand.u32 %v129, 2147483648
    %v143 = vsel %vm141, %v142, %v140
    %v144 = vrcp.pop %v136
    %v145 = vmul.f32 %v126, %v144
    %v146 = vrcp.pop %v143
    %v147 = vmul.f32 %v127, %v146
    %v148 = vlaneseq
    %v149 = vshrl.u32 %v148, 7
    %v150 = vsub.s32 1, %v149
    %v151 = vrot.slane %v98, %v150
    %v152 = vadd.f32 %v145, %v151
    %v153 = vadd.f32 %v147, %v151
    %155 = vset.pattern.permute.xlu0 0
    %156 = vperm.xlu0 %155, %v66
    %v157 = vpop.permute.xlu0 %156
    %160 = vset.pattern.permute.xlu0 0
    %161 = vperm.xlu0 %160, %v67
    %v162 = vpop.permute.xlu0 %161
    %165 = vset.pattern.permute.xlu0 0
    %166 = vperm.xlu0 %165, %v68
    %v167 = vpop.permute.xlu0 %166
    %170 = vset.pattern.permute.xlu0 0
    %171 = vperm.xlu0 %170, %v69
    %v172 = vpop.permute.xlu0 %171
    %175 = vset.pattern.permute.xlu0 0
    %176 = vperm.xlu0 %175, %v70
    %v177 = vpop.permute.xlu0 %176
    %180 = vset.pattern.permute.xlu0 0
    %181 = vperm.xlu0 %180, %v71
    %v182 = vpop.permute.xlu0 %181
    %185 = vset.pattern.permute.xlu0 0
    %186 = vperm.xlu0 %185, %v72
    %v187 = vpop.permute.xlu0 %186
    %190 = vset.pattern.permute.xlu0 0
    %191 = vperm.xlu0 %190, %v73
    %v192 = vpop.permute.xlu0 %191
    %195 = vset.pattern.permute.xlu0 0
    %196 = vperm.xlu0 %195, %v74
    %v197 = vpop.permute.xlu0 %196
    %200 = vset.pattern.permute.xlu0 0
    %201 = vperm.xlu0 %200, %v75
    %v202 = vpop.permute.xlu0 %201
    %205 = vset.pattern.permute.xlu0 0
    %206 = vperm.xlu0 %205, %v76
    %v207 = vpop.permute.xlu0 %206
    %210 = vset.pattern.permute.xlu0 0
    %211 = vperm.xlu0 %210, %v77
    %v212 = vpop.permute.xlu0 %211
    %v215 = vsel %vm100, %v42, 0
    %v218 = vsel %vm100, %v43, 0
    %v221 = vsel %vm100, %v44, 0
    %v224 = vsel %vm100, %v45, 0
    %v227 = vsel %vm100, %v46, 0
    %v230 = vsel %vm100, %v47, 0
    %v233 = vsel %vm100, %v48, 0
    %v236 = vsel %vm100, %v49, 0
    %v239 = vsel %vm100, %v50, 0
    %v242 = vsel %vm100, %v51, 0
    %v245 = vsel %vm100, %v52, 0
    %v248 = vsel %vm100, %v53, 0
    %v251 = vsel %vm100, %v152, 0
    %v254 = vsel %vm100, %v153, 0
    %256 = vmatprep.subr.mxu0 0.0
    %257 = vmatpush1.xpose.msra.mxu0 0.0
    %258 = vmatprep.subr.mxu0 0.0
    %259 = vmatpush1.xpose.msra.mxu0 0.0
    %260 = vmatprep.subr.mxu0 0.0
    %261 = vmatpush1.xpose.msra.mxu0 0.0
    %262 = vmatprep.subr.mxu0 0.0
    %263 = vmatpush1.xpose.msra.mxu0 0.0
    %264 = vmatprep.subr.mxu0 0.0
    %265 = vmatpush1.xpose.msra.mxu0 0.0
    %266 = vmatprep.subr.mxu0 0.0
    %267 = vmatpush1.xpose.msra.mxu0 0.0
    %268 = vmatprep.subr.mxu0 0.0
    %269 = vmatpush1.xpose.msra.mxu0 0.0
    %270 = vmatprep.subr.mxu0 0.0
    %271 = vmatpush1.xpose.msra.mxu0 0.0
    %272 = vmatprep.subr.mxu0 0.0
    %273 = vmatpush1.xpose.msra.mxu0 0.0
    %274 = vmatprep.subr.mxu0 0.0
    %275 = vmatpush1.xpose.msra.mxu0 0.0
    %276 = vmatprep.subr.mxu0 0.0
    %277 = vmatpush1.xpose.msra.mxu0 0.0
    %278 = vmatprep.subr.mxu0 0.0
    %279 = vmatpush1.xpose.msra.mxu0 0.0
    %280 = vmatprep.subr.mxu0 0.0
    %281 = vmatpush1.xpose.msra.mxu0 0.0
    %282 = vmatprep.subr.mxu0 0.0
    %283 = vmatpush1.xpose.msra.mxu0 0.0
    %284 = vmatprep.subr.mxu0 0.0
    %285 = vmatpush1.xpose.msra.mxu0 %v254
    %286 = vmatprep.subr.mxu0 0.0
    %287 = vmatpush1.xpose.msra.mxu0 %v251
    %288 = vmatprep.subr.mxu0 0.0
    %289 = vmatpush2.xpose.msra.mxu0 0.0
    %290 = vmatprep.subr.mxu0 0.0
    %291 = vmatpush2.xpose.msra.mxu0 0.0
    %292 = vmatprep.subr.mxu0 0.0
    %293 = vmatpush2.xpose.msra.mxu0 0.0
    %294 = vmatprep.subr.mxu0 0.0
    %295 = vmatpush2.xpose.msra.mxu0 0.0
    %296 = vmatprep.subr.mxu0 0.0
    %297 = vmatpush2.xpose.msra.mxu0 0.0
    %298 = vmatprep.subr.mxu0 0.0
    %299 = vmatpush2.xpose.msra.mxu0 0.0
    %300 = vmatprep.subr.mxu0 0.0
    %301 = vmatpush2.xpose.msra.mxu0 0.0
    %302 = vmatprep.subr.mxu0 0.0
    %303 = vmatpush2.xpose.msra.mxu0 0.0
    %304 = vmatprep.subr.mxu0 0.0
    %305 = vmatpush2.xpose.msra.mxu0 0.0
    %306 = vmatprep.subr.mxu0 0.0
    %307 = vmatpush2.xpose.msra.mxu0 0.0
    %308 = vmatprep.subr.mxu0 0.0
    %309 = vmatpush2.xpose.msra.mxu0 0.0
    %310 = vmatprep.subr.mxu0 0.0
    %311 = vmatpush2.xpose.msra.mxu0 0.0
    %312 = vmatprep.subr.mxu0 0.0
    %313 = vmatpush2.xpose.msra.mxu0 0.0
    %314 = vmatprep.subr.mxu0 0.0
    %315 = vmatpush2.xpose.msra.mxu0 0.0
    %316 = vmatprep.subr.mxu0 0.0
    %317 = vmatpush2.xpose.msra.mxu0 0.0
    %318 = vmatprep.subr.mxu0 0.0
    %319 = vmatpush2.xpose.msra.mxu0 0.0
    %320 = vmatprep.mubr.f32.mxu0 0.0
    %321 = vmatmul.mubr.f32.gmra.mxu0 %v215
    %v322 = vpop.f32.mrf.mxu0
    %v323 = vadd.f32 %v157, %v322
    %v324 = vpop.f32.mrf.mxu0
    %325 = vmatprep.mubr.f32.mxu0 0.0
    %326 = vmatmul.mubr.f32.gmra.mxu0 %v218
    %v327 = vpop.f32.mrf.mxu0
    %v328 = vadd.f32 %v162, %v327
    %v329 = vpop.f32.mrf.mxu0
    %330 = vmatprep.mubr.f32.mxu0 0.0
    %331 = vmatmul.mubr.f32.gmra.mxu0 %v221
    %v332 = vpop.f32.mrf.mxu0
    %v333 = vadd.f32 %v167, %v332
    %v334 = vpop.f32.mrf.mxu0
    %335 = vmatprep.mubr.f32.mxu0 0.0
    %336 = vmatmul.mubr.f32.gmra.mxu0 %v224
    %v337 = vpop.f32.mrf.mxu0
    %v338 = vadd.f32 %v172, %v337
    %v339 = vpop.f32.mrf.mxu0
    %340 = vmatprep.mubr.f32.mxu0 0.0
    %341 = vmatmul.mubr.f32.gmra.mxu0 %v227
    %v342 = vpop.f32.mrf.mxu0
    %v343 = vadd.f32 %v177, %v342
    %v344 = vpop.f32.mrf.mxu0
    %345 = vmatprep.mubr.f32.mxu0 0.0
    %346 = vmatmul.mubr.f32.gmra.mxu0 %v230
    %v347 = vpop.f32.mrf.mxu0
    %v348 = vadd.f32 %v182, %v347
    %v349 = vpop.f32.mrf.mxu0
    %350 = vmatprep.mubr.f32.mxu0 0.0
    %351 = vmatmul.mubr.f32.gmra.mxu0 %v233
    %v352 = vpop.f32.mrf.mxu0
    %v353 = vadd.f32 %v187, %v352
    %v354 = vpop.f32.mrf.mxu0
    %355 = vmatprep.mubr.f32.mxu0 0.0
    %356 = vmatmul.mubr.f32.gmra.mxu0 %v236
    %v357 = vpop.f32.mrf.mxu0
    %v358 = vadd.f32 %v192, %v357
    %v359 = vpop.f32.mrf.mxu0
    %360 = vmatprep.mubr.f32.mxu0 0.0
    %361 = vmatmul.mubr.f32.gmra.mxu0 %v239
    %v362 = vpop.f32.mrf.mxu0
    %v363 = vadd.f32 %v197, %v362
    %v364 = vpop.f32.mrf.mxu0
    %365 = vmatprep.mubr.f32.mxu0 0.0
    %366 = vmatmul.mubr.f32.gmra.mxu0 %v242
    %v367 = vpop.f32.mrf.mxu0
    %v368 = vadd.f32 %v202, %v367
    %v369 = vpop.f32.mrf.mxu0
    %370 = vmatprep.mubr.f32.mxu0 0.0
    %371 = vmatmul.mubr.f32.gmra.mxu0 %v245
    %v372 = vpop.f32.mrf.mxu0
    %v373 = vadd.f32 %v207, %v372
    %v374 = vpop.f32.mrf.mxu0
    %375 = vmatprep.mubr.f32.mxu0 0.0
    %376 = vmatmul.mubr.f32.gmra.mxu0 %v248
    %v377 = vpop.f32.mrf.mxu0
    %v378 = vadd.f32 %v212, %v377
    %v379 = vpop.f32.mrf.mxu0
    %380 = vdwg.mxu0
    %v381 = vld [vmem:[%s2] sm:$0xff]
    %382 = vxpose.xlu0.b32.start [1/16] %v323, 128
    %383 = vxpose.xlu0.b32.cont [2/16] 0.0, 128
    %384 = vxpose.xlu0.b32.cont [3/16] 0.0, 128
    %385 = vxpose.xlu0.b32.cont [4/16] 0.0, 128
    %386 = vxpose.xlu0.b32.cont [5/16] 0.0, 128
    %387 = vxpose.xlu0.b32.cont [6/16] 0.0, 128
    %388 = vxpose.xlu0.b32.cont [7/16] 0.0, 128
    %389 = vxpose.xlu0.b32.cont [8/16] 0.0, 128
    %390 = vxpose.xlu0.b32.cont [9/16] 0.0, 128
    %391 = vxpose.xlu0.b32.cont [10/16] 0.0, 128
    %392 = vxpose.xlu0.b32.cont [11/16] 0.0, 128
    %393 = vxpose.xlu0.b32.cont [12/16] 0.0, 128
    %394 = vxpose.xlu0.b32.cont [13/16] 0.0, 128
    %395 = vxpose.xlu0.b32.cont [14/16] 0.0, 128
    %396 = vxpose.xlu0.b32.cont [15/16] 0.0, 128
    %397 = vxpose.xlu0.b32.end [16/16] 0.0, 128
    %v398 = vpop.trf.xlu0
    %v399 = vpop.trf.xlu0
    %v400 = vpop.trf.xlu0
    %v401 = vpop.trf.xlu0
    %v402 = vpop.trf.xlu0
    %v403 = vpop.trf.xlu0
    %v404 = vpop.trf.xlu0
    %v405 = vpop.trf.xlu0
    %v406 = vpop.trf.xlu0
    %v407 = vpop.trf.xlu0
    %v408 = vpop.trf.xlu0
    %v409 = vpop.trf.xlu0
    %v410 = vpop.trf.xlu0
    %v411 = vpop.trf.xlu0
    %v412 = vpop.trf.xlu0
    %v413 = vpop.trf.xlu0
    %414 = vxpose.xlu0.b32.start [1/16] %v328, 128
    %415 = vxpose.xlu0.b32.cont [2/16] 0.0, 128
    %416 = vxpose.xlu0.b32.cont [3/16] 0.0, 128
    %417 = vxpose.xlu0.b32.cont [4/16] 0.0, 128
    %418 = vxpose.xlu0.b32.cont [5/16] 0.0, 128
    %419 = vxpose.xlu0.b32.cont [6/16] 0.0, 128
    %420 = vxpose.xlu0.b32.cont [7/16] 0.0, 128
    %421 = vxpose.xlu0.b32.cont [8/16] 0.0, 128
    %422 = vxpose.xlu0.b32.cont [9/16] 0.0, 128
    %423 = vxpose.xlu0.b32.cont [10/16] 0.0, 128
    %424 = vxpose.xlu0.b32.cont [11/16] 0.0, 128
    %425 = vxpose.xlu0.b32.cont [12/16] 0.0, 128
    %426 = vxpose.xlu0.b32.cont [13/16] 0.0, 128
    %427 = vxpose.xlu0.b32.cont [14/16] 0.0, 128
    %428 = vxpose.xlu0.b32.cont [15/16] 0.0, 128
    %429 = vxpose.xlu0.b32.end [16/16] 0.0, 128
    %v430 = vpop.trf.xlu0
    %v431 = vpop.trf.xlu0
    %v432 = vpop.trf.xlu0
    %v433 = vpop.trf.xlu0
    %v434 = vpop.trf.xlu0
    %v435 = vpop.trf.xlu0
    %v436 = vpop.trf.xlu0
    %v437 = vpop.trf.xlu0
    %v438 = vpop.trf.xlu0
    %v439 = vpop.trf.xlu0
    %v440 = vpop.trf.xlu0
    %v441 = vpop.trf.xlu0
    %v442 = vpop.trf.xlu0
    %v443 = vpop.trf.xlu0
    %v444 = vpop.trf.xlu0
    %v445 = vpop.trf.xlu0
    %446 = vxpose.xlu0.b32.start [1/16] %v333, 128
    %447 = vxpose.xlu0.b32.cont [2/16] 0.0, 128
    %448 = vxpose.xlu0.b32.cont [3/16] 0.0, 128
    %449 = vxpose.xlu0.b32.cont [4/16] 0.0, 128
    %450 = vxpose.xlu0.b32.cont [5/16] 0.0, 128
    %451 = vxpose.xlu0.b32.cont [6/16] 0.0, 128
    %452 = vxpose.xlu0.b32.cont [7/16] 0.0, 128
    %453 = vxpose.xlu0.b32.cont [8/16] 0.0, 128
    %454 = vxpose.xlu0.b32.cont [9/16] 0.0, 128
    %455 = vxpose.xlu0.b32.cont [10/16] 0.0, 128
    %456 = vxpose.xlu0.b32.cont [11/16] 0.0, 128
    %457 = vxpose.xlu0.b32.cont [12/16] 0.0, 128
    %458 = vxpose.xlu0.b32.cont [13/16] 0.0, 128
    %459 = vxpose.xlu0.b32.cont [14/16] 0.0, 128
    %460 = vxpose.xlu0.b32.cont [15/16] 0.0, 128
    %461 = vxpose.xlu0.b32.end [16/16] 0.0, 128
    %v462 = vpop.trf.xlu0
    %v463 = vpop.trf.xlu0
    %v464 = vpop.trf.xlu0
    %v465 = vpop.trf.xlu0
    %v466 = vpop.trf.xlu0
    %v467 = vpop.trf.xlu0
    %v468 = vpop.trf.xlu0
    %v469 = vpop.trf.xlu0
    %v470 = vpop.trf.xlu0
    %v471 = vpop.trf.xlu0
    %v472 = vpop.trf.xlu0
    %v473 = vpop.trf.xlu0
    %v474 = vpop.trf.xlu0
    %v475 = vpop.trf.xlu0
    %v476 = vpop.trf.xlu0
    %v477 = vpop.trf.xlu0
    %478 = vxpose.xlu0.b32.start [1/16] %v338, 128
    %479 = vxpose.xlu0.b32.cont [2/16] 0.0, 128
    %480 = vxpose.xlu0.b32.cont [3/16] 0.0, 128
    %481 = vxpose.xlu0.b32.cont [4/16] 0.0, 128
    %482 = vxpose.xlu0.b32.cont [5/16] 0.0, 128
    %483 = vxpose.xlu0.b32.cont [6/16] 0.0, 128
    %484 = vxpose.xlu0.b32.cont [7/16] 0.0, 128
    %485 = vxpose.xlu0.b32.cont [8/16] 0.0, 128
    %486 = vxpose.xlu0.b32.cont [9/16] 0.0, 128
    %487 = vxpose.xlu0.b32.cont [10/16] 0.0, 128
    %488 = vxpose.xlu0.b32.cont [11/16] 0.0, 128
    %489 = vxpose.xlu0.b32.cont [12/16] 0.0, 128
    %490 = vxpose.xlu0.b32.cont [13/16] 0.0, 128
    %491 = vxpose.xlu0.b32.cont [14/16] 0.0, 128
    %492 = vxpose.xlu0.b32.cont [15/16] 0.0, 128
    %493 = vxpose.xlu0.b32.end [16/16] 0.0, 128
    %v494 = vpop.trf.xlu0
    %v495 = vpop.trf.xlu0
    %v496 = vpop.trf.xlu0
    %v497 = vpop.trf.xlu0
    %v498 = vpop.trf.xlu0
    %v499 = vpop.trf.xlu0
    %v500 = vpop.trf.xlu0
    %v501 = vpop.trf.xlu0
    %v502 = vpop.trf.xlu0
    %v503 = vpop.trf.xlu0
    %v504 = vpop.trf.xlu0
    %v505 = vpop.trf.xlu0
    %v506 = vpop.trf.xlu0
    %v507 = vpop.trf.xlu0
    %v508 = vpop.trf.xlu0
    %v509 = vpop.trf.xlu0
    %vm510 = vcmask 64512
    %v512 = vsel %vm510, %v398, 0
    %514 = vmatprep.subr.mxu0 0.0
    %515 = vmatpush1.msra.mxu0 0.0
    %516 = vmatprep.subr.mxu0 0.0
    %517 = vmatpush1.msra.mxu0 0.0
    %518 = vmatprep.subr.mxu0 0.0
    %519 = vmatpush1.msra.mxu0 0.0
    %520 = vmatprep.subr.mxu0 0.0
    %521 = vmatpush1.msra.mxu0 0.0
    %522 = vmatprep.subr.mxu0 0.0
    %523 = vmatpush1.msra.mxu0 0.0
    %524 = vmatprep.subr.mxu0 0.0
    %525 = vmatpush1.msra.mxu0 0.0
    %526 = vmatprep.subr.mxu0 0.0
    %527 = vmatpush1.msra.mxu0 0.0
    %528 = vmatprep.subr.mxu0 0.0
    %529 = vmatpush1.msra.mxu0 0.0
    %530 = vmatprep.subr.mxu0 0.0
    %531 = vmatpush1.msra.mxu0 0.0
    %532 = vmatprep.subr.mxu0 0.0
    %533 = vmatpush1.msra.mxu0 0.0
    %534 = vmatprep.subr.mxu0 0.0
    %535 = vmatpush1.msra.mxu0 0.0
    %536 = vmatprep.subr.mxu0 0.0
    %537 = vmatpush1.msra.mxu0 0.0
    %538 = vmatprep.subr.mxu0 0.0
    %539 = vmatpush1.msra.mxu0 0.0
    %540 = vmatprep.subr.mxu0 0.0
    %541 = vmatpush1.msra.mxu0 0.0
    %542 = vmatprep.subr.mxu0 0.0
    %543 = vmatpush1.msra.mxu0 0.0
    %544 = vmatprep.subr.mxu0 0.0
    %545 = vmatpush1.msra.mxu0 %v343
    %546 = vmatprep.subr.mxu0 0.0
    %547 = vmatpush2.msra.mxu0 0.0
    %548 = vmatprep.subr.mxu0 0.0
    %549 = vmatpush2.msra.mxu0 0.0
    %550 = vmatprep.subr.mxu0 0.0
    %551 = vmatpush2.msra.mxu0 0.0
    %552 = vmatprep.subr.mxu0 0.0
    %553 = vmatpush2.msra.mxu0 0.0
    %554 = vmatprep.subr.mxu0 0.0
    %555 = vmatpush2.msra.mxu0 0.0
    %556 = vmatprep.subr.mxu0 0.0
    %557 = vmatpush2.msra.mxu0 0.0
    %558 = vmatprep.subr.mxu0 0.0
    %559 = vmatpush2.msra.mxu0 0.0
    %560 = vmatprep.subr.mxu0 0.0
    %561 = vmatpush2.msra.mxu0 0.0
    %562 = vmatprep.subr.mxu0 0.0
    %563 = vmatpush2.msra.mxu0 0.0
    %564 = vmatprep.subr.mxu0 0.0
    %565 = vmatpush2.msra.mxu0 0.0
    %566 = vmatprep.subr.mxu0 0.0
    %567 = vmatpush2.msra.mxu0 0.0
    %568 = vmatprep.subr.mxu0 0.0
    %569 = vmatpush2.msra.mxu0 0.0
    %570 = vmatprep.subr.mxu0 0.0
    %571 = vmatpush2.msra.mxu0 0.0
    %572 = vmatprep.subr.mxu0 0.0
    %573 = vmatpush2.msra.mxu0 0.0
    %574 = vmatprep.subr.mxu0 0.0
    %575 = vmatpush2.msra.mxu0 0.0
    %576 = vmatprep.subr.mxu0 0.0
    %577 = vmatpush2.msra.mxu0 0.0
    %578 = vmatprep.mubr.f32.mxu0 0.0
    %579 = vmatmul.mubr.f32.gmra.mxu0 %v512
    %v580 = vpop.f32.mrf.mxu0
    %v581 = vadd.f32 %v381, %v580
    %v582 = vpop.f32.mrf.mxu0
    %583 = vdwg.mxu0
    %v585 = vsel %vm510, %v430, 0
    %587 = vmatprep.subr.mxu0 0.0
    %588 = vmatpush1.msra.mxu0 0.0
    %589 = vmatprep.subr.mxu0 0.0
    %590 = vmatpush1.msra.mxu0 0.0
    %591 = vmatprep.subr.mxu0 0.0
    %592 = vmatpush1.msra.mxu0 0.0
    %593 = vmatprep.subr.mxu0 0.0
    %594 = vmatpush1.msra.mxu0 0.0
    %595 = vmatprep.subr.mxu0 0.0
    %596 = vmatpush1.msra.mxu0 0.0
    %597 = vmatprep.subr.mxu0 0.0
    %598 = vmatpush1.msra.mxu0 0.0
    %599 = vmatprep.subr.mxu0 0.0
    %600 = vmatpush1.msra.mxu0 0.0
    %601 = vmatprep.subr.mxu0 0.0
    %602 = vmatpush1.msra.mxu0 0.0
    %603 = vmatprep.subr.mxu0 0.0
    %604 = vmatpush1.msra.mxu0 0.0
    %605 = vmatprep.subr.mxu0 0.0
    %606 = vmatpush1.msra.mxu0 0.0
    %607 = vmatprep.subr.mxu0 0.0
    %608 = vmatpush1.msra.mxu0 0.0
    %609 = vmatprep.subr.mxu0 0.0
    %610 = vmatpush1.msra.mxu0 0.0
    %611 = vmatprep.subr.mxu0 0.0
    %612 = vmatpush1.msra.mxu0 0.0
    %613 = vmatprep.subr.mxu0 0.0
    %614 = vmatpush1.msra.mxu0 0.0
    %615 = vmatprep.subr.mxu0 0.0
    %616 = vmatpush1.msra.mxu0 0.0
    %617 = vmatprep.subr.mxu0 0.0
    %618 = vmatpush1.msra.mxu0 %v348
    %619 = vmatprep.subr.mxu0 0.0
    %620 = vmatpush2.msra.mxu0 0.0
    %621 = vmatprep.subr.mxu0 0.0
    %622 = vmatpush2.msra.mxu0 0.0
    %623 = vmatprep.subr.mxu0 0.0
    %624 = vmatpush2.msra.mxu0 0.0
    %625 = vmatprep.subr.mxu0 0.0
    %626 = vmatpush2.msra.mxu0 0.0
    %627 = vmatprep.subr.mxu0 0.0
    %628 = vmatpush2.msra.mxu0 0.0
    %629 = vmatprep.subr.mxu0 0.0
    %630 = vmatpush2.msra.mxu0 0.0
    %631 = vmatprep.subr.mxu0 0.0
    %632 = vmatpush2.msra.mxu0 0.0
    %633 = vmatprep.subr.mxu0 0.0
    %634 = vmatpush2.msra.mxu0 0.0
    %635 = vmatprep.subr.mxu0 0.0
    %636 = vmatpush2.msra.mxu0 0.0
    %637 = vmatprep.subr.mxu0 0.0
    %638 = vmatpush2.msra.mxu0 0.0
    %639 = vmatprep.subr.mxu0 0.0
    %640 = vmatpush2.msra.mxu0 0.0
    %641 = vmatprep.subr.mxu0 0.0
    %642 = vmatpush2.msra.mxu0 0.0
    %643 = vmatprep.subr.mxu0 0.0
    %644 = vmatpush2.msra.mxu0 0.0
    %645 = vmatprep.subr.mxu0 0.0
    %646 = vmatpush2.msra.mxu0 0.0
    %647 = vmatprep.subr.mxu0 0.0
    %648 = vmatpush2.msra.mxu0 0.0
    %649 = vmatprep.subr.mxu0 0.0
    %650 = vmatpush2.msra.mxu0 0.0
    %651 = vmatprep.mubr.f32.mxu0 0.0
    %652 = vmatmul.mubr.f32.gmra.mxu0 %v585
    %v653 = vpop.f32.mrf.mxu0
    %v654 = vadd.f32 %v381, %v653
    %v655 = vpop.f32.mrf.mxu0
    %656 = vdwg.mxu0
    %v658 = vsel %vm510, %v462, 0
    %660 = vmatprep.subr.mxu0 0.0
    %661 = vmatpush1.msra.mxu0 0.0
    %662 = vmatprep.subr.mxu0 0.0
    %663 = vmatpush1.msra.mxu0 0.0
    %664 = vmatprep.subr.mxu0 0.0
    %665 = vmatpush1.msra.mxu0 0.0
    %666 = vmatprep.subr.mxu0 0.0
    %667 = vmatpush1.msra.mxu0 0.0
    %668 = vmatprep.subr.mxu0 0.0
    %669 = vmatpush1.msra.mxu0 0.0
    %670 = vmatprep.subr.mxu0 0.0
    %671 = vmatpush1.msra.mxu0 0.0
    %672 = vmatprep.subr.mxu0 0.0
    %673 = vmatpush1.msra.mxu0 0.0
    %674 = vmatprep.subr.mxu0 0.0
    %675 = vmatpush1.msra.mxu0 0.0
    %676 = vmatprep.subr.mxu0 0.0
    %677 = vmatpush1.msra.mxu0 0.0
    %678 = vmatprep.subr.mxu0 0.0
    %679 = vmatpush1.msra.mxu0 0.0
    %680 = vmatprep.subr.mxu0 0.0
    %681 = vmatpush1.msra.mxu0 0.0
    %682 = vmatprep.subr.mxu0 0.0
    %683 = vmatpush1.msra.mxu0 0.0
    %684 = vmatprep.subr.mxu0 0.0
    %685 = vmatpush1.msra.mxu0 0.0
    %686 = vmatprep.subr.mxu0 0.0
    %687 = vmatpush1.msra.mxu0 0.0
    %688 = vmatprep.subr.mxu0 0.0
    %689 = vmatpush1.msra.mxu0 0.0
    %690 = vmatprep.subr.mxu0 0.0
    %691 = vmatpush1.msra.mxu0 %v353
    %692 = vmatprep.subr.mxu0 0.0
    %693 = vmatpush2.msra.mxu0 0.0
    %694 = vmatprep.subr.mxu0 0.0
    %695 = vmatpush2.msra.mxu0 0.0
    %696 = vmatprep.subr.mxu0 0.0
    %697 = vmatpush2.msra.mxu0 0.0
    %698 = vmatprep.subr.mxu0 0.0
    %699 = vmatpush2.msra.mxu0 0.0
    %700 = vmatprep.subr.mxu0 0.0
    %701 = vmatpush2.msra.mxu0 0.0
    %702 = vmatprep.subr.mxu0 0.0
    %703 = vmatpush2.msra.mxu0 0.0
    %704 = vmatprep.subr.mxu0 0.0
    %705 = vmatpush2.msra.mxu0 0.0
    %706 = vmatprep.subr.mxu0 0.0
    %707 = vmatpush2.msra.mxu0 0.0
    %708 = vmatprep.subr.mxu0 0.0
    %709 = vmatpush2.msra.mxu0 0.0
    %710 = vmatprep.subr.mxu0 0.0
    %711 = vmatpush2.msra.mxu0 0.0
    %712 = vmatprep.subr.mxu0 0.0
    %713 = vmatpush2.msra.mxu0 0.0
    %714 = vmatprep.subr.mxu0 0.0
    %715 = vmatpush2.msra.mxu0 0.0
    %716 = vmatprep.subr.mxu0 0.0
    %717 = vmatpush2.msra.mxu0 0.0
    %718 = vmatprep.subr.mxu0 0.0
    %719 = vmatpush2.msra.mxu0 0.0
    %720 = vmatprep.subr.mxu0 0.0
    %721 = vmatpush2.msra.mxu0 0.0
    %722 = vmatprep.subr.mxu0 0.0
    %723 = vmatpush2.msra.mxu0 0.0
    %724 = vmatprep.mubr.f32.mxu0 0.0
    %725 = vmatmul.mubr.f32.gmra.mxu0 %v658
    %v726 = vpop.f32.mrf.mxu0
    %v727 = vadd.f32 %v381, %v726
    %v728 = vpop.f32.mrf.mxu0
    %729 = vdwg.mxu0
    %v731 = vsel %vm510, %v494, 0
    %733 = vmatprep.subr.mxu0 0.0
    %734 = vmatpush1.msra.mxu0 0.0
    %735 = vmatprep.subr.mxu0 0.0
    %736 = vmatpush1.msra.mxu0 0.0
    %737 = vmatprep.subr.mxu0 0.0
    %738 = vmatpush1.msra.mxu0 0.0
    %739 = vmatprep.subr.mxu0 0.0
    %740 = vmatpush1.msra.mxu0 0.0
    %741 = vmatprep.subr.mxu0 0.0
    %742 = vmatpush1.msra.mxu0 0.0
    %743 = vmatprep.subr.mxu0 0.0
    %744 = vmatpush1.msra.mxu0 0.0
    %745 = vmatprep.subr.mxu0 0.0
    %746 = vmatpush1.msra.mxu0 0.0
    %747 = vmatprep.subr.mxu0 0.0
    %748 = vmatpush1.msra.mxu0 0.0
    %749 = vmatprep.subr.mxu0 0.0
    %750 = vmatpush1.msra.mxu0 0.0
    %751 = vmatprep.subr.mxu0 0.0
    %752 = vmatpush1.msra.mxu0 0.0
    %753 = vmatprep.subr.mxu0 0.0
    %754 = vmatpush1.msra.mxu0 0.0
    %755 = vmatprep.subr.mxu0 0.0
    %756 = vmatpush1.msra.mxu0 0.0
    %757 = vmatprep.subr.mxu0 0.0
    %758 = vmatpush1.msra.mxu0 0.0
    %759 = vmatprep.subr.mxu0 0.0
    %760 = vmatpush1.msra.mxu0 0.0
    %761 = vmatprep.subr.mxu0 0.0
    %762 = vmatpush1.msra.mxu0 0.0
    %763 = vmatprep.subr.mxu0 0.0
    %764 = vmatpush1.msra.mxu0 %v358
    %765 = vmatprep.subr.mxu0 0.0
    %766 = vmatpush2.msra.mxu0 0.0
    %767 = vmatprep.subr.mxu0 0.0
    %768 = vmatpush2.msra.mxu0 0.0
    %769 = vmatprep.subr.mxu0 0.0
    %770 = vmatpush2.msra.mxu0 0.0
    %771 = vmatprep.subr.mxu0 0.0
    %772 = vmatpush2.msra.mxu0 0.0
    %773 = vmatprep.subr.mxu0 0.0
    %774 = vmatpush2.msra.mxu0 0.0
    %775 = vmatprep.subr.mxu0 0.0
    %776 = vmatpush2.msra.mxu0 0.0
    %777 = vmatprep.subr.mxu0 0.0
    %778 = vmatpush2.msra.mxu0 0.0
    %779 = vmatprep.subr.mxu0 0.0
    %780 = vmatpush2.msra.mxu0 0.0
    %781 = vmatprep.subr.mxu0 0.0
    %782 = vmatpush2.msra.mxu0 0.0
    %783 = vmatprep.subr.mxu0 0.0
    %784 = vmatpush2.msra.mxu0 0.0
    %785 = vmatprep.subr.mxu0 0.0
    %786 = vmatpush2.msra.mxu0 0.0
    %787 = vmatprep.subr.mxu0 0.0
    %788 = vmatpush2.msra.mxu0 0.0
    %789 = vmatprep.subr.mxu0 0.0
    %790 = vmatpush2.msra.mxu0 0.0
    %791 = vmatprep.subr.mxu0 0.0
    %792 = vmatpush2.msra.mxu0 0.0
    %793 = vmatprep.subr.mxu0 0.0
    %794 = vmatpush2.msra.mxu0 0.0
    %795 = vmatprep.subr.mxu0 0.0
    %796 = vmatpush2.msra.mxu0 0.0
    %797 = vmatprep.mubr.f32.mxu0 0.0
    %798 = vmatmul.mubr.f32.gmra.mxu0 %v731
    %v799 = vpop.f32.mrf.mxu0
    %v800 = vadd.f32 %v381, %v799
    %v801 = vpop.f32.mrf.mxu0
    %802 = vdwg.mxu0
    %v803 = vsel %vm510, %v581, -inf
    %804 = vmax.xlane.f32.xlu0 %v803
    %v805 = vpop.xlane.xlu0 %804
    %v806 = vsel %vm510, %v654, -inf
    %807 = vmax.xlane.f32.xlu0 %v806
    %v808 = vpop.xlane.xlu0 %807
    %v809 = vsel %vm510, %v727, -inf
    %810 = vmax.xlane.f32.xlu0 %v809
    %v811 = vpop.xlane.xlu0 %810
    %v812 = vsel %vm510, %v800, -inf
    %813 = vmax.xlane.f32.xlu0 %v812
    %v814 = vpop.xlane.xlu0 %813
    %v815 = vsub.f32 %v581, %v805
    %v816 = vsub.f32 %v654, %v808
    %v817 = vsub.f32 %v727, %v811
    %v818 = vsub.f32 %v800, %v814
    %v819 = vmul.f32 %v815, 1.442695
    %v820 = vpow.pop %v819
    %v821 = vmul.f32 %v816, 1.442695
    %v822 = vpow.pop %v821
    %v823 = vmul.f32 %v817, 1.442695
    %v824 = vpow.pop %v823
    %v825 = vmul.f32 %v818, 1.442695
    %v826 = vpow.pop %v825
    %v827 = vsel %vm510, %v820, 0.0
    %828 = vadd.xlane.f32.xlu0 %v827
    %v829 = vpop.xlane.xlu0 %828
    %v830 = vsel %vm510, %v822, 0.0
    %831 = vadd.xlane.f32.xlu0 %v830
    %v832 = vpop.xlane.xlu0 %831
    %v833 = vsel %vm510, %v824, 0.0
    %834 = vadd.xlane.f32.xlu0 %v833
    %v835 = vpop.xlane.xlu0 %834
    %v836 = vsel %vm510, %v826, 0.0
    %837 = vadd.xlane.f32.xlu0 %v836
    %v838 = vpop.xlane.xlu0 %837
    %v839 = vrcp.pop %v829
    %v840 = vrcp.pop %v832
    %v841 = vrcp.pop %v835
    %v842 = vrcp.pop %v838
    %v843 = vmul.f32 %v820, %v839
    %v844 = vmul.f32 %v822, %v840
    %v845 = vmul.f32 %v824, %v841
    %v846 = vmul.f32 %v826, %v842
    %v848 = vsel %vm510, %v843, 0
    %v851 = vsel %vm510, %v363, 0
    %853 = vmatprep.subr.mxu0 0.0
    %854 = vmatpush1.xpose.msra.mxu0 0.0
    %855 = vmatprep.subr.mxu0 0.0
    %856 = vmatpush1.xpose.msra.mxu0 0.0
    %857 = vmatprep.subr.mxu0 0.0
    %858 = vmatpush1.xpose.msra.mxu0 0.0
    %859 = vmatprep.subr.mxu0 0.0
    %860 = vmatpush1.xpose.msra.mxu0 0.0
    %861 = vmatprep.subr.mxu0 0.0
    %862 = vmatpush1.xpose.msra.mxu0 0.0
    %863 = vmatprep.subr.mxu0 0.0
    %864 = vmatpush1.xpose.msra.mxu0 0.0
    %865 = vmatprep.subr.mxu0 0.0
    %866 = vmatpush1.xpose.msra.mxu0 0.0
    %867 = vmatprep.subr.mxu0 0.0
    %868 = vmatpush1.xpose.msra.mxu0 0.0
    %869 = vmatprep.subr.mxu0 0.0
    %870 = vmatpush1.xpose.msra.mxu0 0.0
    %871 = vmatprep.subr.mxu0 0.0
    %872 = vmatpush1.xpose.msra.mxu0 0.0
    %873 = vmatprep.subr.mxu0 0.0
    %874 = vmatpush1.xpose.msra.mxu0 0.0
    %875 = vmatprep.subr.mxu0 0.0
    %876 = vmatpush1.xpose.msra.mxu0 0.0
    %877 = vmatprep.subr.mxu0 0.0
    %878 = vmatpush1.xpose.msra.mxu0 0.0
    %879 = vmatprep.subr.mxu0 0.0
    %880 = vmatpush1.xpose.msra.mxu0 0.0
    %881 = vmatprep.subr.mxu0 0.0
    %882 = vmatpush1.xpose.msra.mxu0 0.0
    %883 = vmatprep.subr.mxu0 0.0
    %884 = vmatpush1.xpose.msra.mxu0 %v851
    %885 = vmatprep.subr.mxu0 0.0
    %886 = vmatpush2.xpose.msra.mxu0 0.0
    %887 = vmatprep.subr.mxu0 0.0
    %888 = vmatpush2.xpose.msra.mxu0 0.0
    %889 = vmatprep.subr.mxu0 0.0
    %890 = vmatpush2.xpose.msra.mxu0 0.0
    %891 = vmatprep.subr.mxu0 0.0
    %892 = vmatpush2.xpose.msra.mxu0 0.0
    %893 = vmatprep.subr.mxu0 0.0
    %894 = vmatpush2.xpose.msra.mxu0 0.0
    %895 = vmatprep.subr.mxu0 0.0
    %896 = vmatpush2.xpose.msra.mxu0 0.0
    %897 = vmatprep.subr.mxu0 0.0
    %898 = vmatpush2.xpose.msra.mxu0 0.0
    %899 = vmatprep.subr.mxu0 0.0
    %900 = vmatpush2.xpose.msra.mxu0 0.0
    %901 = vmatprep.subr.mxu0 0.0
    %902 = vmatpush2.xpose.msra.mxu0 0.0
    %903 = vmatprep.subr.mxu0 0.0
    %904 = vmatpush2.xpose.msra.mxu0 0.0
    %905 = vmatprep.subr.mxu0 0.0
    %906 = vmatpush2.xpose.msra.mxu0 0.0
    %907 = vmatprep.subr.mxu0 0.0
    %908 = vmatpush2.xpose.msra.mxu0 0.0
    %909 = vmatprep.subr.mxu0 0.0
    %910 = vmatpush2.xpose.msra.mxu0 0.0
    %911 = vmatprep.subr.mxu0 0.0
    %912 = vmatpush2.xpose.msra.mxu0 0.0
    %913 = vmatprep.subr.mxu0 0.0
    %914 = vmatpush2.xpose.msra.mxu0 0.0
    %915 = vmatprep.subr.mxu0 0.0
    %916 = vmatpush2.xpose.msra.mxu0 0.0
    %917 = vmatprep.mubr.f32.mxu0 0.0
    %918 = vmatmul.mubr.f32.gmra.mxu0 %v848
    %v919 = vpop.f32.mrf.mxu0
    %v920 = vadd.f32 0.0, %v919
    %v921 = vpop.f32.mrf.mxu0
    %922 = vdwg.mxu0
    %v924 = vsel %vm510, %v844, 0
    %v927 = vsel %vm510, %v368, 0
    %929 = vmatprep.subr.mxu0 0.0
    %930 = vmatpush1.xpose.msra.mxu0 0.0
    %931 = vmatprep.subr.mxu0 0.0
    %932 = vmatpush1.xpose.msra.mxu0 0.0
    %933 = vmatprep.subr.mxu0 0.0
    %934 = vmatpush1.xpose.msra.mxu0 0.0
    %935 = vmatprep.subr.mxu0 0.0
    %936 = vmatpush1.xpose.msra.mxu0 0.0
    %937 = vmatprep.subr.mxu0 0.0
    %938 = vmatpush1.xpose.msra.mxu0 0.0
    %939 = vmatprep.subr.mxu0 0.0
    %940 = vmatpush1.xpose.msra.mxu0 0.0
    %941 = vmatprep.subr.mxu0 0.0
    %942 = vmatpush1.xpose.msra.mxu0 0.0
    %943 = vmatprep.subr.mxu0 0.0
    %944 = vmatpush1.xpose.msra.mxu0 0.0
    %945 = vmatprep.subr.mxu0 0.0
    %946 = vmatpush1.xpose.msra.mxu0 0.0
    %947 = vmatprep.subr.mxu0 0.0
    %948 = vmatpush1.xpose.msra.mxu0 0.0
    %949 = vmatprep.subr.mxu0 0.0
    %950 = vmatpush1.xpose.msra.mxu0 0.0
    %951 = vmatprep.subr.mxu0 0.0
    %952 = vmatpush1.xpose.msra.mxu0 0.0
    %953 = vmatprep.subr.mxu0 0.0
    %954 = vmatpush1.xpose.msra.mxu0 0.0
    %955 = vmatprep.subr.mxu0 0.0
    %956 = vmatpush1.xpose.msra.mxu0 0.0
    %957 = vmatprep.subr.mxu0 0.0
    %958 = vmatpush1.xpose.msra.mxu0 0.0
    %959 = vmatprep.subr.mxu0 0.0
    %960 = vmatpush1.xpose.msra.mxu0 %v927
    %961 = vmatprep.subr.mxu0 0.0
    %962 = vmatpush2.xpose.msra.mxu0 0.0
    %963 = vmatprep.subr.mxu0 0.0
    %964 = vmatpush2.xpose.msra.mxu0 0.0
    %965 = vmatprep.subr.mxu0 0.0
    %966 = vmatpush2.xpose.msra.mxu0 0.0
    %967 = vmatprep.subr.mxu0 0.0
    %968 = vmatpush2.xpose.msra.mxu0 0.0
    %969 = vmatprep.subr.mxu0 0.0
    %970 = vmatpush2.xpose.msra.mxu0 0.0
    %971 = vmatprep.subr.mxu0 0.0
    %972 = vmatpush2.xpose.msra.mxu0 0.0
    %973 = vmatprep.subr.mxu0 0.0
    %974 = vmatpush2.xpose.msra.mxu0 0.0
    %975 = vmatprep.subr.mxu0 0.0
    %976 = vmatpush2.xpose.msra.mxu0 0.0
    %977 = vmatprep.subr.mxu0 0.0
    %978 = vmatpush2.xpose.msra.mxu0 0.0
    %979 = vmatprep.subr.mxu0 0.0
    %980 = vmatpush2.xpose.msra.mxu0 0.0
    %981 = vmatprep.subr.mxu0 0.0
    %982 = vmatpush2.xpose.msra.mxu0 0.0
    %983 = vmatprep.subr.mxu0 0.0
    %984 = vmatpush2.xpose.msra.mxu0 0.0
    %985 = vmatprep.subr.mxu0 0.0
    %986 = vmatpush2.xpose.msra.mxu0 0.0
    %987 = vmatprep.subr.mxu0 0.0
    %988 = vmatpush2.xpose.msra.mxu0 0.0
    %989 = vmatprep.subr.mxu0 0.0
    %990 = vmatpush2.xpose.msra.mxu0 0.0
    %991 = vmatprep.subr.mxu0 0.0
    %992 = vmatpush2.xpose.msra.mxu0 0.0
    %993 = vmatprep.mubr.f32.mxu0 0.0
    %994 = vmatmul.mubr.f32.gmra.mxu0 %v924
    %v995 = vpop.f32.mrf.mxu0
    %v996 = vadd.f32 0.0, %v995
    %v997 = vpop.f32.mrf.mxu0
    %998 = vdwg.mxu0
    %v1000 = vsel %vm510, %v845, 0
    %v1003 = vsel %vm510, %v373, 0
    %1005 = vmatprep.subr.mxu0 0.0
    %1006 = vmatpush1.xpose.msra.mxu0 0.0
    %1007 = vmatprep.subr.mxu0 0.0
    %1008 = vmatpush1.xpose.msra.mxu0 0.0
    %1009 = vmatprep.subr.mxu0 0.0
    %1010 = vmatpush1.xpose.msra.mxu0 0.0
    %1011 = vmatprep.subr.mxu0 0.0
    %1012 = vmatpush1.xpose.msra.mxu0 0.0
    %1013 = vmatprep.subr.mxu0 0.0
    %1014 = vmatpush1.xpose.msra.mxu0 0.0
    %1015 = vmatprep.subr.mxu0 0.0
    %1016 = vmatpush1.xpose.msra.mxu0 0.0
    %1017 = vmatprep.subr.mxu0 0.0
    %1018 = vmatpush1.xpose.msra.mxu0 0.0
    %1019 = vmatprep.subr.mxu0 0.0
    %1020 = vmatpush1.xpose.msra.mxu0 0.0
    %1021 = vmatprep.subr.mxu0 0.0
    %1022 = vmatpush1.xpose.msra.mxu0 0.0
    %1023 = vmatprep.subr.mxu0 0.0
    %1024 = vmatpush1.xpose.msra.mxu0 0.0
    %1025 = vmatprep.subr.mxu0 0.0
    %1026 = vmatpush1.xpose.msra.mxu0 0.0
    %1027 = vmatprep.subr.mxu0 0.0
    %1028 = vmatpush1.xpose.msra.mxu0 0.0
    %1029 = vmatprep.subr.mxu0 0.0
    %1030 = vmatpush1.xpose.msra.mxu0 0.0
    %1031 = vmatprep.subr.mxu0 0.0
    %1032 = vmatpush1.xpose.msra.mxu0 0.0
    %1033 = vmatprep.subr.mxu0 0.0
    %1034 = vmatpush1.xpose.msra.mxu0 0.0
    %1035 = vmatprep.subr.mxu0 0.0
    %1036 = vmatpush1.xpose.msra.mxu0 %v1003
    %1037 = vmatprep.subr.mxu0 0.0
    %1038 = vmatpush2.xpose.msra.mxu0 0.0
    %1039 = vmatprep.subr.mxu0 0.0
    %1040 = vmatpush2.xpose.msra.mxu0 0.0
    %1041 = vmatprep.subr.mxu0 0.0
    %1042 = vmatpush2.xpose.msra.mxu0 0.0
    %1043 = vmatprep.subr.mxu0 0.0
    %1044 = vmatpush2.xpose.msra.mxu0 0.0
    %1045 = vmatprep.subr.mxu0 0.0
    %1046 = vmatpush2.xpose.msra.mxu0 0.0
    %1047 = vmatprep.subr.mxu0 0.0
    %1048 = vmatpush2.xpose.msra.mxu0 0.0
    %1049 = vmatprep.subr.mxu0 0.0
    %1050 = vmatpush2.xpose.msra.mxu0 0.0
    %1051 = vmatprep.subr.mxu0 0.0
    %1052 = vmatpush2.xpose.msra.mxu0 0.0
    %1053 = vmatprep.subr.mxu0 0.0
    %1054 = vmatpush2.xpose.msra.mxu0 0.0
    %1055 = vmatprep.subr.mxu0 0.0
    %1056 = vmatpush2.xpose.msra.mxu0 0.0
    %1057 = vmatprep.subr.mxu0 0.0
    %1058 = vmatpush2.xpose.msra.mxu0 0.0
    %1059 = vmatprep.subr.mxu0 0.0
    %1060 = vmatpush2.xpose.msra.mxu0 0.0
    %1061 = vmatprep.subr.mxu0 0.0
    %1062 = vmatpush2.xpose.msra.mxu0 0.0
    %1063 = vmatprep.subr.mxu0 0.0
    %1064 = vmatpush2.xpose.msra.mxu0 0.0
    %1065 = vmatprep.subr.mxu0 0.0
    %1066 = vmatpush2.xpose.msra.mxu0 0.0
    %1067 = vmatprep.subr.mxu0 0.0
    %1068 = vmatpush2.xpose.msra.mxu0 0.0
    %1069 = vmatprep.mubr.f32.mxu0 0.0
    %1070 = vmatmul.mubr.f32.gmra.mxu0 %v1000
    %v1071 = vpop.f32.mrf.mxu0
    %v1072 = vadd.f32 0.0, %v1071
    %v1073 = vpop.f32.mrf.mxu0
    %1074 = vdwg.mxu0
    %v1076 = vsel %vm510, %v846, 0
    %v1079 = vsel %vm510, %v378, 0
    %1081 = vmatprep.subr.mxu0 0.0
    %1082 = vmatpush1.xpose.msra.mxu0 0.0
    %1083 = vmatprep.subr.mxu0 0.0
    %1084 = vmatpush1.xpose.msra.mxu0 0.0
    %1085 = vmatprep.subr.mxu0 0.0
    %1086 = vmatpush1.xpose.msra.mxu0 0.0
    %1087 = vmatprep.subr.mxu0 0.0
    %1088 = vmatpush1.xpose.msra.mxu0 0.0
    %1089 = vmatprep.subr.mxu0 0.0
    %1090 = vmatpush1.xpose.msra.mxu0 0.0
    %1091 = vmatprep.subr.mxu0 0.0
    %1092 = vmatpush1.xpose.msra.mxu0 0.0
    %1093 = vmatprep.subr.mxu0 0.0
    %1094 = vmatpush1.xpose.msra.mxu0 0.0
    %1095 = vmatprep.subr.mxu0 0.0
    %1096 = vmatpush1.xpose.msra.mxu0 0.0
    %1097 = vmatprep.subr.mxu0 0.0
    %1098 = vmatpush1.xpose.msra.mxu0 0.0
    %1099 = vmatprep.subr.mxu0 0.0
    %1100 = vmatpush1.xpose.msra.mxu0 0.0
    %1101 = vmatprep.subr.mxu0 0.0
    %1102 = vmatpush1.xpose.msra.mxu0 0.0
    %1103 = vmatprep.subr.mxu0 0.0
    %1104 = vmatpush1.xpose.msra.mxu0 0.0
    %1105 = vmatprep.subr.mxu0 0.0
    %1106 = vmatpush1.xpose.msra.mxu0 0.0
    %1107 = vmatprep.subr.mxu0 0.0
    %1108 = vmatpush1.xpose.msra.mxu0 0.0
    %1109 = vmatprep.subr.mxu0 0.0
    %1110 = vmatpush1.xpose.msra.mxu0 0.0
    %1111 = vmatprep.subr.mxu0 0.0
    %1112 = vmatpush1.xpose.msra.mxu0 %v1079
    %1113 = vmatprep.subr.mxu0 0.0
    %1114 = vmatpush2.xpose.msra.mxu0 0.0
    %1115 = vmatprep.subr.mxu0 0.0
    %1116 = vmatpush2.xpose.msra.mxu0 0.0
    %1117 = vmatprep.subr.mxu0 0.0
    %1118 = vmatpush2.xpose.msra.mxu0 0.0
    %1119 = vmatprep.subr.mxu0 0.0
    %1120 = vmatpush2.xpose.msra.mxu0 0.0
    %1121 = vmatprep.subr.mxu0 0.0
    %1122 = vmatpush2.xpose.msra.mxu0 0.0
    %1123 = vmatprep.subr.mxu0 0.0
    %1124 = vmatpush2.xpose.msra.mxu0 0.0
    %1125 = vmatprep.subr.mxu0 0.0
    %1126 = vmatpush2.xpose.msra.mxu0 0.0
    %1127 = vmatprep.subr.mxu0 0.0
    %1128 = vmatpush2.xpose.msra.mxu0 0.0
    %1129 = vmatprep.subr.mxu0 0.0
    %1130 = vmatpush2.xpose.msra.mxu0 0.0
    %1131 = vmatprep.subr.mxu0 0.0
    %1132 = vmatpush2.xpose.msra.mxu0 0.0
    %1133 = vmatprep.subr.mxu0 0.0
    %1134 = vmatpush2.xpose.msra.mxu0 0.0
    %1135 = vmatprep.subr.mxu0 0.0
    %1136 = vmatpush2.xpose.msra.mxu0 0.0
    %1137 = vmatprep.subr.mxu0 0.0
    %1138 = vmatpush2.xpose.msra.mxu0 0.0
    %1139 = vmatprep.subr.mxu0 0.0
    %1140 = vmatpush2.xpose.msra.mxu0 0.0
    %1141 = vmatprep.subr.mxu0 0.0
    %1142 = vmatpush2.xpose.msra.mxu0 0.0
    %1143 = vmatprep.subr.mxu0 0.0
    %1144 = vmatpush2.xpose.msra.mxu0 0.0
    %1145 = vmatprep.mubr.f32.mxu0 0.0
    %1146 = vmatmul.mubr.f32.gmra.mxu0 %v1076
    %v1147 = vpop.f32.mrf.mxu0
    %v1148 = vadd.f32 0.0, %v1147
    %v1149 = vpop.f32.mrf.mxu0
    %1150 = vdwg.mxu0
    %v1151 = vld [vmem:[%s2 + $0x8] sm:$0xff]
    %1156 = vrot.lane.b32.xlu0 %v323, 120
    %v1157 = vpop.permute.xlu0 %1156
    %1158 = vrot.lane.b32.xlu0 %v328, 120
    %v1159 = vpop.permute.xlu0 %1158
    %1160 = vrot.lane.b32.xlu0 %v333, 120
    %v1161 = vpop.permute.xlu0 %1160
    %1162 = vrot.lane.b32.xlu0 %v338, 120
    %v1163 = vpop.permute.xlu0 %1162
    %1168 = vxpose.xlu0.b32.start [1/16] %v1157, 128
    %1169 = vxpose.xlu0.b32.cont [2/16] 0.0, 128
    %1170 = vxpose.xlu0.b32.cont [3/16] 0.0, 128
    %1171 = vxpose.xlu0.b32.cont [4/16] 0.0, 128
    %1172 = vxpose.xlu0.b32.cont [5/16] 0.0, 128
    %1173 = vxpose.xlu0.b32.cont [6/16] 0.0, 128
    %1174 = vxpose.xlu0.b32.cont [7/16] 0.0, 128
    %1175 = vxpose.xlu0.b32.cont [8/16] 0.0, 128
    %1176 = vxpose.xlu0.b32.cont [9/16] 0.0, 128
    %1177 = vxpose.xlu0.b32.cont [10/16] 0.0, 128
    %1178 = vxpose.xlu0.b32.cont [11/16] 0.0, 128
    %1179 = vxpose.xlu0.b32.cont [12/16] 0.0, 128
    %1180 = vxpose.xlu0.b32.cont [13/16] 0.0, 128
    %1181 = vxpose.xlu0.b32.cont [14/16] 0.0, 128
    %1182 = vxpose.xlu0.b32.cont [15/16] 0.0, 128
    %1183 = vxpose.xlu0.b32.end [16/16] 0.0, 128
    %v1184 = vpop.trf.xlu0
    %v1185 = vpop.trf.xlu0
    %v1186 = vpop.trf.xlu0
    %v1187 = vpop.trf.xlu0
    %v1188 = vpop.trf.xlu0
    %v1189 = vpop.trf.xlu0
    %v1190 = vpop.trf.xlu0
    %v1191 = vpop.trf.xlu0
    %v1192 = vpop.trf.xlu0
    %v1193 = vpop.trf.xlu0
    %v1194 = vpop.trf.xlu0
    %v1195 = vpop.trf.xlu0
    %v1196 = vpop.trf.xlu0
    %v1197 = vpop.trf.xlu0
    %v1198 = vpop.trf.xlu0
    %v1199 = vpop.trf.xlu0
    %1200 = vxpose.xlu0.b32.start [1/16] %v1159, 128
    %1201 = vxpose.xlu0.b32.cont [2/16] 0.0, 128
    %1202 = vxpose.xlu0.b32.cont [3/16] 0.0, 128
    %1203 = vxpose.xlu0.b32.cont [4/16] 0.0, 128
    %1204 = vxpose.xlu0.b32.cont [5/16] 0.0, 128
    %1205 = vxpose.xlu0.b32.cont [6/16] 0.0, 128
    %1206 = vxpose.xlu0.b32.cont [7/16] 0.0, 128
    %1207 = vxpose.xlu0.b32.cont [8/16] 0.0, 128
    %1208 = vxpose.xlu0.b32.cont [9/16] 0.0, 128
    %1209 = vxpose.xlu0.b32.cont [10/16] 0.0, 128
    %1210 = vxpose.xlu0.b32.cont [11/16] 0.0, 128
    %1211 = vxpose.xlu0.b32.cont [12/16] 0.0, 128
    %1212 = vxpose.xlu0.b32.cont [13/16] 0.0, 128
    %1213 = vxpose.xlu0.b32.cont [14/16] 0.0, 128
    %1214 = vxpose.xlu0.b32.cont [15/16] 0.0, 128
    %1215 = vxpose.xlu0.b32.end [16/16] 0.0, 128
    %v1216 = vpop.trf.xlu0
    %v1217 = vpop.trf.xlu0
    %v1218 = vpop.trf.xlu0
    %v1219 = vpop.trf.xlu0
    %v1220 = vpop.trf.xlu0
    %v1221 = vpop.trf.xlu0
    %v1222 = vpop.trf.xlu0
    %v1223 = vpop.trf.xlu0
    %v1224 = vpop.trf.xlu0
    %v1225 = vpop.trf.xlu0
    %v1226 = vpop.trf.xlu0
    %v1227 = vpop.trf.xlu0
    %v1228 = vpop.trf.xlu0
    %v1229 = vpop.trf.xlu0
    %v1230 = vpop.trf.xlu0
    %v1231 = vpop.trf.xlu0
    %1232 = vxpose.xlu0.b32.start [1/16] %v1161, 128
    %1233 = vxpose.xlu0.b32.cont [2/16] 0.0, 128
    %1234 = vxpose.xlu0.b32.cont [3/16] 0.0, 128
    %1235 = vxpose.xlu0.b32.cont [4/16] 0.0, 128
    %1236 = vxpose.xlu0.b32.cont [5/16] 0.0, 128
    %1237 = vxpose.xlu0.b32.cont [6/16] 0.0, 128
    %1238 = vxpose.xlu0.b32.cont [7/16] 0.0, 128
    %1239 = vxpose.xlu0.b32.cont [8/16] 0.0, 128
    %1240 = vxpose.xlu0.b32.cont [9/16] 0.0, 128
    %1241 = vxpose.xlu0.b32.cont [10/16] 0.0, 128
    %1242 = vxpose.xlu0.b32.cont [11/16] 0.0, 128
    %1243 = vxpose.xlu0.b32.cont [12/16] 0.0, 128
    %1244 = vxpose.xlu0.b32.cont [13/16] 0.0, 128
    %1245 = vxpose.xlu0.b32.cont [14/16] 0.0, 128
    %1246 = vxpose.xlu0.b32.cont [15/16] 0.0, 128
    %1247 = vxpose.xlu0.b32.end [16/16] 0.0, 128
    %v1248 = vpop.trf.xlu0
    %v1249 = vpop.trf.xlu0
    %v1250 = vpop.trf.xlu0
    %v1251 = vpop.trf.xlu0
    %v1252 = vpop.trf.xlu0
    %v1253 = vpop.trf.xlu0
    %v1254 = vpop.trf.xlu0
    %v1255 = vpop.trf.xlu0
    %v1256 = vpop.trf.xlu0
    %v1257 = vpop.trf.xlu0
    %v1258 = vpop.trf.xlu0
    %v1259 = vpop.trf.xlu0
    %v1260 = vpop.trf.xlu0
    %v1261 = vpop.trf.xlu0
    %v1262 = vpop.trf.xlu0
    %v1263 = vpop.trf.xlu0
    %1264 = vxpose.xlu0.b32.start [1/16] %v1163, 128
    %1265 = vxpose.xlu0.b32.cont [2/16] 0.0, 128
    %1266 = vxpose.xlu0.b32.cont [3/16] 0.0, 128
    %1267 = vxpose.xlu0.b32.cont [4/16] 0.0, 128
    %1268 = vxpose.xlu0.b32.cont [5/16] 0.0, 128
    %1269 = vxpose.xlu0.b32.cont [6/16] 0.0, 128
    %1270 = vxpose.xlu0.b32.cont [7/16] 0.0, 128
    %1271 = vxpose.xlu0.b32.cont [8/16] 0.0, 128
    %1272 = vxpose.xlu0.b32.cont [9/16] 0.0, 128
    %1273 = vxpose.xlu0.b32.cont [10/16] 0.0, 128
    %1274 = vxpose.xlu0.b32.cont [11/16] 0.0, 128
    %1275 = vxpose.xlu0.b32.cont [12/16] 0.0, 128
    %1276 = vxpose.xlu0.b32.cont [13/16] 0.0, 128
    %1277 = vxpose.xlu0.b32.cont [14/16] 0.0, 128
    %1278 = vxpose.xlu0.b32.cont [15/16] 0.0, 128
    %1279 = vxpose.xlu0.b32.end [16/16] 0.0, 128
    %v1280 = vpop.trf.xlu0
    %v1281 = vpop.trf.xlu0
    %v1282 = vpop.trf.xlu0
    %v1283 = vpop.trf.xlu0
    %v1284 = vpop.trf.xlu0
    %v1285 = vpop.trf.xlu0
    %v1286 = vpop.trf.xlu0
    %v1287 = vpop.trf.xlu0
    %v1288 = vpop.trf.xlu0
    %v1289 = vpop.trf.xlu0
    %v1290 = vpop.trf.xlu0
    %v1291 = vpop.trf.xlu0
    %v1292 = vpop.trf.xlu0
    %v1293 = vpop.trf.xlu0
    %v1294 = vpop.trf.xlu0
    %v1295 = vpop.trf.xlu0
    %1297 = vrot.lane.b32.xlu0 %v343, 120
    %v1298 = vpop.permute.xlu0 %1297
    %v1301 = vsel %vm510, %v1184, 0
    %1303 = vmatprep.subr.mxu0 0.0
    %1304 = vmatpush1.msra.mxu0 0.0
    %1305 = vmatprep.subr.mxu0 0.0
    %1306 = vmatpush1.msra.mxu0 0.0
    %1307 = vmatprep.subr.mxu0 0.0
    %1308 = vmatpush1.msra.mxu0 0.0
    %1309 = vmatprep.subr.mxu0 0.0
    %1310 = vmatpush1.msra.mxu0 0.0
    %1311 = vmatprep.subr.mxu0 0.0
    %1312 = vmatpush1.msra.mxu0 0.0
    %1313 = vmatprep.subr.mxu0 0.0
    %1314 = vmatpush1.msra.mxu0 0.0
    %1315 = vmatprep.subr.mxu0 0.0
    %1316 = vmatpush1.msra.mxu0 0.0
    %1317 = vmatprep.subr.mxu0 0.0
    %1318 = vmatpush1.msra.mxu0 0.0
    %1319 = vmatprep.subr.mxu0 0.0
    %1320 = vmatpush1.msra.mxu0 0.0
    %1321 = vmatprep.subr.mxu0 0.0
    %1322 = vmatpush1.msra.mxu0 0.0
    %1323 = vmatprep.subr.mxu0 0.0
    %1324 = vmatpush1.msra.mxu0 0.0
    %1325 = vmatprep.subr.mxu0 0.0
    %1326 = vmatpush1.msra.mxu0 0.0
    %1327 = vmatprep.subr.mxu0 0.0
    %1328 = vmatpush1.msra.mxu0 0.0
    %1329 = vmatprep.subr.mxu0 0.0
    %1330 = vmatpush1.msra.mxu0 0.0
    %1331 = vmatprep.subr.mxu0 0.0
    %1332 = vmatpush1.msra.mxu0 0.0
    %1333 = vmatprep.subr.mxu0 0.0
    %1334 = vmatpush1.msra.mxu0 %v1298
    %1335 = vmatprep.subr.mxu0 0.0
    %1336 = vmatpush2.msra.mxu0 0.0
    %1337 = vmatprep.subr.mxu0 0.0
    %1338 = vmatpush2.msra.mxu0 0.0
    %1339 = vmatprep.subr.mxu0 0.0
    %1340 = vmatpush2.msra.mxu0 0.0
    %1341 = vmatprep.subr.mxu0 0.0
    %1342 = vmatpush2.msra.mxu0 0.0
    %1343 = vmatprep.subr.mxu0 0.0
    %1344 = vmatpush2.msra.mxu0 0.0
    %1345 = vmatprep.subr.mxu0 0.0
    %1346 = vmatpush2.msra.mxu0 0.0
    %1347 = vmatprep.subr.mxu0 0.0
    %1348 = vmatpush2.msra.mxu0 0.0
    %1349 = vmatprep.subr.mxu0 0.0
    %1350 = vmatpush2.msra.mxu0 0.0
    %1351 = vmatprep.subr.mxu0 0.0
    %1352 = vmatpush2.msra.mxu0 0.0
    %1353 = vmatprep.subr.mxu0 0.0
    %1354 = vmatpush2.msra.mxu0 0.0
    %1355 = vmatprep.subr.mxu0 0.0
    %1356 = vmatpush2.msra.mxu0 0.0
    %1357 = vmatprep.subr.mxu0 0.0
    %1358 = vmatpush2.msra.mxu0 0.0
    %1359 = vmatprep.subr.mxu0 0.0
    %1360 = vmatpush2.msra.mxu0 0.0
    %1361 = vmatprep.subr.mxu0 0.0
    %1362 = vmatpush2.msra.mxu0 0.0
    %1363 = vmatprep.subr.mxu0 0.0
    %1364 = vmatpush2.msra.mxu0 0.0
    %1365 = vmatprep.subr.mxu0 0.0
    %1366 = vmatpush2.msra.mxu0 0.0
    %1367 = vmatprep.mubr.f32.mxu0 0.0
    %1368 = vmatmul.mubr.f32.gmra.mxu0 %v1301
    %v1369 = vpop.f32.mrf.mxu0
    %v1370 = vadd.f32 %v1151, %v1369
    %v1371 = vpop.f32.mrf.mxu0
    %1372 = vdwg.mxu0
    %1374 = vrot.lane.b32.xlu0 %v348, 120
    %v1375 = vpop.permute.xlu0 %1374
    %v1378 = vsel %vm510, %v1216, 0
    %1380 = vmatprep.subr.mxu0 0.0
    %1381 = vmatpush1.msra.mxu0 0.0
    %1382 = vmatprep.subr.mxu0 0.0
    %1383 = vmatpush1.msra.mxu0 0.0
    %1384 = vmatprep.subr.mxu0 0.0
    %1385 = vmatpush1.msra.mxu0 0.0
    %1386 = vmatprep.subr.mxu0 0.0
    %1387 = vmatpush1.msra.mxu0 0.0
    %1388 = vmatprep.subr.mxu0 0.0
    %1389 = vmatpush1.msra.mxu0 0.0
    %1390 = vmatprep.subr.mxu0 0.0
    %1391 = vmatpush1.msra.mxu0 0.0
    %1392 = vmatprep.subr.mxu0 0.0
    %1393 = vmatpush1.msra.mxu0 0.0
    %1394 = vmatprep.subr.mxu0 0.0
    %1395 = vmatpush1.msra.mxu0 0.0
    %1396 = vmatprep.subr.mxu0 0.0
    %1397 = vmatpush1.msra.mxu0 0.0
    %1398 = vmatprep.subr.mxu0 0.0
    %1399 = vmatpush1.msra.mxu0 0.0
    %1400 = vmatprep.subr.mxu0 0.0
    %1401 = vmatpush1.msra.mxu0 0.0
    %1402 = vmatprep.subr.mxu0 0.0
    %1403 = vmatpush1.msra.mxu0 0.0
    %1404 = vmatprep.subr.mxu0 0.0
    %1405 = vmatpush1.msra.mxu0 0.0
    %1406 = vmatprep.subr.mxu0 0.0
    %1407 = vmatpush1.msra.mxu0 0.0
    %1408 = vmatprep.subr.mxu0 0.0
    %1409 = vmatpush1.msra.mxu0 0.0
    %1410 = vmatprep.subr.mxu0 0.0
    %1411 = vmatpush1.msra.mxu0 %v1375
    %1412 = vmatprep.subr.mxu0 0.0
    %1413 = vmatpush2.msra.mxu0 0.0
    %1414 = vmatprep.subr.mxu0 0.0
    %1415 = vmatpush2.msra.mxu0 0.0
    %1416 = vmatprep.subr.mxu0 0.0
    %1417 = vmatpush2.msra.mxu0 0.0
    %1418 = vmatprep.subr.mxu0 0.0
    %1419 = vmatpush2.msra.mxu0 0.0
    %1420 = vmatprep.subr.mxu0 0.0
    %1421 = vmatpush2.msra.mxu0 0.0
    %1422 = vmatprep.subr.mxu0 0.0
    %1423 = vmatpush2.msra.mxu0 0.0
    %1424 = vmatprep.subr.mxu0 0.0
    %1425 = vmatpush2.msra.mxu0 0.0
    %1426 = vmatprep.subr.mxu0 0.0
    %1427 = vmatpush2.msra.mxu0 0.0
    %1428 = vmatprep.subr.mxu0 0.0
    %1429 = vmatpush2.msra.mxu0 0.0
    %1430 = vmatprep.subr.mxu0 0.0
    %1431 = vmatpush2.msra.mxu0 0.0
    %1432 = vmatprep.subr.mxu0 0.0
    %1433 = vmatpush2.msra.mxu0 0.0
    %1434 = vmatprep.subr.mxu0 0.0
    %1435 = vmatpush2.msra.mxu0 0.0
    %1436 = vmatprep.subr.mxu0 0.0
    %1437 = vmatpush2.msra.mxu0 0.0
    %1438 = vmatprep.subr.mxu0 0.0
    %1439 = vmatpush2.msra.mxu0 0.0
    %1440 = vmatprep.subr.mxu0 0.0
    %1441 = vmatpush2.msra.mxu0 0.0
    %1442 = vmatprep.subr.mxu0 0.0
    %1443 = vmatpush2.msra.mxu0 0.0
    %1444 = vmatprep.mubr.f32.mxu0 0.0
    %1445 = vmatmul.mubr.f32.gmra.mxu0 %v1378
    %v1446 = vpop.f32.mrf.mxu0
    %v1447 = vadd.f32 %v1151, %v1446
    %v1448 = vpop.f32.mrf.mxu0
    %1449 = vdwg.mxu0
    %1451 = vrot.lane.b32.xlu0 %v353, 120
    %v1452 = vpop.permute.xlu0 %1451
    %v1455 = vsel %vm510, %v1248, 0
    %1457 = vmatprep.subr.mxu0 0.0
    %1458 = vmatpush1.msra.mxu0 0.0
    %1459 = vmatprep.subr.mxu0 0.0
    %1460 = vmatpush1.msra.mxu0 0.0
    %1461 = vmatprep.subr.mxu0 0.0
    %1462 = vmatpush1.msra.mxu0 0.0
    %1463 = vmatprep.subr.mxu0 0.0
    %1464 = vmatpush1.msra.mxu0 0.0
    %1465 = vmatprep.subr.mxu0 0.0
    %1466 = vmatpush1.msra.mxu0 0.0
    %1467 = vmatprep.subr.mxu0 0.0
    %1468 = vmatpush1.msra.mxu0 0.0
    %1469 = vmatprep.subr.mxu0 0.0
    %1470 = vmatpush1.msra.mxu0 0.0
    %1471 = vmatprep.subr.mxu0 0.0
    %1472 = vmatpush1.msra.mxu0 0.0
    %1473 = vmatprep.subr.mxu0 0.0
    %1474 = vmatpush1.msra.mxu0 0.0
    %1475 = vmatprep.subr.mxu0 0.0
    %1476 = vmatpush1.msra.mxu0 0.0
    %1477 = vmatprep.subr.mxu0 0.0
    %1478 = vmatpush1.msra.mxu0 0.0
    %1479 = vmatprep.subr.mxu0 0.0
    %1480 = vmatpush1.msra.mxu0 0.0
    %1481 = vmatprep.subr.mxu0 0.0
    %1482 = vmatpush1.msra.mxu0 0.0
    %1483 = vmatprep.subr.mxu0 0.0
    %1484 = vmatpush1.msra.mxu0 0.0
    %1485 = vmatprep.subr.mxu0 0.0
    %1486 = vmatpush1.msra.mxu0 0.0
    %1487 = vmatprep.subr.mxu0 0.0
    %1488 = vmatpush1.msra.mxu0 %v1452
    %1489 = vmatprep.subr.mxu0 0.0
    %1490 = vmatpush2.msra.mxu0 0.0
    %1491 = vmatprep.subr.mxu0 0.0
    %1492 = vmatpush2.msra.mxu0 0.0
    %1493 = vmatprep.subr.mxu0 0.0
    %1494 = vmatpush2.msra.mxu0 0.0
    %1495 = vmatprep.subr.mxu0 0.0
    %1496 = vmatpush2.msra.mxu0 0.0
    %1497 = vmatprep.subr.mxu0 0.0
    %1498 = vmatpush2.msra.mxu0 0.0
    %1499 = vmatprep.subr.mxu0 0.0
    %1500 = vmatpush2.msra.mxu0 0.0
    %1501 = vmatprep.subr.mxu0 0.0
    %1502 = vmatpush2.msra.mxu0 0.0
    %1503 = vmatprep.subr.mxu0 0.0
    %1504 = vmatpush2.msra.mxu0 0.0
    %1505 = vmatprep.subr.mxu0 0.0
    %1506 = vmatpush2.msra.mxu0 0.0
    %1507 = vmatprep.subr.mxu0 0.0
    %1508 = vmatpush2.msra.mxu0 0.0
    %1509 = vmatprep.subr.mxu0 0.0
    %1510 = vmatpush2.msra.mxu0 0.0
    %1511 = vmatprep.subr.mxu0 0.0
    %1512 = vmatpush2.msra.mxu0 0.0
    %1513 = vmatprep.subr.mxu0 0.0
    %1514 = vmatpush2.msra.mxu0 0.0
    %1515 = vmatprep.subr.mxu0 0.0
    %1516 = vmatpush2.msra.mxu0 0.0
    %1517 = vmatprep.subr.mxu0 0.0
    %1518 = vmatpush2.msra.mxu0 0.0
    %1519 = vmatprep.subr.mxu0 0.0
    %1520 = vmatpush2.msra.mxu0 0.0
    %1521 = vmatprep.mubr.f32.mxu0 0.0
    %1522 = vmatmul.mubr.f32.gmra.mxu0 %v1455
    %v1523 = vpop.f32.mrf.mxu0
    %v1524 = vadd.f32 %v1151, %v1523
    %v1525 = vpop.f32.mrf.mxu0
    %1526 = vdwg.mxu0
    %1528 = vrot.lane.b32.xlu0 %v358, 120
    %v1529 = vpop.permute.xlu0 %1528
    %v1532 = vsel %vm510, %v1280, 0
    %1534 = vmatprep.subr.mxu0 0.0
    %1535 = vmatpush1.msra.mxu0 0.0
    %1536 = vmatprep.subr.mxu0 0.0
    %1537 = vmatpush1.msra.mxu0 0.0
    %1538 = vmatprep.subr.mxu0 0.0
    %1539 = vmatpush1.msra.mxu0 0.0
    %1540 = vmatprep.subr.mxu0 0.0
    %1541 = vmatpush1.msra.mxu0 0.0
    %1542 = vmatprep.subr.mxu0 0.0
    %1543 = vmatpush1.msra.mxu0 0.0
    %1544 = vmatprep.subr.mxu0 0.0
    %1545 = vmatpush1.msra.mxu0 0.0
    %1546 = vmatprep.subr.mxu0 0.0
    %1547 = vmatpush1.msra.mxu0 0.0
    %1548 = vmatprep.subr.mxu0 0.0
    %1549 = vmatpush1.msra.mxu0 0.0
    %1550 = vmatprep.subr.mxu0 0.0
    %1551 = vmatpush1.msra.mxu0 0.0
    %1552 = vmatprep.subr.mxu0 0.0
    %1553 = vmatpush1.msra.mxu0 0.0
    %1554 = vmatprep.subr.mxu0 0.0
    %1555 = vmatpush1.msra.mxu0 0.0
    %1556 = vmatprep.subr.mxu0 0.0
    %1557 = vmatpush1.msra.mxu0 0.0
    %1558 = vmatprep.subr.mxu0 0.0
    %1559 = vmatpush1.msra.mxu0 0.0
    %1560 = vmatprep.subr.mxu0 0.0
    %1561 = vmatpush1.msra.mxu0 0.0
    %1562 = vmatprep.subr.mxu0 0.0
    %1563 = vmatpush1.msra.mxu0 0.0
    %1564 = vmatprep.subr.mxu0 0.0
    %1565 = vmatpush1.msra.mxu0 %v1529
    %1566 = vmatprep.subr.mxu0 0.0
    %1567 = vmatpush2.msra.mxu0 0.0
    %1568 = vmatprep.subr.mxu0 0.0
    %1569 = vmatpush2.msra.mxu0 0.0
    %1570 = vmatprep.subr.mxu0 0.0
    %1571 = vmatpush2.msra.mxu0 0.0
    %1572 = vmatprep.subr.mxu0 0.0
    %1573 = vmatpush2.msra.mxu0 0.0
    %1574 = vmatprep.subr.mxu0 0.0
    %1575 = vmatpush2.msra.mxu0 0.0
    %1576 = vmatprep.subr.mxu0 0.0
    %1577 = vmatpush2.msra.mxu0 0.0
    %1578 = vmatprep.subr.mxu0 0.0
    %1579 = vmatpush2.msra.mxu0 0.0
    %1580 = vmatprep.subr.mxu0 0.0
    %1581 = vmatpush2.msra.mxu0 0.0
    %1582 = vmatprep.subr.mxu0 0.0
    %1583 = vmatpush2.msra.mxu0 0.0
    %1584 = vmatprep.subr.mxu0 0.0
    %1585 = vmatpush2.msra.mxu0 0.0
    %1586 = vmatprep.subr.mxu0 0.0
    %1587 = vmatpush2.msra.mxu0 0.0
    %1588 = vmatprep.subr.mxu0 0.0
    %1589 = vmatpush2.msra.mxu0 0.0
    %1590 = vmatprep.subr.mxu0 0.0
    %1591 = vmatpush2.msra.mxu0 0.0
    %1592 = vmatprep.subr.mxu0 0.0
    %1593 = vmatpush2.msra.mxu0 0.0
    %1594 = vmatprep.subr.mxu0 0.0
    %1595 = vmatpush2.msra.mxu0 0.0
    %1596 = vmatprep.subr.mxu0 0.0
    %1597 = vmatpush2.msra.mxu0 0.0
    %1598 = vmatprep.mubr.f32.mxu0 0.0
    %1599 = vmatmul.mubr.f32.gmra.mxu0 %v1532
    %v1600 = vpop.f32.mrf.mxu0
    %v1601 = vadd.f32 %v1151, %v1600
    %v1602 = vpop.f32.mrf.mxu0
    %1603 = vdwg.mxu0
    %v1604 = vsel %vm510, %v1370, -inf
    %1605 = vmax.xlane.f32.xlu0 %v1604
    %v1606 = vpop.xlane.xlu0 %1605
    %v1607 = vsel %vm510, %v1447, -inf
    %1608 = vmax.xlane.f32.xlu0 %v1607
    %v1609 = vpop.xlane.xlu0 %1608
    %v1610 = vsel %vm510, %v1524, -inf
    %1611 = vmax.xlane.f32.xlu0 %v1610
    %v1612 = vpop.xlane.xlu0 %1611
    %v1613 = vsel %vm510, %v1601, -inf
    %1614 = vmax.xlane.f32.xlu0 %v1613
    %v1615 = vpop.xlane.xlu0 %1614
    %v1616 = vsub.f32 %v1370, %v1606
    %v1617 = vsub.f32 %v1447, %v1609
    %v1618 = vsub.f32 %v1524, %v1612
    %v1619 = vsub.f32 %v1601, %v1615
    %v1620 = vmul.f32 %v1616, 1.442695
    %v1621 = vpow.pop %v1620
    %v1622 = vmul.f32 %v1617, 1.442695
    %v1623 = vpow.pop %v1622
    %v1624 = vmul.f32 %v1618, 1.442695
    %v1625 = vpow.pop %v1624
    %v1626 = vmul.f32 %v1619, 1.442695
    %v1627 = vpow.pop %v1626
    %v1628 = vsel %vm510, %v1621, 0.0
    %1629 = vadd.xlane.f32.xlu0 %v1628
    %v1630 = vpop.xlane.xlu0 %1629
    %v1631 = vsel %vm510, %v1623, 0.0
    %1632 = vadd.xlane.f32.xlu0 %v1631
    %v1633 = vpop.xlane.xlu0 %1632
    %v1634 = vsel %vm510, %v1625, 0.0
    %1635 = vadd.xlane.f32.xlu0 %v1634
    %v1636 = vpop.xlane.xlu0 %1635
    %v1637 = vsel %vm510, %v1627, 0.0
    %1638 = vadd.xlane.f32.xlu0 %v1637
    %v1639 = vpop.xlane.xlu0 %1638
    %v1640 = vrcp.pop %v1630
    %v1641 = vrcp.pop %v1633
    %v1642 = vrcp.pop %v1636
    %v1643 = vrcp.pop %v1639
    %v1644 = vmul.f32 %v1621, %v1640
    %v1645 = vmul.f32 %v1623, %v1641
    %v1646 = vmul.f32 %v1625, %v1642
    %v1647 = vmul.f32 %v1627, %v1643
    %1648 = vrot.lane.b32.xlu0 %v363, 120
    %v1649 = vpop.permute.xlu0 %1648
    %v1651 = vsel %vm510, %v1644, 0
    %v1653 = vsel %vm510, %v1649, 0
    %1655 = vmatprep.subr.mxu0 0.0
    %1656 = vmatpush1.xpose.msra.mxu0 0.0
    %1657 = vmatprep.subr.mxu0 0.0
    %1658 = vmatpush1.xpose.msra.mxu0 0.0
    %1659 = vmatprep.subr.mxu0 0.0
    %1660 = vmatpush1.xpose.msra.mxu0 0.0
    %1661 = vmatprep.subr.mxu0 0.0
    %1662 = vmatpush1.xpose.msra.mxu0 0.0
    %1663 = vmatprep.subr.mxu0 0.0
    %1664 = vmatpush1.xpose.msra.mxu0 0.0
    %1665 = vmatprep.subr.mxu0 0.0
    %1666 = vmatpush1.xpose.msra.mxu0 0.0
    %1667 = vmatprep.subr.mxu0 0.0
    %1668 = vmatpush1.xpose.msra.mxu0 0.0
    %1669 = vmatprep.subr.mxu0 0.0
    %1670 = vmatpush1.xpose.msra.mxu0 0.0
    %1671 = vmatprep.subr.mxu0 0.0
    %1672 = vmatpush1.xpose.msra.mxu0 0.0
    %1673 = vmatprep.subr.mxu0 0.0
    %1674 = vmatpush1.xpose.msra.mxu0 0.0
    %1675 = vmatprep.subr.mxu0 0.0
    %1676 = vmatpush1.xpose.msra.mxu0 0.0
    %1677 = vmatprep.subr.mxu0 0.0
    %1678 = vmatpush1.xpose.msra.mxu0 0.0
    %1679 = vmatprep.subr.mxu0 0.0
    %1680 = vmatpush1.xpose.msra.mxu0 0.0
    %1681 = vmatprep.subr.mxu0 0.0
    %1682 = vmatpush1.xpose.msra.mxu0 0.0
    %1683 = vmatprep.subr.mxu0 0.0
    %1684 = vmatpush1.xpose.msra.mxu0 0.0
    %1685 = vmatprep.subr.mxu0 0.0
    %1686 = vmatpush1.xpose.msra.mxu0 %v1653
    %1687 = vmatprep.subr.mxu0 0.0
    %1688 = vmatpush2.xpose.msra.mxu0 0.0
    %1689 = vmatprep.subr.mxu0 0.0
    %1690 = vmatpush2.xpose.msra.mxu0 0.0
    %1691 = vmatprep.subr.mxu0 0.0
    %1692 = vmatpush2.xpose.msra.mxu0 0.0
    %1693 = vmatprep.subr.mxu0 0.0
    %1694 = vmatpush2.xpose.msra.mxu0 0.0
    %1695 = vmatprep.subr.mxu0 0.0
    %1696 = vmatpush2.xpose.msra.mxu0 0.0
    %1697 = vmatprep.subr.mxu0 0.0
    %1698 = vmatpush2.xpose.msra.mxu0 0.0
    %1699 = vmatprep.subr.mxu0 0.0
    %1700 = vmatpush2.xpose.msra.mxu0 0.0
    %1701 = vmatprep.subr.mxu0 0.0
    %1702 = vmatpush2.xpose.msra.mxu0 0.0
    %1703 = vmatprep.subr.mxu0 0.0
    %1704 = vmatpush2.xpose.msra.mxu0 0.0
    %1705 = vmatprep.subr.mxu0 0.0
    %1706 = vmatpush2.xpose.msra.mxu0 0.0
    %1707 = vmatprep.subr.mxu0 0.0
    %1708 = vmatpush2.xpose.msra.mxu0 0.0
    %1709 = vmatprep.subr.mxu0 0.0
    %1710 = vmatpush2.xpose.msra.mxu0 0.0
    %1711 = vmatprep.subr.mxu0 0.0
    %1712 = vmatpush2.xpose.msra.mxu0 0.0
    %1713 = vmatprep.subr.mxu0 0.0
    %1714 = vmatpush2.xpose.msra.mxu0 0.0
    %1715 = vmatprep.subr.mxu0 0.0
    %1716 = vmatpush2.xpose.msra.mxu0 0.0
    %1717 = vmatprep.subr.mxu0 0.0
    %1718 = vmatpush2.xpose.msra.mxu0 0.0
    %1719 = vmatprep.mubr.f32.mxu0 0.0
    %1720 = vmatmul.mubr.f32.gmra.mxu0 %v1651
    %v1721 = vpop.f32.mrf.mxu0
    %v1722 = vadd.f32 0.0, %v1721
    %v1723 = vpop.f32.mrf.mxu0
    %1724 = vdwg.mxu0
    %1725 = vrot.lane.b32.xlu0 %v368, 120
    %v1726 = vpop.permute.xlu0 %1725
    %v1728 = vsel %vm510, %v1645, 0
    %v1730 = vsel %vm510, %v1726, 0
    %1732 = vmatprep.subr.mxu0 0.0
    %1733 = vmatpush1.xpose.msra.mxu0 0.0
    %1734 = vmatprep.subr.mxu0 0.0
    %1735 = vmatpush1.xpose.msra.mxu0 0.0
    %1736 = vmatprep.subr.mxu0 0.0
    %1737 = vmatpush1.xpose.msra.mxu0 0.0
    %1738 = vmatprep.subr.mxu0 0.0
    %1739 = vmatpush1.xpose.msra.mxu0 0.0
    %1740 = vmatprep.subr.mxu0 0.0
    %1741 = vmatpush1.xpose.msra.mxu0 0.0
    %1742 = vmatprep.subr.mxu0 0.0
    %1743 = vmatpush1.xpose.msra.mxu0 0.0
    %1744 = vmatprep.subr.mxu0 0.0
    %1745 = vmatpush1.xpose.msra.mxu0 0.0
    %1746 = vmatprep.subr.mxu0 0.0
    %1747 = vmatpush1.xpose.msra.mxu0 0.0
    %1748 = vmatprep.subr.mxu0 0.0
    %1749 = vmatpush1.xpose.msra.mxu0 0.0
    %1750 = vmatprep.subr.mxu0 0.0
    %1751 = vmatpush1.xpose.msra.mxu0 0.0
    %1752 = vmatprep.subr.mxu0 0.0
    %1753 = vmatpush1.xpose.msra.mxu0 0.0
    %1754 = vmatprep.subr.mxu0 0.0
    %1755 = vmatpush1.xpose.msra.mxu0 0.0
    %1756 = vmatprep.subr.mxu0 0.0
    %1757 = vmatpush1.xpose.msra.mxu0 0.0
    %1758 = vmatprep.subr.mxu0 0.0
    %1759 = vmatpush1.xpose.msra.mxu0 0.0
    %1760 = vmatprep.subr.mxu0 0.0
    %1761 = vmatpush1.xpose.msra.mxu0 0.0
    %1762 = vmatprep.subr.mxu0 0.0
    %1763 = vmatpush1.xpose.msra.mxu0 %v1730
    %1764 = vmatprep.subr.mxu0 0.0
    %1765 = vmatpush2.xpose.msra.mxu0 0.0
    %1766 = vmatprep.subr.mxu0 0.0
    %1767 = vmatpush2.xpose.msra.mxu0 0.0
    %1768 = vmatprep.subr.mxu0 0.0
    %1769 = vmatpush2.xpose.msra.mxu0 0.0
    %1770 = vmatprep.subr.mxu0 0.0
    %1771 = vmatpush2.xpose.msra.mxu0 0.0
    %1772 = vmatprep.subr.mxu0 0.0
    %1773 = vmatpush2.xpose.msra.mxu0 0.0
    %1774 = vmatprep.subr.mxu0 0.0
    %1775 = vmatpush2.xpose.msra.mxu0 0.0
    %1776 = vmatprep.subr.mxu0 0.0
    %1777 = vmatpush2.xpose.msra.mxu0 0.0
    %1778 = vmatprep.subr.mxu0 0.0
    %1779 = vmatpush2.xpose.msra.mxu0 0.0
    %1780 = vmatprep.subr.mxu0 0.0
    %1781 = vmatpush2.xpose.msra.mxu0 0.0
    %1782 = vmatprep.subr.mxu0 0.0
    %1783 = vmatpush2.xpose.msra.mxu0 0.0
    %1784 = vmatprep.subr.mxu0 0.0
    %1785 = vmatpush2.xpose.msra.mxu0 0.0
    %1786 = vmatprep.subr.mxu0 0.0
    %1787 = vmatpush2.xpose.msra.mxu0 0.0
    %1788 = vmatprep.subr.mxu0 0.0
    %1789 = vmatpush2.xpose.msra.mxu0 0.0
    %1790 = vmatprep.subr.mxu0 0.0
    %1791 = vmatpush2.xpose.msra.mxu0 0.0
    %1792 = vmatprep.subr.mxu0 0.0
    %1793 = vmatpush2.xpose.msra.mxu0 0.0
    %1794 = vmatprep.subr.mxu0 0.0
    %1795 = vmatpush2.xpose.msra.mxu0 0.0
    %1796 = vmatprep.mubr.f32.mxu0 0.0
    %1797 = vmatmul.mubr.f32.gmra.mxu0 %v1728
    %v1798 = vpop.f32.mrf.mxu0
    %v1799 = vadd.f32 0.0, %v1798
    %v1800 = vpop.f32.mrf.mxu0
    %1801 = vdwg.mxu0
    %1802 = vrot.lane.b32.xlu0 %v373, 120
    %v1803 = vpop.permute.xlu0 %1802
    %v1805 = vsel %vm510, %v1646, 0
    %v1807 = vsel %vm510, %v1803, 0
    %1809 = vmatprep.subr.mxu0 0.0
    %1810 = vmatpush1.xpose.msra.mxu0 0.0
    %1811 = vmatprep.subr.mxu0 0.0
    %1812 = vmatpush1.xpose.msra.mxu0 0.0
    %1813 = vmatprep.subr.mxu0 0.0
    %1814 = vmatpush1.xpose.msra.mxu0 0.0
    %1815 = vmatprep.subr.mxu0 0.0
    %1816 = vmatpush1.xpose.msra.mxu0 0.0
    %1817 = vmatprep.subr.mxu0 0.0
    %1818 = vmatpush1.xpose.msra.mxu0 0.0
    %1819 = vmatprep.subr.mxu0 0.0
    %1820 = vmatpush1.xpose.msra.mxu0 0.0
    %1821 = vmatprep.subr.mxu0 0.0
    %1822 = vmatpush1.xpose.msra.mxu0 0.0
    %1823 = vmatprep.subr.mxu0 0.0
    %1824 = vmatpush1.xpose.msra.mxu0 0.0
    %1825 = vmatprep.subr.mxu0 0.0
    %1826 = vmatpush1.xpose.msra.mxu0 0.0
    %1827 = vmatprep.subr.mxu0 0.0
    %1828 = vmatpush1.xpose.msra.mxu0 0.0
    %1829 = vmatprep.subr.mxu0 0.0
    %1830 = vmatpush1.xpose.msra.mxu0 0.0
    %1831 = vmatprep.subr.mxu0 0.0
    %1832 = vmatpush1.xpose.msra.mxu0 0.0
    %1833 = vmatprep.subr.mxu0 0.0
    %1834 = vmatpush1.xpose.msra.mxu0 0.0
    %1835 = vmatprep.subr.mxu0 0.0
    %1836 = vmatpush1.xpose.msra.mxu0 0.0
    %1837 = vmatprep.subr.mxu0 0.0
    %1838 = vmatpush1.xpose.msra.mxu0 0.0
    %1839 = vmatprep.subr.mxu0 0.0
    %1840 = vmatpush1.xpose.msra.mxu0 %v1807
    %1841 = vmatprep.subr.mxu0 0.0
    %1842 = vmatpush2.xpose.msra.mxu0 0.0
    %1843 = vmatprep.subr.mxu0 0.0
    %1844 = vmatpush2.xpose.msra.mxu0 0.0
    %1845 = vmatprep.subr.mxu0 0.0
    %1846 = vmatpush2.xpose.msra.mxu0 0.0
    %1847 = vmatprep.subr.mxu0 0.0
    %1848 = vmatpush2.xpose.msra.mxu0 0.0
    %1849 = vmatprep.subr.mxu0 0.0
    %1850 = vmatpush2.xpose.msra.mxu0 0.0
    %1851 = vmatprep.subr.mxu0 0.0
    %1852 = vmatpush2.xpose.msra.mxu0 0.0
    %1853 = vmatprep.subr.mxu0 0.0
    %1854 = vmatpush2.xpose.msra.mxu0 0.0
    %1855 = vmatprep.subr.mxu0 0.0
    %1856 = vmatpush2.xpose.msra.mxu0 0.0
    %1857 = vmatprep.subr.mxu0 0.0
    %1858 = vmatpush2.xpose.msra.mxu0 0.0
    %1859 = vmatprep.subr.mxu0 0.0
    %1860 = vmatpush2.xpose.msra.mxu0 0.0
    %1861 = vmatprep.subr.mxu0 0.0
    %1862 = vmatpush2.xpose.msra.mxu0 0.0
    %1863 = vmatprep.subr.mxu0 0.0
    %1864 = vmatpush2.xpose.msra.mxu0 0.0
    %1865 = vmatprep.subr.mxu0 0.0
    %1866 = vmatpush2.xpose.msra.mxu0 0.0
    %1867 = vmatprep.subr.mxu0 0.0
    %1868 = vmatpush2.xpose.msra.mxu0 0.0
    %1869 = vmatprep.subr.mxu0 0.0
    %1870 = vmatpush2.xpose.msra.mxu0 0.0
    %1871 = vmatprep.subr.mxu0 0.0
    %1872 = vmatpush2.xpose.msra.mxu0 0.0
    %1873 = vmatprep.mubr.f32.mxu0 0.0
    %1874 = vmatmul.mubr.f32.gmra.mxu0 %v1805
    %v1875 = vpop.f32.mrf.mxu0
    %v1876 = vadd.f32 0.0, %v1875
    %v1877 = vpop.f32.mrf.mxu0
    %1878 = vdwg.mxu0
    %1879 = vrot.lane.b32.xlu0 %v378, 120
    %v1880 = vpop.permute.xlu0 %1879
    %v1882 = vsel %vm510, %v1647, 0
    %v1884 = vsel %vm510, %v1880, 0
    %1886 = vmatprep.subr.mxu0 0.0
    %1887 = vmatpush1.xpose.msra.mxu0 0.0
    %1888 = vmatprep.subr.mxu0 0.0
    %1889 = vmatpush1.xpose.msra.mxu0 0.0
    %1890 = vmatprep.subr.mxu0 0.0
    %1891 = vmatpush1.xpose.msra.mxu0 0.0
    %1892 = vmatprep.subr.mxu0 0.0
    %1893 = vmatpush1.xpose.msra.mxu0 0.0
    %1894 = vmatprep.subr.mxu0 0.0
    %1895 = vmatpush1.xpose.msra.mxu0 0.0
    %1896 = vmatprep.subr.mxu0 0.0
    %1897 = vmatpush1.xpose.msra.mxu0 0.0
    %1898 = vmatprep.subr.mxu0 0.0
    %1899 = vmatpush1.xpose.msra.mxu0 0.0
    %1900 = vmatprep.subr.mxu0 0.0
    %1901 = vmatpush1.xpose.msra.mxu0 0.0
    %1902 = vmatprep.subr.mxu0 0.0
    %1903 = vmatpush1.xpose.msra.mxu0 0.0
    %1904 = vmatprep.subr.mxu0 0.0
    %1905 = vmatpush1.xpose.msra.mxu0 0.0
    %1906 = vmatprep.subr.mxu0 0.0
    %1907 = vmatpush1.xpose.msra.mxu0 0.0
    %1908 = vmatprep.subr.mxu0 0.0
    %1909 = vmatpush1.xpose.msra.mxu0 0.0
    %1910 = vmatprep.subr.mxu0 0.0
    %1911 = vmatpush1.xpose.msra.mxu0 0.0
    %1912 = vmatprep.subr.mxu0 0.0
    %1913 = vmatpush1.xpose.msra.mxu0 0.0
    %1914 = vmatprep.subr.mxu0 0.0
    %1915 = vmatpush1.xpose.msra.mxu0 0.0
    %1916 = vmatprep.subr.mxu0 0.0
    %1917 = vmatpush1.xpose.msra.mxu0 %v1884
    %1918 = vmatprep.subr.mxu0 0.0
    %1919 = vmatpush2.xpose.msra.mxu0 0.0
    %1920 = vmatprep.subr.mxu0 0.0
    %1921 = vmatpush2.xpose.msra.mxu0 0.0
    %1922 = vmatprep.subr.mxu0 0.0
    %1923 = vmatpush2.xpose.msra.mxu0 0.0
    %1924 = vmatprep.subr.mxu0 0.0
    %1925 = vmatpush2.xpose.msra.mxu0 0.0
    %1926 = vmatprep.subr.mxu0 0.0
    %1927 = vmatpush2.xpose.msra.mxu0 0.0
    %1928 = vmatprep.subr.mxu0 0.0
    %1929 = vmatpush2.xpose.msra.mxu0 0.0
    %1930 = vmatprep.subr.mxu0 0.0
    %1931 = vmatpush2.xpose.msra.mxu0 0.0
    %1932 = vmatprep.subr.mxu0 0.0
    %1933 = vmatpush2.xpose.msra.mxu0 0.0
    %1934 = vmatprep.subr.mxu0 0.0
    %1935 = vmatpush2.xpose.msra.mxu0 0.0
    %1936 = vmatprep.subr.mxu0 0.0
    %1937 = vmatpush2.xpose.msra.mxu0 0.0
    %1938 = vmatprep.subr.mxu0 0.0
    %1939 = vmatpush2.xpose.msra.mxu0 0.0
    %1940 = vmatprep.subr.mxu0 0.0
    %1941 = vmatpush2.xpose.msra.mxu0 0.0
    %1942 = vmatprep.subr.mxu0 0.0
    %1943 = vmatpush2.xpose.msra.mxu0 0.0
    %1944 = vmatprep.subr.mxu0 0.0
    %1945 = vmatpush2.xpose.msra.mxu0 0.0
    %1946 = vmatprep.subr.mxu0 0.0
    %1947 = vmatpush2.xpose.msra.mxu0 0.0
    %1948 = vmatprep.subr.mxu0 0.0
    %1949 = vmatpush2.xpose.msra.mxu0 0.0
    %1950 = vmatprep.mubr.f32.mxu0 0.0
    %1951 = vmatmul.mubr.f32.gmra.mxu0 %v1882
    %v1952 = vpop.f32.mrf.mxu0
    %v1953 = vadd.f32 0.0, %v1952
    %v1954 = vpop.f32.mrf.mxu0
    %1955 = vdwg.mxu0
    %v1957 = vsel %vm510, %v920, 0
    %v1960 = vsel %vm510, %v1722, 0
    %1962 = vmatprep.subr.mxu0 0.0
    %1963 = vmatpush1.msra.mxu0 0.0
    %1964 = vmatprep.subr.mxu0 0.0
    %1965 = vmatpush1.msra.mxu0 0.0
    %1966 = vmatprep.subr.mxu0 0.0
    %1967 = vmatpush1.msra.mxu0 0.0
    %1968 = vmatprep.subr.mxu0 0.0
    %1969 = vmatpush1.msra.mxu0 0.0
    %1970 = vmatprep.subr.mxu0 0.0
    %1971 = vmatpush1.msra.mxu0 0.0
    %1972 = vmatprep.subr.mxu0 0.0
    %1973 = vmatpush1.msra.mxu0 0.0
    %1974 = vmatprep.subr.mxu0 0.0
    %1975 = vmatpush1.msra.mxu0 0.0
    %1976 = vmatprep.subr.mxu0 0.0
    %1977 = vmatpush1.msra.mxu0 0.0
    %1978 = vmatprep.subr.mxu0 0.0
    %1979 = vmatpush1.msra.mxu0 0.0
    %1980 = vmatprep.subr.mxu0 0.0
    %1981 = vmatpush1.msra.mxu0 0.0
    %1982 = vmatprep.subr.mxu0 0.0
    %1983 = vmatpush1.msra.mxu0 0.0
    %1984 = vmatprep.subr.mxu0 0.0
    %1985 = vmatpush1.msra.mxu0 0.0
    %1986 = vmatprep.subr.mxu0 0.0
    %1987 = vmatpush1.msra.mxu0 0.0
    %1988 = vmatprep.subr.mxu0 0.0
    %1989 = vmatpush1.msra.mxu0 0.0
    %1990 = vmatprep.subr.mxu0 0.0
    %1991 = vmatpush1.msra.mxu0 0.0
    %1992 = vmatprep.subr.mxu0 0.0
    %1993 = vmatpush1.msra.mxu0 %v90
    %1994 = vmatprep.subr.mxu0 0.0
    %1995 = vmatpush2.msra.mxu0 0.0
    %1996 = vmatprep.subr.mxu0 0.0
    %1997 = vmatpush2.msra.mxu0 0.0
    %1998 = vmatprep.subr.mxu0 0.0
    %1999 = vmatpush2.msra.mxu0 0.0
    %2000 = vmatprep.subr.mxu0 0.0
    %2001 = vmatpush2.msra.mxu0 0.0
    %2002 = vmatprep.subr.mxu0 0.0
    %2003 = vmatpush2.msra.mxu0 0.0
    %2004 = vmatprep.subr.mxu0 0.0
    %2005 = vmatpush2.msra.mxu0 0.0
    %2006 = vmatprep.subr.mxu0 0.0
    %2007 = vmatpush2.msra.mxu0 0.0
    %2008 = vmatprep.subr.mxu0 0.0
    %2009 = vmatpush2.msra.mxu0 0.0
    %2010 = vmatprep.subr.mxu0 0.0
    %2011 = vmatpush2.msra.mxu0 0.0
    %2012 = vmatprep.subr.mxu0 0.0
    %2013 = vmatpush2.msra.mxu0 0.0
    %2014 = vmatprep.subr.mxu0 0.0
    %2015 = vmatpush2.msra.mxu0 0.0
    %2016 = vmatprep.subr.mxu0 0.0
    %2017 = vmatpush2.msra.mxu0 0.0
    %2018 = vmatprep.subr.mxu0 0.0
    %2019 = vmatpush2.msra.mxu0 0.0
    %2020 = vmatprep.subr.mxu0 0.0
    %2021 = vmatpush2.msra.mxu0 0.0
    %2022 = vmatprep.subr.mxu0 0.0
    %2023 = vmatpush2.msra.mxu0 0.0
    %2024 = vmatprep.subr.mxu0 0.0
    %2025 = vmatpush2.msra.mxu0 0.0
    %2026 = vmatprep.mubr.f32.mxu0 0.0
    %2027 = vmatmul.mubr.f32.gmra.mxu0 %v1957
    %v2028 = vpop.f32.mrf.mxu0
    %v2029 = vadd.f32 0.0, %v2028
    %v2030 = vpop.f32.mrf.mxu0
    %2031 = vmatprep.mubr.f32.mxu0 0.0
    %2032 = vmatmul.mubr.f32.gmra.mxu0 %v1960
    %v2033 = vpop.f32.mrf.mxu0
    %v2034 = vadd.f32 0.0, %v2033
    %v2035 = vpop.f32.mrf.mxu0
    %2036 = vdwg.mxu0
    %v2038 = vsel %vm510, %v996, 0
    %v2041 = vsel %vm510, %v1799, 0
    %2043 = vmatprep.subr.mxu0 0.0
    %2044 = vmatpush1.msra.mxu0 0.0
    %2045 = vmatprep.subr.mxu0 0.0
    %2046 = vmatpush1.msra.mxu0 0.0
    %2047 = vmatprep.subr.mxu0 0.0
    %2048 = vmatpush1.msra.mxu0 0.0
    %2049 = vmatprep.subr.mxu0 0.0
    %2050 = vmatpush1.msra.mxu0 0.0
    %2051 = vmatprep.subr.mxu0 0.0
    %2052 = vmatpush1.msra.mxu0 0.0
    %2053 = vmatprep.subr.mxu0 0.0
    %2054 = vmatpush1.msra.mxu0 0.0
    %2055 = vmatprep.subr.mxu0 0.0
    %2056 = vmatpush1.msra.mxu0 0.0
    %2057 = vmatprep.subr.mxu0 0.0
    %2058 = vmatpush1.msra.mxu0 0.0
    %2059 = vmatprep.subr.mxu0 0.0
    %2060 = vmatpush1.msra.mxu0 0.0
    %2061 = vmatprep.subr.mxu0 0.0
    %2062 = vmatpush1.msra.mxu0 0.0
    %2063 = vmatprep.subr.mxu0 0.0
    %2064 = vmatpush1.msra.mxu0 0.0
    %2065 = vmatprep.subr.mxu0 0.0
    %2066 = vmatpush1.msra.mxu0 0.0
    %2067 = vmatprep.subr.mxu0 0.0
    %2068 = vmatpush1.msra.mxu0 0.0
    %2069 = vmatprep.subr.mxu0 0.0
    %2070 = vmatpush1.msra.mxu0 0.0
    %2071 = vmatprep.subr.mxu0 0.0
    %2072 = vmatpush1.msra.mxu0 0.0
    %2073 = vmatprep.subr.mxu0 0.0
    %2074 = vmatpush1.msra.mxu0 %v91
    %2075 = vmatprep.subr.mxu0 0.0
    %2076 = vmatpush2.msra.mxu0 0.0
    %2077 = vmatprep.subr.mxu0 0.0
    %2078 = vmatpush2.msra.mxu0 0.0
    %2079 = vmatprep.subr.mxu0 0.0
    %2080 = vmatpush2.msra.mxu0 0.0
    %2081 = vmatprep.subr.mxu0 0.0
    %2082 = vmatpush2.msra.mxu0 0.0
    %2083 = vmatprep.subr.mxu0 0.0
    %2084 = vmatpush2.msra.mxu0 0.0
    %2085 = vmatprep.subr.mxu0 0.0
    %2086 = vmatpush2.msra.mxu0 0.0
    %2087 = vmatprep.subr.mxu0 0.0
    %2088 = vmatpush2.msra.mxu0 0.0
    %2089 = vmatprep.subr.mxu0 0.0
    %2090 = vmatpush2.msra.mxu0 0.0
    %2091 = vmatprep.subr.mxu0 0.0
    %2092 = vmatpush2.msra.mxu0 0.0
    %2093 = vmatprep.subr.mxu0 0.0
    %2094 = vmatpush2.msra.mxu0 0.0
    %2095 = vmatprep.subr.mxu0 0.0
    %2096 = vmatpush2.msra.mxu0 0.0
    %2097 = vmatprep.subr.mxu0 0.0
    %2098 = vmatpush2.msra.mxu0 0.0
    %2099 = vmatprep.subr.mxu0 0.0
    %2100 = vmatpush2.msra.mxu0 0.0
    %2101 = vmatprep.subr.mxu0 0.0
    %2102 = vmatpush2.msra.mxu0 0.0
    %2103 = vmatprep.subr.mxu0 0.0
    %2104 = vmatpush2.msra.mxu0 0.0
    %2105 = vmatprep.subr.mxu0 0.0
    %2106 = vmatpush2.msra.mxu0 0.0
    %2107 = vmatprep.mubr.f32.mxu0 0.0
    %2108 = vmatmul.mubr.f32.gmra.mxu0 %v2038
    %v2109 = vpop.f32.mrf.mxu0
    %v2110 = vadd.f32 0.0, %v2109
    %v2111 = vpop.f32.mrf.mxu0
    %2112 = vmatprep.mubr.f32.mxu0 0.0
    %2113 = vmatmul.mubr.f32.gmra.mxu0 %v2041
    %v2114 = vpop.f32.mrf.mxu0
    %v2115 = vadd.f32 0.0, %v2114
    %v2116 = vpop.f32.mrf.mxu0
    %2117 = vdwg.mxu0
    %v2119 = vsel %vm510, %v1072, 0
    %v2122 = vsel %vm510, %v1876, 0
    %2124 = vmatprep.subr.mxu0 0.0
    %2125 = vmatpush1.msra.mxu0 0.0
    %2126 = vmatprep.subr.mxu0 0.0
    %2127 = vmatpush1.msra.mxu0 0.0
    %2128 = vmatprep.subr.mxu0 0.0
    %2129 = vmatpush1.msra.mxu0 0.0
    %2130 = vmatprep.subr.mxu0 0.0
    %2131 = vmatpush1.msra.mxu0 0.0
    %2132 = vmatprep.subr.mxu0 0.0
    %2133 = vmatpush1.msra.mxu0 0.0
    %2134 = vmatprep.subr.mxu0 0.0
    %2135 = vmatpush1.msra.mxu0 0.0
    %2136 = vmatprep.subr.mxu0 0.0
    %2137 = vmatpush1.msra.mxu0 0.0
    %2138 = vmatprep.subr.mxu0 0.0
    %2139 = vmatpush1.msra.mxu0 0.0
    %2140 = vmatprep.subr.mxu0 0.0
    %2141 = vmatpush1.msra.mxu0 0.0
    %2142 = vmatprep.subr.mxu0 0.0
    %2143 = vmatpush1.msra.mxu0 0.0
    %2144 = vmatprep.subr.mxu0 0.0
    %2145 = vmatpush1.msra.mxu0 0.0
    %2146 = vmatprep.subr.mxu0 0.0
    %2147 = vmatpush1.msra.mxu0 0.0
    %2148 = vmatprep.subr.mxu0 0.0
    %2149 = vmatpush1.msra.mxu0 0.0
    %2150 = vmatprep.subr.mxu0 0.0
    %2151 = vmatpush1.msra.mxu0 0.0
    %2152 = vmatprep.subr.mxu0 0.0
    %2153 = vmatpush1.msra.mxu0 0.0
    %2154 = vmatprep.subr.mxu0 0.0
    %2155 = vmatpush1.msra.mxu0 %v92
    %2156 = vmatprep.subr.mxu0 0.0
    %2157 = vmatpush2.msra.mxu0 0.0
    %2158 = vmatprep.subr.mxu0 0.0
    %2159 = vmatpush2.msra.mxu0 0.0
    %2160 = vmatprep.subr.mxu0 0.0
    %2161 = vmatpush2.msra.mxu0 0.0
    %2162 = vmatprep.subr.mxu0 0.0
    %2163 = vmatpush2.msra.mxu0 0.0
    %2164 = vmatprep.subr.mxu0 0.0
    %2165 = vmatpush2.msra.mxu0 0.0
    %2166 = vmatprep.subr.mxu0 0.0
    %2167 = vmatpush2.msra.mxu0 0.0
    %2168 = vmatprep.subr.mxu0 0.0
    %2169 = vmatpush2.msra.mxu0 0.0
    %2170 = vmatprep.subr.mxu0 0.0
    %2171 = vmatpush2.msra.mxu0 0.0
    %2172 = vmatprep.subr.mxu0 0.0
    %2173 = vmatpush2.msra.mxu0 0.0
    %2174 = vmatprep.subr.mxu0 0.0
    %2175 = vmatpush2.msra.mxu0 0.0
    %2176 = vmatprep.subr.mxu0 0.0
    %2177 = vmatpush2.msra.mxu0 0.0
    %2178 = vmatprep.subr.mxu0 0.0
    %2179 = vmatpush2.msra.mxu0 0.0
    %2180 = vmatprep.subr.mxu0 0.0
    %2181 = vmatpush2.msra.mxu0 0.0
    %2182 = vmatprep.subr.mxu0 0.0
    %2183 = vmatpush2.msra.mxu0 0.0
    %2184 = vmatprep.subr.mxu0 0.0
    %2185 = vmatpush2.msra.mxu0 0.0
    %2186 = vmatprep.subr.mxu0 0.0
    %2187 = vmatpush2.msra.mxu0 0.0
    %2188 = vmatprep.mubr.f32.mxu0 0.0
    %2189 = vmatmul.mubr.f32.gmra.mxu0 %v2119
    %v2190 = vpop.f32.mrf.mxu0
    %v2191 = vadd.f32 0.0, %v2190
    %v2192 = vpop.f32.mrf.mxu0
    %2193 = vmatprep.mubr.f32.mxu0 0.0
    %2194 = vmatmul.mubr.f32.gmra.mxu0 %v2122
    %v2195 = vpop.f32.mrf.mxu0
    %v2196 = vadd.f32 0.0, %v2195
    %v2197 = vpop.f32.mrf.mxu0
    %2198 = vdwg.mxu0
    %v2200 = vsel %vm510, %v1148, 0
    %v2203 = vsel %vm510, %v1953, 0
    %2205 = vmatprep.subr.mxu0 0.0
    %2206 = vmatpush1.msra.mxu0 0.0
    %2207 = vmatprep.subr.mxu0 0.0
    %2208 = vmatpush1.msra.mxu0 0.0
    %2209 = vmatprep.subr.mxu0 0.0
    %2210 = vmatpush1.msra.mxu0 0.0
    %2211 = vmatprep.subr.mxu0 0.0
    %2212 = vmatpush1.msra.mxu0 0.0
    %2213 = vmatprep.subr.mxu0 0.0
    %2214 = vmatpush1.msra.mxu0 0.0
    %2215 = vmatprep.subr.mxu0 0.0
    %2216 = vmatpush1.msra.mxu0 0.0
    %2217 = vmatprep.subr.mxu0 0.0
    %2218 = vmatpush1.msra.mxu0 0.0
    %2219 = vmatprep.subr.mxu0 0.0
    %2220 = vmatpush1.msra.mxu0 0.0
    %2221 = vmatprep.subr.mxu0 0.0
    %2222 = vmatpush1.msra.mxu0 0.0
    %2223 = vmatprep.subr.mxu0 0.0
    %2224 = vmatpush1.msra.mxu0 0.0
    %2225 = vmatprep.subr.mxu0 0.0
    %2226 = vmatpush1.msra.mxu0 0.0
    %2227 = vmatprep.subr.mxu0 0.0
    %2228 = vmatpush1.msra.mxu0 0.0
    %2229 = vmatprep.subr.mxu0 0.0
    %2230 = vmatpush1.msra.mxu0 0.0
    %2231 = vmatprep.subr.mxu0 0.0
    %2232 = vmatpush1.msra.mxu0 0.0
    %2233 = vmatprep.subr.mxu0 0.0
    %2234 = vmatpush1.msra.mxu0 0.0
    %2235 = vmatprep.subr.mxu0 0.0
    %2236 = vmatpush1.msra.mxu0 %v93
    %2237 = vmatprep.subr.mxu0 0.0
    %2238 = vmatpush2.msra.mxu0 0.0
    %2239 = vmatprep.subr.mxu0 0.0
    %2240 = vmatpush2.msra.mxu0 0.0
    %2241 = vmatprep.subr.mxu0 0.0
    %2242 = vmatpush2.msra.mxu0 0.0
    %2243 = vmatprep.subr.mxu0 0.0
    %2244 = vmatpush2.msra.mxu0 0.0
    %2245 = vmatprep.subr.mxu0 0.0
    %2246 = vmatpush2.msra.mxu0 0.0
    %2247 = vmatprep.subr.mxu0 0.0
    %2248 = vmatpush2.msra.mxu0 0.0
    %2249 = vmatprep.subr.mxu0 0.0
    %2250 = vmatpush2.msra.mxu0 0.0
    %2251 = vmatprep.subr.mxu0 0.0
    %2252 = vmatpush2.msra.mxu0 0.0
    %2253 = vmatprep.subr.mxu0 0.0
    %2254 = vmatpush2.msra.mxu0 0.0
    %2255 = vmatprep.subr.mxu0 0.0
    %2256 = vmatpush2.msra.mxu0 0.0
    %2257 = vmatprep.subr.mxu0 0.0
    %2258 = vmatpush2.msra.mxu0 0.0
    %2259 = vmatprep.subr.mxu0 0.0
    %2260 = vmatpush2.msra.mxu0 0.0
    %2261 = vmatprep.subr.mxu0 0.0
    %2262 = vmatpush2.msra.mxu0 0.0
    %2263 = vmatprep.subr.mxu0 0.0
    %2264 = vmatpush2.msra.mxu0 0.0
    %2265 = vmatprep.subr.mxu0 0.0
    %2266 = vmatpush2.msra.mxu0 0.0
    %2267 = vmatprep.subr.mxu0 0.0
    %2268 = vmatpush2.msra.mxu0 0.0
    %2269 = vmatprep.mubr.f32.mxu0 0.0
    %2270 = vmatmul.mubr.f32.gmra.mxu0 %v2200
    %v2271 = vpop.f32.mrf.mxu0
    %v2272 = vadd.f32 0.0, %v2271
    %v2273 = vpop.f32.mrf.mxu0
    %2274 = vmatprep.mubr.f32.mxu0 0.0
    %2275 = vmatmul.mubr.f32.gmra.mxu0 %v2203
    %v2276 = vpop.f32.mrf.mxu0
    %v2277 = vadd.f32 0.0, %v2276
    %v2278 = vpop.f32.mrf.mxu0
    %2279 = vdwg.mxu0
    %v2280 = vsel %vm100, %v2029, 0.0
    %v2281 = vsel %vm100, %v2110, 0.0
    %v2282 = vadd.f32 %v2280, %v2281
    %v2283 = vsel %vm100, %v2191, 0.0
    %v2284 = vadd.f32 %v2282, %v2283
    %v2285 = vsel %vm100, %v2272, 0.0
    %v2286 = vadd.f32 %v2284, %v2285
    %v2287 = vsel %vm100, %v2034, 0.0
    %v2288 = vsel %vm100, %v2115, 0.0
    %v2289 = vadd.f32 %v2287, %v2288
    %v2290 = vsel %vm100, %v2196, 0.0
    %v2291 = vadd.f32 %v2289, %v2290
    %v2292 = vsel %vm100, %v2277, 0.0
    %v2293 = vadd.f32 %v2291, %v2292
    %v2294 = vlaneseq
    %v2295 = vshrl.u32 %v2294, 7
    %v2296 = vsub.s32 6, %v2295
    %v2297 = vrot.slane %v98, %v2296
    %v2298 = vadd.f32 %v2286, %v2297
    %v2299 = vadd.f32 %v2293, %v2297
    %v2300 = vadd.f32 %v2298, %v36
    %v2301 = vadd.f32 %v2299, %v37
    %v2302 = vsel %vm100, %v2300, 0.0
    %2303 = vadd.xlane.f32.xlu0 %v2302
    %v2304 = vpop.xlane.xlu0 %2303
    %v2305 = vsel %vm100, %v2301, 0.0
    %2306 = vadd.xlane.f32.xlu0 %v2305
    %v2307 = vpop.xlane.xlu0 %2306
    %v2308 = vmul.f32 %v2304, %v107
    %v2309 = vmul.f32 %v2307, %v107
    %v2310 = vsub.f32 %v2300, %v2308
    %v2311 = vsub.f32 %v2301, %v2309
    %v2312 = vmul.f32 %v2310, %v2310
    %v2313 = vmul.f32 %v2311, %v2311
    %v2314 = vsel %vm100, %v2312, 0.0
    %2315 = vadd.xlane.f32.xlu0 %v2314
    %v2316 = vpop.xlane.xlu0 %2315
    %v2317 = vsel %vm100, %v2313, 0.0
    %2318 = vadd.xlane.f32.xlu0 %v2317
    %v2319 = vpop.xlane.xlu0 %2318
    %v2320 = vmul.f32 %v2316, %v107
    %v2321 = vmul.f32 %v2319, %v107
    %v2322 = vlaneseq
    %v2323 = vshrl.u32 %v2322, 7
    %v2324 = vsub.s32 2, %v2323
    %v2325 = vrot.slane %v98, %v2324
    %v2326 = vmul.f32 %v2325, %v2310
    %v2327 = vmul.f32 %v2325, %v2311
    %v2328 = vadd.f32 %v2320, 1e-06
    %v2329 = vadd.f32 %v2321, 1e-06
    %v2330 = vrsqrt.pop %v2328
    %v2331 = vmul.f32 %v2328, %v2330
    %vm2332 = vcmp.eq.f32.partialorder %v2328, inf
    %v2333 = vsel %vm2332, %v2328, %v2331
    %vm2334 = vcmp.eq.f32.partialorder %v2328, 0.0
    %v2335 = vand.u32 %v2328, 2147483648
    %v2336 = vsel %vm2334, %v2335, %v2333
    %v2337 = vrsqrt.pop %v2329
    %v2338 = vmul.f32 %v2329, %v2337
    %vm2339 = vcmp.eq.f32.partialorder %v2329, inf
    %v2340 = vsel %vm2339, %v2329, %v2338
    %vm2341 = vcmp.eq.f32.partialorder %v2329, 0.0
    %v2342 = vand.u32 %v2329, 2147483648
    %v2343 = vsel %vm2341, %v2342, %v2340
    %v2344 = vrcp.pop %v2336
    %v2345 = vmul.f32 %v2326, %v2344
    %v2346 = vrcp.pop %v2343
    %v2347 = vmul.f32 %v2327, %v2346
    %v2348 = vlaneseq
    %v2349 = vshrl.u32 %v2348, 7
    %v2350 = vsub.s32 3, %v2349
    %v2351 = vrot.slane %v98, %v2350
    %v2352 = vadd.f32 %v2345, %v2351
    %v2353 = vadd.f32 %v2347, %v2351
    %2355 = vset.pattern.permute.xlu0 0
    %2356 = vperm.xlu0 %2355, %v78
    %v2357 = vpop.permute.xlu0 %2356
    %2360 = vset.pattern.permute.xlu0 0
    %2361 = vperm.xlu0 %2360, %v79
    %v2362 = vpop.permute.xlu0 %2361
    %2365 = vset.pattern.permute.xlu0 0
    %2366 = vperm.xlu0 %2365, %v80
    %v2367 = vpop.permute.xlu0 %2366
    %2370 = vset.pattern.permute.xlu0 0
    %2371 = vperm.xlu0 %2370, %v81
    %v2372 = vpop.permute.xlu0 %2371
    %v2375 = vsel %vm100, %v54, 0
    %v2378 = vsel %vm100, %v55, 0
    %v2381 = vsel %vm100, %v56, 0
    %v2384 = vsel %vm100, %v57, 0
    %v2387 = vsel %vm100, %v2352, 0
    %v2390 = vsel %vm100, %v2353, 0
    %2392 = vmatprep.subr.mxu0 0.0
    %2393 = vmatpush1.xpose.msra.mxu0 0.0
    %2394 = vmatprep.subr.mxu0 0.0
    %2395 = vmatpush1.xpose.msra.mxu0 0.0
    %2396 = vmatprep.subr.mxu0 0.0
    %2397 = vmatpush1.xpose.msra.mxu0 0.0
    %2398 = vmatprep.subr.mxu0 0.0
    %2399 = vmatpush1.xpose.msra.mxu0 0.0
    %2400 = vmatprep.subr.mxu0 0.0
    %2401 = vmatpush1.xpose.msra.mxu0 0.0
    %2402 = vmatprep.subr.mxu0 0.0
    %2403 = vmatpush1.xpose.msra.mxu0 0.0
    %2404 = vmatprep.subr.mxu0 0.0
    %2405 = vmatpush1.xpose.msra.mxu0 0.0
    %2406 = vmatprep.subr.mxu0 0.0
    %2407 = vmatpush1.xpose.msra.mxu0 0.0
    %2408 = vmatprep.subr.mxu0 0.0
    %2409 = vmatpush1.xpose.msra.mxu0 0.0
    %2410 = vmatprep.subr.mxu0 0.0
    %2411 = vmatpush1.xpose.msra.mxu0 0.0
    %2412 = vmatprep.subr.mxu0 0.0
    %2413 = vmatpush1.xpose.msra.mxu0 0.0
    %2414 = vmatprep.subr.mxu0 0.0
    %2415 = vmatpush1.xpose.msra.mxu0 0.0
    %2416 = vmatprep.subr.mxu0 0.0
    %2417 = vmatpush1.xpose.msra.mxu0 0.0
    %2418 = vmatprep.subr.mxu0 0.0
    %2419 = vmatpush1.xpose.msra.mxu0 0.0
    %2420 = vmatprep.subr.mxu0 0.0
    %2421 = vmatpush1.xpose.msra.mxu0 %v2390
    %2422 = vmatprep.subr.mxu0 0.0
    %2423 = vmatpush1.xpose.msra.mxu0 %v2387
    %2424 = vmatprep.subr.mxu0 0.0
    %2425 = vmatpush2.xpose.msra.mxu0 0.0
    %2426 = vmatprep.subr.mxu0 0.0
    %2427 = vmatpush2.xpose.msra.mxu0 0.0
    %2428 = vmatprep.subr.mxu0 0.0
    %2429 = vmatpush2.xpose.msra.mxu0 0.0
    %2430 = vmatprep.subr.mxu0 0.0
    %2431 = vmatpush2.xpose.msra.mxu0 0.0
    %2432 = vmatprep.subr.mxu0 0.0
    %2433 = vmatpush2.xpose.msra.mxu0 0.0
    %2434 = vmatprep.subr.mxu0 0.0
    %2435 = vmatpush2.xpose.msra.mxu0 0.0
    %2436 = vmatprep.subr.mxu0 0.0
    %2437 = vmatpush2.xpose.msra.mxu0 0.0
    %2438 = vmatprep.subr.mxu0 0.0
    %2439 = vmatpush2.xpose.msra.mxu0 0.0
    %2440 = vmatprep.subr.mxu0 0.0
    %2441 = vmatpush2.xpose.msra.mxu0 0.0
    %2442 = vmatprep.subr.mxu0 0.0
    %2443 = vmatpush2.xpose.msra.mxu0 0.0
    %2444 = vmatprep.subr.mxu0 0.0
    %2445 = vmatpush2.xpose.msra.mxu0 0.0
    %2446 = vmatprep.subr.mxu0 0.0
    %2447 = vmatpush2.xpose.msra.mxu0 0.0
    %2448 = vmatprep.subr.mxu0 0.0
    %2449 = vmatpush2.xpose.msra.mxu0 0.0
    %2450 = vmatprep.subr.mxu0 0.0
    %2451 = vmatpush2.xpose.msra.mxu0 0.0
    %2452 = vmatprep.subr.mxu0 0.0
    %2453 = vmatpush2.xpose.msra.mxu0 0.0
    %2454 = vmatprep.subr.mxu0 0.0
    %2455 = vmatpush2.xpose.msra.mxu0 0.0
    %2456 = vmatprep.mubr.f32.mxu0 0.0
    %2457 = vmatmul.mubr.f32.gmra.mxu0 %v2375
    %v2458 = vpop.f32.mrf.mxu0
    %v2459 = vadd.f32 %v2357, %v2458
    %v2460 = vpop.f32.mrf.mxu0
    %2461 = vmatprep.mubr.f32.mxu0 0.0
    %2462 = vmatmul.mubr.f32.gmra.mxu0 %v2378
    %v2463 = vpop.f32.mrf.mxu0
    %v2464 = vadd.f32 %v2362, %v2463
    %v2465 = vpop.f32.mrf.mxu0
    %2466 = vmatprep.mubr.f32.mxu0 0.0
    %2467 = vmatmul.mubr.f32.gmra.mxu0 %v2381
    %v2468 = vpop.f32.mrf.mxu0
    %v2469 = vadd.f32 %v2367, %v2468
    %v2470 = vpop.f32.mrf.mxu0
    %2471 = vmatprep.mubr.f32.mxu0 0.0
    %2472 = vmatmul.mubr.f32.gmra.mxu0 %v2384
    %v2473 = vpop.f32.mrf.mxu0
    %v2474 = vadd.f32 %v2372, %v2473
    %v2475 = vpop.f32.mrf.mxu0
    %2476 = vdwg.mxu0
    %2478 = vset.pattern.permute.xlu0 0
    %2479 = vperm.xlu0 %2478, %v82
    %v2480 = vpop.permute.xlu0 %2479
    %2483 = vset.pattern.permute.xlu0 0
    %2484 = vperm.xlu0 %2483, %v83
    %v2485 = vpop.permute.xlu0 %2484
    %2488 = vset.pattern.permute.xlu0 0
    %2489 = vperm.xlu0 %2488, %v84
    %v2490 = vpop.permute.xlu0 %2489
    %2493 = vset.pattern.permute.xlu0 0
    %2494 = vperm.xlu0 %2493, %v85
    %v2495 = vpop.permute.xlu0 %2494
    %2498 = vset.pattern.permute.xlu0 0
    %2499 = vperm.xlu0 %2498, %v86
    %v2500 = vpop.permute.xlu0 %2499
    %2503 = vset.pattern.permute.xlu0 0
    %2504 = vperm.xlu0 %2503, %v87
    %v2505 = vpop.permute.xlu0 %2504
    %2508 = vset.pattern.permute.xlu0 0
    %2509 = vperm.xlu0 %2508, %v88
    %v2510 = vpop.permute.xlu0 %2509
    %2513 = vset.pattern.permute.xlu0 0
    %2514 = vperm.xlu0 %2513, %v89
    %v2515 = vpop.permute.xlu0 %2514
    %v2518 = vsel %vm100, %v58, 0
    %v2521 = vsel %vm100, %v59, 0
    %v2524 = vsel %vm100, %v60, 0
    %v2527 = vsel %vm100, %v61, 0
    %v2530 = vsel %vm100, %v62, 0
    %v2533 = vsel %vm100, %v63, 0
    %v2536 = vsel %vm100, %v64, 0
    %v2539 = vsel %vm100, %v65, 0
    %v2542 = vsel %vm100, %v38, 0
    %v2545 = vsel %vm100, %v39, 0
    %v2548 = vsel %vm100, %v40, 0
    %v2551 = vsel %vm100, %v41, 0
    %2553 = vmatprep.subr.mxu0 0.0
    %2554 = vmatpush1.xpose.msra.mxu0 0.0
    %2555 = vmatprep.subr.mxu0 0.0
    %2556 = vmatpush1.xpose.msra.mxu0 0.0
    %2557 = vmatprep.subr.mxu0 0.0
    %2558 = vmatpush1.xpose.msra.mxu0 0.0
    %2559 = vmatprep.subr.mxu0 0.0
    %2560 = vmatpush1.xpose.msra.mxu0 0.0
    %2561 = vmatprep.subr.mxu0 0.0
    %2562 = vmatpush1.xpose.msra.mxu0 0.0
    %2563 = vmatprep.subr.mxu0 0.0
    %2564 = vmatpush1.xpose.msra.mxu0 0.0
    %2565 = vmatprep.subr.mxu0 0.0
    %2566 = vmatpush1.xpose.msra.mxu0 0.0
    %2567 = vmatprep.subr.mxu0 0.0
    %2568 = vmatpush1.xpose.msra.mxu0 0.0
    %2569 = vmatprep.subr.mxu0 0.0
    %2570 = vmatpush1.xpose.msra.mxu0 0.0
    %2571 = vmatprep.subr.mxu0 0.0
    %2572 = vmatpush1.xpose.msra.mxu0 0.0
    %2573 = vmatprep.subr.mxu0 0.0
    %2574 = vmatpush1.xpose.msra.mxu0 0.0
    %2575 = vmatprep.subr.mxu0 0.0
    %2576 = vmatpush1.xpose.msra.mxu0 0.0
    %2577 = vmatprep.subr.mxu0 0.0
    %2578 = vmatpush1.xpose.msra.mxu0 %v2551
    %2579 = vmatprep.subr.mxu0 0.0
    %2580 = vmatpush1.xpose.msra.mxu0 %v2548
    %2581 = vmatprep.subr.mxu0 0.0
    %2582 = vmatpush1.xpose.msra.mxu0 %v2545
    %2583 = vmatprep.subr.mxu0 0.0
    %2584 = vmatpush1.xpose.msra.mxu0 %v2542
    %2585 = vmatprep.subr.mxu0 0.0
    %2586 = vmatpush2.xpose.msra.mxu0 0.0
    %2587 = vmatprep.subr.mxu0 0.0
    %2588 = vmatpush2.xpose.msra.mxu0 0.0
    %2589 = vmatprep.subr.mxu0 0.0
    %2590 = vmatpush2.xpose.msra.mxu0 0.0
    %2591 = vmatprep.subr.mxu0 0.0
    %2592 = vmatpush2.xpose.msra.mxu0 0.0
    %2593 = vmatprep.subr.mxu0 0.0
    %2594 = vmatpush2.xpose.msra.mxu0 0.0
    %2595 = vmatprep.subr.mxu0 0.0
    %2596 = vmatpush2.xpose.msra.mxu0 0.0
    %2597 = vmatprep.subr.mxu0 0.0
    %2598 = vmatpush2.xpose.msra.mxu0 0.0
    %2599 = vmatprep.subr.mxu0 0.0
    %2600 = vmatpush2.xpose.msra.mxu0 0.0
    %2601 = vmatprep.subr.mxu0 0.0
    %2602 = vmatpush2.xpose.msra.mxu0 0.0
    %2603 = vmatprep.subr.mxu0 0.0
    %2604 = vmatpush2.xpose.msra.mxu0 0.0
    %2605 = vmatprep.subr.mxu0 0.0
    %2606 = vmatpush2.xpose.msra.mxu0 0.0
    %2607 = vmatprep.subr.mxu0 0.0
    %2608 = vmatpush2.xpose.msra.mxu0 0.0
    %2609 = vmatprep.subr.mxu0 0.0
    %2610 = vmatpush2.xpose.msra.mxu0 0.0
    %2611 = vmatprep.subr.mxu0 0.0
    %2612 = vmatpush2.xpose.msra.mxu0 0.0
    %2613 = vmatprep.subr.mxu0 0.0
    %2614 = vmatpush2.xpose.msra.mxu0 0.0
    %2615 = vmatprep.subr.mxu0 0.0
    %2616 = vmatpush2.xpose.msra.mxu0 0.0
    %2617 = vmatprep.mubr.f32.mxu0 0.0
    %2618 = vmatmul.mubr.f32.gmra.mxu0 %v2518
    %v2619 = vpop.f32.mrf.mxu0
    %v2620 = vadd.f32 %v2480, %v2619
    %v2621 = vpop.f32.mrf.mxu0
    %2622 = vmatprep.mubr.f32.mxu0 0.0
    %2623 = vmatmul.mubr.f32.gmra.mxu0 %v2521
    %v2624 = vpop.f32.mrf.mxu0
    %v2625 = vadd.f32 %v2485, %v2624
    %v2626 = vpop.f32.mrf.mxu0
    %2627 = vmatprep.mubr.f32.mxu0 0.0
    %2628 = vmatmul.mubr.f32.gmra.mxu0 %v2524
    %v2629 = vpop.f32.mrf.mxu0
    %v2630 = vadd.f32 %v2490, %v2629
    %v2631 = vpop.f32.mrf.mxu0
    %2632 = vmatprep.mubr.f32.mxu0 0.0
    %2633 = vmatmul.mubr.f32.gmra.mxu0 %v2527
    %v2634 = vpop.f32.mrf.mxu0
    %v2635 = vadd.f32 %v2495, %v2634
    %v2636 = vpop.f32.mrf.mxu0
    %2637 = vmatprep.mubr.f32.mxu0 0.0
    %2638 = vmatmul.mubr.f32.gmra.mxu0 %v2530
    %v2639 = vpop.f32.mrf.mxu0
    %v2640 = vadd.f32 %v2500, %v2639
    %v2641 = vpop.f32.mrf.mxu0
    %2642 = vmatprep.mubr.f32.mxu0 0.0
    %2643 = vmatmul.mubr.f32.gmra.mxu0 %v2533
    %v2644 = vpop.f32.mrf.mxu0
    %v2645 = vadd.f32 %v2505, %v2644
    %v2646 = vpop.f32.mrf.mxu0
    %2647 = vmatprep.mubr.f32.mxu0 0.0
    %2648 = vmatmul.mubr.f32.gmra.mxu0 %v2536
    %v2649 = vpop.f32.mrf.mxu0
    %v2650 = vadd.f32 %v2510, %v2649
    %v2651 = vpop.f32.mrf.mxu0
    %2652 = vmatprep.mubr.f32.mxu0 0.0
    %2653 = vmatmul.mubr.f32.gmra.mxu0 %v2539
    %v2654 = vpop.f32.mrf.mxu0
    %v2655 = vadd.f32 %v2515, %v2654
    %v2656 = vpop.f32.mrf.mxu0
    %2657 = vdwg.mxu0
    %v2658 = vld [vmem:[%s3] sm:$0x1]
    %2659 = vxpose.xlu0.b32.start [1/16] %v2459, 128
    %2660 = vxpose.xlu0.b32.cont [2/16] 0.0, 128
    %2661 = vxpose.xlu0.b32.cont [3/16] 0.0, 128
    %2662 = vxpose.xlu0.b32.cont [4/16] 0.0, 128
    %2663 = vxpose.xlu0.b32.cont [5/16] 0.0, 128
    %2664 = vxpose.xlu0.b32.cont [6/16] 0.0, 128
    %2665 = vxpose.xlu0.b32.cont [7/16] 0.0, 128
    %2666 = vxpose.xlu0.b32.cont [8/16] 0.0, 128
    %2667 = vxpose.xlu0.b32.cont [9/16] 0.0, 128
    %2668 = vxpose.xlu0.b32.cont [10/16] 0.0, 128
    %2669 = vxpose.xlu0.b32.cont [11/16] 0.0, 128
    %2670 = vxpose.xlu0.b32.cont [12/16] 0.0, 128
    %2671 = vxpose.xlu0.b32.cont [13/16] 0.0, 128
    %2672 = vxpose.xlu0.b32.cont [14/16] 0.0, 128
    %2673 = vxpose.xlu0.b32.cont [15/16] 0.0, 128
    %2674 = vxpose.xlu0.b32.end [16/16] 0.0, 128
    %v2675 = vpop.trf.xlu0
    %v2676 = vpop.trf.xlu0
    %v2677 = vpop.trf.xlu0
    %v2678 = vpop.trf.xlu0
    %v2679 = vpop.trf.xlu0
    %v2680 = vpop.trf.xlu0
    %v2681 = vpop.trf.xlu0
    %v2682 = vpop.trf.xlu0
    %v2683 = vpop.trf.xlu0
    %v2684 = vpop.trf.xlu0
    %v2685 = vpop.trf.xlu0
    %v2686 = vpop.trf.xlu0
    %v2687 = vpop.trf.xlu0
    %v2688 = vpop.trf.xlu0
    %v2689 = vpop.trf.xlu0
    %v2690 = vpop.trf.xlu0
    %2691 = vxpose.xlu0.b32.start [1/16] %v2464, 128
    %2692 = vxpose.xlu0.b32.cont [2/16] 0.0, 128
    %2693 = vxpose.xlu0.b32.cont [3/16] 0.0, 128
    %2694 = vxpose.xlu0.b32.cont [4/16] 0.0, 128
    %2695 = vxpose.xlu0.b32.cont [5/16] 0.0, 128
    %2696 = vxpose.xlu0.b32.cont [6/16] 0.0, 128
    %2697 = vxpose.xlu0.b32.cont [7/16] 0.0, 128
    %2698 = vxpose.xlu0.b32.cont [8/16] 0.0, 128
    %2699 = vxpose.xlu0.b32.cont [9/16] 0.0, 128
    %2700 = vxpose.xlu0.b32.cont [10/16] 0.0, 128
    %2701 = vxpose.xlu0.b32.cont [11/16] 0.0, 128
    %2702 = vxpose.xlu0.b32.cont [12/16] 0.0, 128
    %2703 = vxpose.xlu0.b32.cont [13/16] 0.0, 128
    %2704 = vxpose.xlu0.b32.cont [14/16] 0.0, 128
    %2705 = vxpose.xlu0.b32.cont [15/16] 0.0, 128
    %2706 = vxpose.xlu0.b32.end [16/16] 0.0, 128
    %v2707 = vpop.trf.xlu0
    %v2708 = vpop.trf.xlu0
    %v2709 = vpop.trf.xlu0
    %v2710 = vpop.trf.xlu0
    %v2711 = vpop.trf.xlu0
    %v2712 = vpop.trf.xlu0
    %v2713 = vpop.trf.xlu0
    %v2714 = vpop.trf.xlu0
    %v2715 = vpop.trf.xlu0
    %v2716 = vpop.trf.xlu0
    %v2717 = vpop.trf.xlu0
    %v2718 = vpop.trf.xlu0
    %v2719 = vpop.trf.xlu0
    %v2720 = vpop.trf.xlu0
    %v2721 = vpop.trf.xlu0
    %v2722 = vpop.trf.xlu0
    %2723 = vxpose.xlu0.b32.start [1/16] %v2469, 128
    %2724 = vxpose.xlu0.b32.cont [2/16] 0.0, 128
    %2725 = vxpose.xlu0.b32.cont [3/16] 0.0, 128
    %2726 = vxpose.xlu0.b32.cont [4/16] 0.0, 128
    %2727 = vxpose.xlu0.b32.cont [5/16] 0.0, 128
    %2728 = vxpose.xlu0.b32.cont [6/16] 0.0, 128
    %2729 = vxpose.xlu0.b32.cont [7/16] 0.0, 128
    %2730 = vxpose.xlu0.b32.cont [8/16] 0.0, 128
    %2731 = vxpose.xlu0.b32.cont [9/16] 0.0, 128
    %2732 = vxpose.xlu0.b32.cont [10/16] 0.0, 128
    %2733 = vxpose.xlu0.b32.cont [11/16] 0.0, 128
    %2734 = vxpose.xlu0.b32.cont [12/16] 0.0, 128
    %2735 = vxpose.xlu0.b32.cont [13/16] 0.0, 128
    %2736 = vxpose.xlu0.b32.cont [14/16] 0.0, 128
    %2737 = vxpose.xlu0.b32.cont [15/16] 0.0, 128
    %2738 = vxpose.xlu0.b32.end [16/16] 0.0, 128
    %v2739 = vpop.trf.xlu0
    %v2740 = vpop.trf.xlu0
    %v2741 = vpop.trf.xlu0
    %v2742 = vpop.trf.xlu0
    %v2743 = vpop.trf.xlu0
    %v2744 = vpop.trf.xlu0
    %v2745 = vpop.trf.xlu0
    %v2746 = vpop.trf.xlu0
    %v2747 = vpop.trf.xlu0
    %v2748 = vpop.trf.xlu0
    %v2749 = vpop.trf.xlu0
    %v2750 = vpop.trf.xlu0
    %v2751 = vpop.trf.xlu0
    %v2752 = vpop.trf.xlu0
    %v2753 = vpop.trf.xlu0
    %v2754 = vpop.trf.xlu0
    %2755 = vxpose.xlu0.b32.start [1/16] %v2474, 128
    %2756 = vxpose.xlu0.b32.cont [2/16] 0.0, 128
    %2757 = vxpose.xlu0.b32.cont [3/16] 0.0, 128
    %2758 = vxpose.xlu0.b32.cont [4/16] 0.0, 128
    %2759 = vxpose.xlu0.b32.cont [5/16] 0.0, 128
    %2760 = vxpose.xlu0.b32.cont [6/16] 0.0, 128
    %2761 = vxpose.xlu0.b32.cont [7/16] 0.0, 128
    %2762 = vxpose.xlu0.b32.cont [8/16] 0.0, 128
    %2763 = vxpose.xlu0.b32.cont [9/16] 0.0, 128
    %2764 = vxpose.xlu0.b32.cont [10/16] 0.0, 128
    %2765 = vxpose.xlu0.b32.cont [11/16] 0.0, 128
    %2766 = vxpose.xlu0.b32.cont [12/16] 0.0, 128
    %2767 = vxpose.xlu0.b32.cont [13/16] 0.0, 128
    %2768 = vxpose.xlu0.b32.cont [14/16] 0.0, 128
    %2769 = vxpose.xlu0.b32.cont [15/16] 0.0, 128
    %2770 = vxpose.xlu0.b32.end [16/16] 0.0, 128
    %v2771 = vpop.trf.xlu0
    %v2772 = vpop.trf.xlu0
    %v2773 = vpop.trf.xlu0
    %v2774 = vpop.trf.xlu0
    %v2775 = vpop.trf.xlu0
    %v2776 = vpop.trf.xlu0
    %v2777 = vpop.trf.xlu0
    %v2778 = vpop.trf.xlu0
    %v2779 = vpop.trf.xlu0
    %v2780 = vpop.trf.xlu0
    %v2781 = vpop.trf.xlu0
    %v2782 = vpop.trf.xlu0
    %v2783 = vpop.trf.xlu0
    %v2784 = vpop.trf.xlu0
    %v2785 = vpop.trf.xlu0
    %v2786 = vpop.trf.xlu0
    %v2787 = vlaneseq
    %v2788 = vshrl.u32 %v2787, 7
    %v2789 = vsub.s32 0, %v2788
    %v2790 = vrot.slane %v2658, %v2789
    %v2792 = vsel %vm510, %v2675, 0
    %2794 = vmatprep.subr.mxu0 0.0
    %2795 = vmatpush1.msra.mxu0 0.0
    %2796 = vmatprep.subr.mxu0 0.0
    %2797 = vmatpush1.msra.mxu0 0.0
    %2798 = vmatprep.subr.mxu0 0.0
    %2799 = vmatpush1.msra.mxu0 0.0
    %2800 = vmatprep.subr.mxu0 0.0
    %2801 = vmatpush1.msra.mxu0 0.0
    %2802 = vmatprep.subr.mxu0 0.0
    %2803 = vmatpush1.msra.mxu0 0.0
    %2804 = vmatprep.subr.mxu0 0.0
    %2805 = vmatpush1.msra.mxu0 0.0
    %2806 = vmatprep.subr.mxu0 0.0
    %2807 = vmatpush1.msra.mxu0 0.0
    %2808 = vmatprep.subr.mxu0 0.0
    %2809 = vmatpush1.msra.mxu0 0.0
    %2810 = vmatprep.subr.mxu0 0.0
    %2811 = vmatpush1.msra.mxu0 0.0
    %2812 = vmatprep.subr.mxu0 0.0
    %2813 = vmatpush1.msra.mxu0 0.0
    %2814 = vmatprep.subr.mxu0 0.0
    %2815 = vmatpush1.msra.mxu0 0.0
    %2816 = vmatprep.subr.mxu0 0.0
    %2817 = vmatpush1.msra.mxu0 0.0
    %2818 = vmatprep.subr.mxu0 0.0
    %2819 = vmatpush1.msra.mxu0 0.0
    %2820 = vmatprep.subr.mxu0 0.0
    %2821 = vmatpush1.msra.mxu0 0.0
    %2822 = vmatprep.subr.mxu0 0.0
    %2823 = vmatpush1.msra.mxu0 0.0
    %2824 = vmatprep.subr.mxu0 0.0
    %2825 = vmatpush1.msra.mxu0 %v2620
    %2826 = vmatprep.subr.mxu0 0.0
    %2827 = vmatpush2.msra.mxu0 0.0
    %2828 = vmatprep.subr.mxu0 0.0
    %2829 = vmatpush2.msra.mxu0 0.0
    %2830 = vmatprep.subr.mxu0 0.0
    %2831 = vmatpush2.msra.mxu0 0.0
    %2832 = vmatprep.subr.mxu0 0.0
    %2833 = vmatpush2.msra.mxu0 0.0
    %2834 = vmatprep.subr.mxu0 0.0
    %2835 = vmatpush2.msra.mxu0 0.0
    %2836 = vmatprep.subr.mxu0 0.0
    %2837 = vmatpush2.msra.mxu0 0.0
    %2838 = vmatprep.subr.mxu0 0.0
    %2839 = vmatpush2.msra.mxu0 0.0
    %2840 = vmatprep.subr.mxu0 0.0
    %2841 = vmatpush2.msra.mxu0 0.0
    %2842 = vmatprep.subr.mxu0 0.0
    %2843 = vmatpush2.msra.mxu0 0.0
    %2844 = vmatprep.subr.mxu0 0.0
    %2845 = vmatpush2.msra.mxu0 0.0
    %2846 = vmatprep.subr.mxu0 0.0
    %2847 = vmatpush2.msra.mxu0 0.0
    %2848 = vmatprep.subr.mxu0 0.0
    %2849 = vmatpush2.msra.mxu0 0.0
    %2850 = vmatprep.subr.mxu0 0.0
    %2851 = vmatpush2.msra.mxu0 0.0
    %2852 = vmatprep.subr.mxu0 0.0
    %2853 = vmatpush2.msra.mxu0 0.0
    %2854 = vmatprep.subr.mxu0 0.0
    %2855 = vmatpush2.msra.mxu0 0.0
    %2856 = vmatprep.subr.mxu0 0.0
    %2857 = vmatpush2.msra.mxu0 0.0
    %2858 = vmatprep.mubr.f32.mxu0 0.0
    %2859 = vmatmul.mubr.f32.gmra.mxu0 %v2792
    %v2860 = vpop.f32.mrf.mxu0
    %v2861 = vadd.f32 %v2790, %v2860
    %v2862 = vpop.f32.mrf.mxu0
    %2863 = vdwg.mxu0
    %v2865 = vsel %vm510, %v2707, 0
    %2867 = vmatprep.subr.mxu0 0.0
    %2868 = vmatpush1.msra.mxu0 0.0
    %2869 = vmatprep.subr.mxu0 0.0
    %2870 = vmatpush1.msra.mxu0 0.0
    %2871 = vmatprep.subr.mxu0 0.0
    %2872 = vmatpush1.msra.mxu0 0.0
    %2873 = vmatprep.subr.mxu0 0.0
    %2874 = vmatpush1.msra.mxu0 0.0
    %2875 = vmatprep.subr.mxu0 0.0
    %2876 = vmatpush1.msra.mxu0 0.0
    %2877 = vmatprep.subr.mxu0 0.0
    %2878 = vmatpush1.msra.mxu0 0.0
    %2879 = vmatprep.subr.mxu0 0.0
    %2880 = vmatpush1.msra.mxu0 0.0
    %2881 = vmatprep.subr.mxu0 0.0
    %2882 = vmatpush1.msra.mxu0 0.0
    %2883 = vmatprep.subr.mxu0 0.0
    %2884 = vmatpush1.msra.mxu0 0.0
    %2885 = vmatprep.subr.mxu0 0.0
    %2886 = vmatpush1.msra.mxu0 0.0
    %2887 = vmatprep.subr.mxu0 0.0
    %2888 = vmatpush1.msra.mxu0 0.0
    %2889 = vmatprep.subr.mxu0 0.0
    %2890 = vmatpush1.msra.mxu0 0.0
    %2891 = vmatprep.subr.mxu0 0.0
    %2892 = vmatpush1.msra.mxu0 0.0
    %2893 = vmatprep.subr.mxu0 0.0
    %2894 = vmatpush1.msra.mxu0 0.0
    %2895 = vmatprep.subr.mxu0 0.0
    %2896 = vmatpush1.msra.mxu0 0.0
    %2897 = vmatprep.subr.mxu0 0.0
    %2898 = vmatpush1.msra.mxu0 %v2625
    %2899 = vmatprep.subr.mxu0 0.0
    %2900 = vmatpush2.msra.mxu0 0.0
    %2901 = vmatprep.subr.mxu0 0.0
    %2902 = vmatpush2.msra.mxu0 0.0
    %2903 = vmatprep.subr.mxu0 0.0
    %2904 = vmatpush2.msra.mxu0 0.0
    %2905 = vmatprep.subr.mxu0 0.0
    %2906 = vmatpush2.msra.mxu0 0.0
    %2907 = vmatprep.subr.mxu0 0.0
    %2908 = vmatpush2.msra.mxu0 0.0
    %2909 = vmatprep.subr.mxu0 0.0
    %2910 = vmatpush2.msra.mxu0 0.0
    %2911 = vmatprep.subr.mxu0 0.0
    %2912 = vmatpush2.msra.mxu0 0.0
    %2913 = vmatprep.subr.mxu0 0.0
    %2914 = vmatpush2.msra.mxu0 0.0
    %2915 = vmatprep.subr.mxu0 0.0
    %2916 = vmatpush2.msra.mxu0 0.0
    %2917 = vmatprep.subr.mxu0 0.0
    %2918 = vmatpush2.msra.mxu0 0.0
    %2919 = vmatprep.subr.mxu0 0.0
    %2920 = vmatpush2.msra.mxu0 0.0
    %2921 = vmatprep.subr.mxu0 0.0
    %2922 = vmatpush2.msra.mxu0 0.0
    %2923 = vmatprep.subr.mxu0 0.0
    %2924 = vmatpush2.msra.mxu0 0.0
    %2925 = vmatprep.subr.mxu0 0.0
    %2926 = vmatpush2.msra.mxu0 0.0
    %2927 = vmatprep.subr.mxu0 0.0
    %2928 = vmatpush2.msra.mxu0 0.0
    %2929 = vmatprep.subr.mxu0 0.0
    %2930 = vmatpush2.msra.mxu0 0.0
    %2931 = vmatprep.mubr.f32.mxu0 0.0
    %2932 = vmatmul.mubr.f32.gmra.mxu0 %v2865
    %v2933 = vpop.f32.mrf.mxu0
    %v2934 = vadd.f32 %v2790, %v2933
    %v2935 = vpop.f32.mrf.mxu0
    %2936 = vdwg.mxu0
    %v2938 = vsel %vm510, %v2739, 0
    %2940 = vmatprep.subr.mxu0 0.0
    %2941 = vmatpush1.msra.mxu0 0.0
    %2942 = vmatprep.subr.mxu0 0.0
    %2943 = vmatpush1.msra.mxu0 0.0
    %2944 = vmatprep.subr.mxu0 0.0
    %2945 = vmatpush1.msra.mxu0 0.0
    %2946 = vmatprep.subr.mxu0 0.0
    %2947 = vmatpush1.msra.mxu0 0.0
    %2948 = vmatprep.subr.mxu0 0.0
    %2949 = vmatpush1.msra.mxu0 0.0
    %2950 = vmatprep.subr.mxu0 0.0
    %2951 = vmatpush1.msra.mxu0 0.0
    %2952 = vmatprep.subr.mxu0 0.0
    %2953 = vmatpush1.msra.mxu0 0.0
    %2954 = vmatprep.subr.mxu0 0.0
    %2955 = vmatpush1.msra.mxu0 0.0
    %2956 = vmatprep.subr.mxu0 0.0
    %2957 = vmatpush1.msra.mxu0 0.0
    %2958 = vmatprep.subr.mxu0 0.0
    %2959 = vmatpush1.msra.mxu0 0.0
    %2960 = vmatprep.subr.mxu0 0.0
    %2961 = vmatpush1.msra.mxu0 0.0
    %2962 = vmatprep.subr.mxu0 0.0
    %2963 = vmatpush1.msra.mxu0 0.0
    %2964 = vmatprep.subr.mxu0 0.0
    %2965 = vmatpush1.msra.mxu0 0.0
    %2966 = vmatprep.subr.mxu0 0.0
    %2967 = vmatpush1.msra.mxu0 0.0
    %2968 = vmatprep.subr.mxu0 0.0
    %2969 = vmatpush1.msra.mxu0 0.0
    %2970 = vmatprep.subr.mxu0 0.0
    %2971 = vmatpush1.msra.mxu0 %v2630
    %2972 = vmatprep.subr.mxu0 0.0
    %2973 = vmatpush2.msra.mxu0 0.0
    %2974 = vmatprep.subr.mxu0 0.0
    %2975 = vmatpush2.msra.mxu0 0.0
    %2976 = vmatprep.subr.mxu0 0.0
    %2977 = vmatpush2.msra.mxu0 0.0
    %2978 = vmatprep.subr.mxu0 0.0
    %2979 = vmatpush2.msra.mxu0 0.0
    %2980 = vmatprep.subr.mxu0 0.0
    %2981 = vmatpush2.msra.mxu0 0.0
    %2982 = vmatprep.subr.mxu0 0.0
    %2983 = vmatpush2.msra.mxu0 0.0
    %2984 = vmatprep.subr.mxu0 0.0
    %2985 = vmatpush2.msra.mxu0 0.0
    %2986 = vmatprep.subr.mxu0 0.0
    %2987 = vmatpush2.msra.mxu0 0.0
    %2988 = vmatprep.subr.mxu0 0.0
    %2989 = vmatpush2.msra.mxu0 0.0
    %2990 = vmatprep.subr.mxu0 0.0
    %2991 = vmatpush2.msra.mxu0 0.0
    %2992 = vmatprep.subr.mxu0 0.0
    %2993 = vmatpush2.msra.mxu0 0.0
    %2994 = vmatprep.subr.mxu0 0.0
    %2995 = vmatpush2.msra.mxu0 0.0
    %2996 = vmatprep.subr.mxu0 0.0
    %2997 = vmatpush2.msra.mxu0 0.0
    %2998 = vmatprep.subr.mxu0 0.0
    %2999 = vmatpush2.msra.mxu0 0.0
    %3000 = vmatprep.subr.mxu0 0.0
    %3001 = vmatpush2.msra.mxu0 0.0
    %3002 = vmatprep.subr.mxu0 0.0
    %3003 = vmatpush2.msra.mxu0 0.0
    %3004 = vmatprep.mubr.f32.mxu0 0.0
    %3005 = vmatmul.mubr.f32.gmra.mxu0 %v2938
    %v3006 = vpop.f32.mrf.mxu0
    %v3007 = vadd.f32 %v2790, %v3006
    %v3008 = vpop.f32.mrf.mxu0
    %3009 = vdwg.mxu0
    %v3011 = vsel %vm510, %v2771, 0
    %3013 = vmatprep.subr.mxu0 0.0
    %3014 = vmatpush1.msra.mxu0 0.0
    %3015 = vmatprep.subr.mxu0 0.0
    %3016 = vmatpush1.msra.mxu0 0.0
    %3017 = vmatprep.subr.mxu0 0.0
    %3018 = vmatpush1.msra.mxu0 0.0
    %3019 = vmatprep.subr.mxu0 0.0
    %3020 = vmatpush1.msra.mxu0 0.0
    %3021 = vmatprep.subr.mxu0 0.0
    %3022 = vmatpush1.msra.mxu0 0.0
    %3023 = vmatprep.subr.mxu0 0.0
    %3024 = vmatpush1.msra.mxu0 0.0
    %3025 = vmatprep.subr.mxu0 0.0
    %3026 = vmatpush1.msra.mxu0 0.0
    %3027 = vmatprep.subr.mxu0 0.0
    %3028 = vmatpush1.msra.mxu0 0.0
    %3029 = vmatprep.subr.mxu0 0.0
    %3030 = vmatpush1.msra.mxu0 0.0
    %3031 = vmatprep.subr.mxu0 0.0
    %3032 = vmatpush1.msra.mxu0 0.0
    %3033 = vmatprep.subr.mxu0 0.0
    %3034 = vmatpush1.msra.mxu0 0.0
    %3035 = vmatprep.subr.mxu0 0.0
    %3036 = vmatpush1.msra.mxu0 0.0
    %3037 = vmatprep.subr.mxu0 0.0
    %3038 = vmatpush1.msra.mxu0 0.0
    %3039 = vmatprep.subr.mxu0 0.0
    %3040 = vmatpush1.msra.mxu0 0.0
    %3041 = vmatprep.subr.mxu0 0.0
    %3042 = vmatpush1.msra.mxu0 0.0
    %3043 = vmatprep.subr.mxu0 0.0
    %3044 = vmatpush1.msra.mxu0 %v2635
    %3045 = vmatprep.subr.mxu0 0.0
    %3046 = vmatpush2.msra.mxu0 0.0
    %3047 = vmatprep.subr.mxu0 0.0
    %3048 = vmatpush2.msra.mxu0 0.0
    %3049 = vmatprep.subr.mxu0 0.0
    %3050 = vmatpush2.msra.mxu0 0.0
    %3051 = vmatprep.subr.mxu0 0.0
    %3052 = vmatpush2.msra.mxu0 0.0
    %3053 = vmatprep.subr.mxu0 0.0
    %3054 = vmatpush2.msra.mxu0 0.0
    %3055 = vmatprep.subr.mxu0 0.0
    %3056 = vmatpush2.msra.mxu0 0.0
    %3057 = vmatprep.subr.mxu0 0.0
    %3058 = vmatpush2.msra.mxu0 0.0
    %3059 = vmatprep.subr.mxu0 0.0
    %3060 = vmatpush2.msra.mxu0 0.0
    %3061 = vmatprep.subr.mxu0 0.0
    %3062 = vmatpush2.msra.mxu0 0.0
    %3063 = vmatprep.subr.mxu0 0.0
    %3064 = vmatpush2.msra.mxu0 0.0
    %3065 = vmatprep.subr.mxu0 0.0
    %3066 = vmatpush2.msra.mxu0 0.0
    %3067 = vmatprep.subr.mxu0 0.0
    %3068 = vmatpush2.msra.mxu0 0.0
    %3069 = vmatprep.subr.mxu0 0.0
    %3070 = vmatpush2.msra.mxu0 0.0
    %3071 = vmatprep.subr.mxu0 0.0
    %3072 = vmatpush2.msra.mxu0 0.0
    %3073 = vmatprep.subr.mxu0 0.0
    %3074 = vmatpush2.msra.mxu0 0.0
    %3075 = vmatprep.subr.mxu0 0.0
    %3076 = vmatpush2.msra.mxu0 0.0
    %3077 = vmatprep.mubr.f32.mxu0 0.0
    %3078 = vmatmul.mubr.f32.gmra.mxu0 %v3011
    %v3079 = vpop.f32.mrf.mxu0
    %v3080 = vadd.f32 %v2790, %v3079
    %v3081 = vpop.f32.mrf.mxu0
    %3082 = vdwg.mxu0
    %vm3083 = vcmask 130048
    %v3084 = vsel %vm3083, %v2861, -inf
    %3085 = vmax.xlane.f32.xlu0 %v3084
    %v3086 = vpop.xlane.xlu0 %3085
    %v3087 = vsel %vm3083, %v2934, -inf
    %3088 = vmax.xlane.f32.xlu0 %v3087
    %v3089 = vpop.xlane.xlu0 %3088
    %v3090 = vsel %vm3083, %v3007, -inf
    %3091 = vmax.xlane.f32.xlu0 %v3090
    %v3092 = vpop.xlane.xlu0 %3091
    %v3093 = vsel %vm3083, %v3080, -inf
    %3094 = vmax.xlane.f32.xlu0 %v3093
    %v3095 = vpop.xlane.xlu0 %3094
    %v3096 = vsub.f32 %v2861, %v3086
    %v3097 = vsub.f32 %v2934, %v3089
    %v3098 = vsub.f32 %v3007, %v3092
    %v3099 = vsub.f32 %v3080, %v3095
    %v3100 = vmul.f32 %v3096, 1.442695
    %v3101 = vpow.pop %v3100
    %v3102 = vmul.f32 %v3097, 1.442695
    %v3103 = vpow.pop %v3102
    %v3104 = vmul.f32 %v3098, 1.442695
    %v3105 = vpow.pop %v3104
    %v3106 = vmul.f32 %v3099, 1.442695
    %v3107 = vpow.pop %v3106
    %v3108 = vsel %vm3083, %v3101, 0.0
    %3109 = vadd.xlane.f32.xlu0 %v3108
    %v3110 = vpop.xlane.xlu0 %3109
    %v3111 = vsel %vm3083, %v3103, 0.0
    %3112 = vadd.xlane.f32.xlu0 %v3111
    %v3113 = vpop.xlane.xlu0 %3112
    %v3114 = vsel %vm3083, %v3105, 0.0
    %3115 = vadd.xlane.f32.xlu0 %v3114
    %v3116 = vpop.xlane.xlu0 %3115
    %v3117 = vsel %vm3083, %v3107, 0.0
    %3118 = vadd.xlane.f32.xlu0 %v3117
    %v3119 = vpop.xlane.xlu0 %3118
    %v3120 = vrcp.pop %v3110
    %v3121 = vrcp.pop %v3113
    %v3122 = vrcp.pop %v3116
    %v3123 = vrcp.pop %v3119
    %v3124 = vmul.f32 %v3101, %v3120
    %v3125 = vmul.f32 %v3103, %v3121
    %v3126 = vmul.f32 %v3105, %v3122
    %v3127 = vmul.f32 %v3107, %v3123
    %v3129 = vsel %vm3083, %v3124, 0
    %v3132 = vsel %vm3083, %v2640, 0
    %3134 = vmatprep.subr.mxu0 0.0
    %3135 = vmatpush1.xpose.msra.mxu0 0.0
    %3136 = vmatprep.subr.mxu0 0.0
    %3137 = vmatpush1.xpose.msra.mxu0 0.0
    %3138 = vmatprep.subr.mxu0 0.0
    %3139 = vmatpush1.xpose.msra.mxu0 0.0
    %3140 = vmatprep.subr.mxu0 0.0
    %3141 = vmatpush1.xpose.msra.mxu0 0.0
    %3142 = vmatprep.subr.mxu0 0.0
    %3143 = vmatpush1.xpose.msra.mxu0 0.0
    %3144 = vmatprep.subr.mxu0 0.0
    %3145 = vmatpush1.xpose.msra.mxu0 0.0
    %3146 = vmatprep.subr.mxu0 0.0
    %3147 = vmatpush1.xpose.msra.mxu0 0.0
    %3148 = vmatprep.subr.mxu0 0.0
    %3149 = vmatpush1.xpose.msra.mxu0 0.0
    %3150 = vmatprep.subr.mxu0 0.0
    %3151 = vmatpush1.xpose.msra.mxu0 0.0
    %3152 = vmatprep.subr.mxu0 0.0
    %3153 = vmatpush1.xpose.msra.mxu0 0.0
    %3154 = vmatprep.subr.mxu0 0.0
    %3155 = vmatpush1.xpose.msra.mxu0 0.0
    %3156 = vmatprep.subr.mxu0 0.0
    %3157 = vmatpush1.xpose.msra.mxu0 0.0
    %3158 = vmatprep.subr.mxu0 0.0
    %3159 = vmatpush1.xpose.msra.mxu0 0.0
    %3160 = vmatprep.subr.mxu0 0.0
    %3161 = vmatpush1.xpose.msra.mxu0 0.0
    %3162 = vmatprep.subr.mxu0 0.0
    %3163 = vmatpush1.xpose.msra.mxu0 0.0
    %3164 = vmatprep.subr.mxu0 0.0
    %3165 = vmatpush1.xpose.msra.mxu0 %v3132
    %3166 = vmatprep.subr.mxu0 0.0
    %3167 = vmatpush2.xpose.msra.mxu0 0.0
    %3168 = vmatprep.subr.mxu0 0.0
    %3169 = vmatpush2.xpose.msra.mxu0 0.0
    %3170 = vmatprep.subr.mxu0 0.0
    %3171 = vmatpush2.xpose.msra.mxu0 0.0
    %3172 = vmatprep.subr.mxu0 0.0
    %3173 = vmatpush2.xpose.msra.mxu0 0.0
    %3174 = vmatprep.subr.mxu0 0.0
    %3175 = vmatpush2.xpose.msra.mxu0 0.0
    %3176 = vmatprep.subr.mxu0 0.0
    %3177 = vmatpush2.xpose.msra.mxu0 0.0
    %3178 = vmatprep.subr.mxu0 0.0
    %3179 = vmatpush2.xpose.msra.mxu0 0.0
    %3180 = vmatprep.subr.mxu0 0.0
    %3181 = vmatpush2.xpose.msra.mxu0 0.0
    %3182 = vmatprep.subr.mxu0 0.0
    %3183 = vmatpush2.xpose.msra.mxu0 0.0
    %3184 = vmatprep.subr.mxu0 0.0
    %3185 = vmatpush2.xpose.msra.mxu0 0.0
    %3186 = vmatprep.subr.mxu0 0.0
    %3187 = vmatpush2.xpose.msra.mxu0 0.0
    %3188 = vmatprep.subr.mxu0 0.0
    %3189 = vmatpush2.xpose.msra.mxu0 0.0
    %3190 = vmatprep.subr.mxu0 0.0
    %3191 = vmatpush2.xpose.msra.mxu0 0.0
    %3192 = vmatprep.subr.mxu0 0.0
    %3193 = vmatpush2.xpose.msra.mxu0 0.0
    %3194 = vmatprep.subr.mxu0 0.0
    %3195 = vmatpush2.xpose.msra.mxu0 0.0
    %3196 = vmatprep.subr.mxu0 0.0
    %3197 = vmatpush2.xpose.msra.mxu0 0.0
    %3198 = vmatprep.mubr.f32.mxu0 0.0
    %3199 = vmatmul.mubr.f32.gmra.mxu0 %v3129
    %v3200 = vpop.f32.mrf.mxu0
    %v3201 = vadd.f32 0.0, %v3200
    %v3202 = vpop.f32.mrf.mxu0
    %3203 = vdwg.mxu0
    %v3205 = vsel %vm3083, %v3125, 0
    %v3208 = vsel %vm3083, %v2645, 0
    %3210 = vmatprep.subr.mxu0 0.0
    %3211 = vmatpush1.xpose.msra.mxu0 0.0
    %3212 = vmatprep.subr.mxu0 0.0
    %3213 = vmatpush1.xpose.msra.mxu0 0.0
    %3214 = vmatprep.subr.mxu0 0.0
    %3215 = vmatpush1.xpose.msra.mxu0 0.0
    %3216 = vmatprep.subr.mxu0 0.0
    %3217 = vmatpush1.xpose.msra.mxu0 0.0
    %3218 = vmatprep.subr.mxu0 0.0
    %3219 = vmatpush1.xpose.msra.mxu0 0.0
    %3220 = vmatprep.subr.mxu0 0.0
    %3221 = vmatpush1.xpose.msra.mxu0 0.0
    %3222 = vmatprep.subr.mxu0 0.0
    %3223 = vmatpush1.xpose.msra.mxu0 0.0
    %3224 = vmatprep.subr.mxu0 0.0
    %3225 = vmatpush1.xpose.msra.mxu0 0.0
    %3226 = vmatprep.subr.mxu0 0.0
    %3227 = vmatpush1.xpose.msra.mxu0 0.0
    %3228 = vmatprep.subr.mxu0 0.0
    %3229 = vmatpush1.xpose.msra.mxu0 0.0
    %3230 = vmatprep.subr.mxu0 0.0
    %3231 = vmatpush1.xpose.msra.mxu0 0.0
    %3232 = vmatprep.subr.mxu0 0.0
    %3233 = vmatpush1.xpose.msra.mxu0 0.0
    %3234 = vmatprep.subr.mxu0 0.0
    %3235 = vmatpush1.xpose.msra.mxu0 0.0
    %3236 = vmatprep.subr.mxu0 0.0
    %3237 = vmatpush1.xpose.msra.mxu0 0.0
    %3238 = vmatprep.subr.mxu0 0.0
    %3239 = vmatpush1.xpose.msra.mxu0 0.0
    %3240 = vmatprep.subr.mxu0 0.0
    %3241 = vmatpush1.xpose.msra.mxu0 %v3208
    %3242 = vmatprep.subr.mxu0 0.0
    %3243 = vmatpush2.xpose.msra.mxu0 0.0
    %3244 = vmatprep.subr.mxu0 0.0
    %3245 = vmatpush2.xpose.msra.mxu0 0.0
    %3246 = vmatprep.subr.mxu0 0.0
    %3247 = vmatpush2.xpose.msra.mxu0 0.0
    %3248 = vmatprep.subr.mxu0 0.0
    %3249 = vmatpush2.xpose.msra.mxu0 0.0
    %3250 = vmatprep.subr.mxu0 0.0
    %3251 = vmatpush2.xpose.msra.mxu0 0.0
    %3252 = vmatprep.subr.mxu0 0.0
    %3253 = vmatpush2.xpose.msra.mxu0 0.0
    %3254 = vmatprep.subr.mxu0 0.0
    %3255 = vmatpush2.xpose.msra.mxu0 0.0
    %3256 = vmatprep.subr.mxu0 0.0
    %3257 = vmatpush2.xpose.msra.mxu0 0.0
    %3258 = vmatprep.subr.mxu0 0.0
    %3259 = vmatpush2.xpose.msra.mxu0 0.0
    %3260 = vmatprep.subr.mxu0 0.0
    %3261 = vmatpush2.xpose.msra.mxu0 0.0
    %3262 = vmatprep.subr.mxu0 0.0
    %3263 = vmatpush2.xpose.msra.mxu0 0.0
    %3264 = vmatprep.subr.mxu0 0.0
    %3265 = vmatpush2.xpose.msra.mxu0 0.0
    %3266 = vmatprep.subr.mxu0 0.0
    %3267 = vmatpush2.xpose.msra.mxu0 0.0
    %3268 = vmatprep.subr.mxu0 0.0
    %3269 = vmatpush2.xpose.msra.mxu0 0.0
    %3270 = vmatprep.subr.mxu0 0.0
    %3271 = vmatpush2.xpose.msra.mxu0 0.0
    %3272 = vmatprep.subr.mxu0 0.0
    %3273 = vmatpush2.xpose.msra.mxu0 0.0
    %3274 = vmatprep.mubr.f32.mxu0 0.0
    %3275 = vmatmul.mubr.f32.gmra.mxu0 %v3205
    %v3276 = vpop.f32.mrf.mxu0
    %v3277 = vadd.f32 0.0, %v3276
    %v3278 = vpop.f32.mrf.mxu0
    %3279 = vdwg.mxu0
    %v3281 = vsel %vm3083, %v3126, 0
    %v3284 = vsel %vm3083, %v2650, 0
    %3286 = vmatprep.subr.mxu0 0.0
    %3287 = vmatpush1.xpose.msra.mxu0 0.0
    %3288 = vmatprep.subr.mxu0 0.0
    %3289 = vmatpush1.xpose.msra.mxu0 0.0
    %3290 = vmatprep.subr.mxu0 0.0
    %3291 = vmatpush1.xpose.msra.mxu0 0.0
    %3292 = vmatprep.subr.mxu0 0.0
    %3293 = vmatpush1.xpose.msra.mxu0 0.0
    %3294 = vmatprep.subr.mxu0 0.0
    %3295 = vmatpush1.xpose.msra.mxu0 0.0
    %3296 = vmatprep.subr.mxu0 0.0
    %3297 = vmatpush1.xpose.msra.mxu0 0.0
    %3298 = vmatprep.subr.mxu0 0.0
    %3299 = vmatpush1.xpose.msra.mxu0 0.0
    %3300 = vmatprep.subr.mxu0 0.0
    %3301 = vmatpush1.xpose.msra.mxu0 0.0
    %3302 = vmatprep.subr.mxu0 0.0
    %3303 = vmatpush1.xpose.msra.mxu0 0.0
    %3304 = vmatprep.subr.mxu0 0.0
    %3305 = vmatpush1.xpose.msra.mxu0 0.0
    %3306 = vmatprep.subr.mxu0 0.0
    %3307 = vmatpush1.xpose.msra.mxu0 0.0
    %3308 = vmatprep.subr.mxu0 0.0
    %3309 = vmatpush1.xpose.msra.mxu0 0.0
    %3310 = vmatprep.subr.mxu0 0.0
    %3311 = vmatpush1.xpose.msra.mxu0 0.0
    %3312 = vmatprep.subr.mxu0 0.0
    %3313 = vmatpush1.xpose.msra.mxu0 0.0
    %3314 = vmatprep.subr.mxu0 0.0
    %3315 = vmatpush1.xpose.msra.mxu0 0.0
    %3316 = vmatprep.subr.mxu0 0.0
    %3317 = vmatpush1.xpose.msra.mxu0 %v3284
    %3318 = vmatprep.subr.mxu0 0.0
    %3319 = vmatpush2.xpose.msra.mxu0 0.0
    %3320 = vmatprep.subr.mxu0 0.0
    %3321 = vmatpush2.xpose.msra.mxu0 0.0
    %3322 = vmatprep.subr.mxu0 0.0
    %3323 = vmatpush2.xpose.msra.mxu0 0.0
    %3324 = vmatprep.subr.mxu0 0.0
    %3325 = vmatpush2.xpose.msra.mxu0 0.0
    %3326 = vmatprep.subr.mxu0 0.0
    %3327 = vmatpush2.xpose.msra.mxu0 0.0
    %3328 = vmatprep.subr.mxu0 0.0
    %3329 = vmatpush2.xpose.msra.mxu0 0.0
    %3330 = vmatprep.subr.mxu0 0.0
    %3331 = vmatpush2.xpose.msra.mxu0 0.0
    %3332 = vmatprep.subr.mxu0 0.0
    %3333 = vmatpush2.xpose.msra.mxu0 0.0
    %3334 = vmatprep.subr.mxu0 0.0
    %3335 = vmatpush2.xpose.msra.mxu0 0.0
    %3336 = vmatprep.subr.mxu0 0.0
    %3337 = vmatpush2.xpose.msra.mxu0 0.0
    %3338 = vmatprep.subr.mxu0 0.0
    %3339 = vmatpush2.xpose.msra.mxu0 0.0
    %3340 = vmatprep.subr.mxu0 0.0
    %3341 = vmatpush2.xpose.msra.mxu0 0.0
    %3342 = vmatprep.subr.mxu0 0.0
    %3343 = vmatpush2.xpose.msra.mxu0 0.0
    %3344 = vmatprep.subr.mxu0 0.0
    %3345 = vmatpush2.xpose.msra.mxu0 0.0
    %3346 = vmatprep.subr.mxu0 0.0
    %3347 = vmatpush2.xpose.msra.mxu0 0.0
    %3348 = vmatprep.subr.mxu0 0.0
    %3349 = vmatpush2.xpose.msra.mxu0 0.0
    %3350 = vmatprep.mubr.f32.mxu0 0.0
    %3351 = vmatmul.mubr.f32.gmra.mxu0 %v3281
    %v3352 = vpop.f32.mrf.mxu0
    %v3353 = vadd.f32 0.0, %v3352
    %v3354 = vpop.f32.mrf.mxu0
    %3355 = vdwg.mxu0
    %v3357 = vsel %vm3083, %v3127, 0
    %v3360 = vsel %vm3083, %v2655, 0
    %3362 = vmatprep.subr.mxu0 0.0
    %3363 = vmatpush1.xpose.msra.mxu0 0.0
    %3364 = vmatprep.subr.mxu0 0.0
    %3365 = vmatpush1.xpose.msra.mxu0 0.0
    %3366 = vmatprep.subr.mxu0 0.0
    %3367 = vmatpush1.xpose.msra.mxu0 0.0
    %3368 = vmatprep.subr.mxu0 0.0
    %3369 = vmatpush1.xpose.msra.mxu0 0.0
    %3370 = vmatprep.subr.mxu0 0.0
    %3371 = vmatpush1.xpose.msra.mxu0 0.0
    %3372 = vmatprep.subr.mxu0 0.0
    %3373 = vmatpush1.xpose.msra.mxu0 0.0
    %3374 = vmatprep.subr.mxu0 0.0
    %3375 = vmatpush1.xpose.msra.mxu0 0.0
    %3376 = vmatprep.subr.mxu0 0.0
    %3377 = vmatpush1.xpose.msra.mxu0 0.0
    %3378 = vmatprep.subr.mxu0 0.0
    %3379 = vmatpush1.xpose.msra.mxu0 0.0
    %3380 = vmatprep.subr.mxu0 0.0
    %3381 = vmatpush1.xpose.msra.mxu0 0.0
    %3382 = vmatprep.subr.mxu0 0.0
    %3383 = vmatpush1.xpose.msra.mxu0 0.0
    %3384 = vmatprep.subr.mxu0 0.0
    %3385 = vmatpush1.xpose.msra.mxu0 0.0
    %3386 = vmatprep.subr.mxu0 0.0
    %3387 = vmatpush1.xpose.msra.mxu0 0.0
    %3388 = vmatprep.subr.mxu0 0.0
    %3389 = vmatpush1.xpose.msra.mxu0 0.0
    %3390 = vmatprep.subr.mxu0 0.0
    %3391 = vmatpush1.xpose.msra.mxu0 0.0
    %3392 = vmatprep.subr.mxu0 0.0
    %3393 = vmatpush1.xpose.msra.mxu0 %v3360
    %3394 = vmatprep.subr.mxu0 0.0
    %3395 = vmatpush2.xpose.msra.mxu0 0.0
    %3396 = vmatprep.subr.mxu0 0.0
    %3397 = vmatpush2.xpose.msra.mxu0 0.0
    %3398 = vmatprep.subr.mxu0 0.0
    %3399 = vmatpush2.xpose.msra.mxu0 0.0
    %3400 = vmatprep.subr.mxu0 0.0
    %3401 = vmatpush2.xpose.msra.mxu0 0.0
    %3402 = vmatprep.subr.mxu0 0.0
    %3403 = vmatpush2.xpose.msra.mxu0 0.0
    %3404 = vmatprep.subr.mxu0 0.0
    %3405 = vmatpush2.xpose.msra.mxu0 0.0
    %3406 = vmatprep.subr.mxu0 0.0
    %3407 = vmatpush2.xpose.msra.mxu0 0.0
    %3408 = vmatprep.subr.mxu0 0.0
    %3409 = vmatpush2.xpose.msra.mxu0 0.0
    %3410 = vmatprep.subr.mxu0 0.0
    %3411 = vmatpush2.xpose.msra.mxu0 0.0
    %3412 = vmatprep.subr.mxu0 0.0
    %3413 = vmatpush2.xpose.msra.mxu0 0.0
    %3414 = vmatprep.subr.mxu0 0.0
    %3415 = vmatpush2.xpose.msra.mxu0 0.0
    %3416 = vmatprep.subr.mxu0 0.0
    %3417 = vmatpush2.xpose.msra.mxu0 0.0
    %3418 = vmatprep.subr.mxu0 0.0
    %3419 = vmatpush2.xpose.msra.mxu0 0.0
    %3420 = vmatprep.subr.mxu0 0.0
    %3421 = vmatpush2.xpose.msra.mxu0 0.0
    %3422 = vmatprep.subr.mxu0 0.0
    %3423 = vmatpush2.xpose.msra.mxu0 0.0
    %3424 = vmatprep.subr.mxu0 0.0
    %3425 = vmatpush2.xpose.msra.mxu0 0.0
    %3426 = vmatprep.mubr.f32.mxu0 0.0
    %3427 = vmatmul.mubr.f32.gmra.mxu0 %v3357
    %v3428 = vpop.f32.mrf.mxu0
    %v3429 = vadd.f32 0.0, %v3428
    %v3430 = vpop.f32.mrf.mxu0
    %3431 = vdwg.mxu0
    %v3432 = vld [vmem:[%s3 + $0x1] sm:$0x1]
    %3437 = vrot.lane.b32.xlu0 %v2459, 120
    %v3438 = vpop.permute.xlu0 %3437
    %3439 = vrot.lane.b32.xlu0 %v2464, 120
    %v3440 = vpop.permute.xlu0 %3439
    %3441 = vrot.lane.b32.xlu0 %v2469, 120
    %v3442 = vpop.permute.xlu0 %3441
    %3443 = vrot.lane.b32.xlu0 %v2474, 120
    %v3444 = vpop.permute.xlu0 %3443
    %3449 = vxpose.xlu0.b32.start [1/16] %v3438, 128
    %3450 = vxpose.xlu0.b32.cont [2/16] 0.0, 128
    %3451 = vxpose.xlu0.b32.cont [3/16] 0.0, 128
    %3452 = vxpose.xlu0.b32.cont [4/16] 0.0, 128
    %3453 = vxpose.xlu0.b32.cont [5/16] 0.0, 128
    %3454 = vxpose.xlu0.b32.cont [6/16] 0.0, 128
    %3455 = vxpose.xlu0.b32.cont [7/16] 0.0, 128
    %3456 = vxpose.xlu0.b32.cont [8/16] 0.0, 128
    %3457 = vxpose.xlu0.b32.cont [9/16] 0.0, 128
    %3458 = vxpose.xlu0.b32.cont [10/16] 0.0, 128
    %3459 = vxpose.xlu0.b32.cont [11/16] 0.0, 128
    %3460 = vxpose.xlu0.b32.cont [12/16] 0.0, 128
    %3461 = vxpose.xlu0.b32.cont [13/16] 0.0, 128
    %3462 = vxpose.xlu0.b32.cont [14/16] 0.0, 128
    %3463 = vxpose.xlu0.b32.cont [15/16] 0.0, 128
    %3464 = vxpose.xlu0.b32.end [16/16] 0.0, 128
    %v3465 = vpop.trf.xlu0
    %v3466 = vpop.trf.xlu0
    %v3467 = vpop.trf.xlu0
    %v3468 = vpop.trf.xlu0
    %v3469 = vpop.trf.xlu0
    %v3470 = vpop.trf.xlu0
    %v3471 = vpop.trf.xlu0
    %v3472 = vpop.trf.xlu0
    %v3473 = vpop.trf.xlu0
    %v3474 = vpop.trf.xlu0
    %v3475 = vpop.trf.xlu0
    %v3476 = vpop.trf.xlu0
    %v3477 = vpop.trf.xlu0
    %v3478 = vpop.trf.xlu0
    %v3479 = vpop.trf.xlu0
    %v3480 = vpop.trf.xlu0
    %3481 = vxpose.xlu0.b32.start [1/16] %v3440, 128
    %3482 = vxpose.xlu0.b32.cont [2/16] 0.0, 128
    %3483 = vxpose.xlu0.b32.cont [3/16] 0.0, 128
    %3484 = vxpose.xlu0.b32.cont [4/16] 0.0, 128
    %3485 = vxpose.xlu0.b32.cont [5/16] 0.0, 128
    %3486 = vxpose.xlu0.b32.cont [6/16] 0.0, 128
    %3487 = vxpose.xlu0.b32.cont [7/16] 0.0, 128
    %3488 = vxpose.xlu0.b32.cont [8/16] 0.0, 128
    %3489 = vxpose.xlu0.b32.cont [9/16] 0.0, 128
    %3490 = vxpose.xlu0.b32.cont [10/16] 0.0, 128
    %3491 = vxpose.xlu0.b32.cont [11/16] 0.0, 128
    %3492 = vxpose.xlu0.b32.cont [12/16] 0.0, 128
    %3493 = vxpose.xlu0.b32.cont [13/16] 0.0, 128
    %3494 = vxpose.xlu0.b32.cont [14/16] 0.0, 128
    %3495 = vxpose.xlu0.b32.cont [15/16] 0.0, 128
    %3496 = vxpose.xlu0.b32.end [16/16] 0.0, 128
    %v3497 = vpop.trf.xlu0
    %v3498 = vpop.trf.xlu0
    %v3499 = vpop.trf.xlu0
    %v3500 = vpop.trf.xlu0
    %v3501 = vpop.trf.xlu0
    %v3502 = vpop.trf.xlu0
    %v3503 = vpop.trf.xlu0
    %v3504 = vpop.trf.xlu0
    %v3505 = vpop.trf.xlu0
    %v3506 = vpop.trf.xlu0
    %v3507 = vpop.trf.xlu0
    %v3508 = vpop.trf.xlu0
    %v3509 = vpop.trf.xlu0
    %v3510 = vpop.trf.xlu0
    %v3511 = vpop.trf.xlu0
    %v3512 = vpop.trf.xlu0
    %3513 = vxpose.xlu0.b32.start [1/16] %v3442, 128
    %3514 = vxpose.xlu0.b32.cont [2/16] 0.0, 128
    %3515 = vxpose.xlu0.b32.cont [3/16] 0.0, 128
    %3516 = vxpose.xlu0.b32.cont [4/16] 0.0, 128
    %3517 = vxpose.xlu0.b32.cont [5/16] 0.0, 128
    %3518 = vxpose.xlu0.b32.cont [6/16] 0.0, 128
    %3519 = vxpose.xlu0.b32.cont [7/16] 0.0, 128
    %3520 = vxpose.xlu0.b32.cont [8/16] 0.0, 128
    %3521 = vxpose.xlu0.b32.cont [9/16] 0.0, 128
    %3522 = vxpose.xlu0.b32.cont [10/16] 0.0, 128
    %3523 = vxpose.xlu0.b32.cont [11/16] 0.0, 128
    %3524 = vxpose.xlu0.b32.cont [12/16] 0.0, 128
    %3525 = vxpose.xlu0.b32.cont [13/16] 0.0, 128
    %3526 = vxpose.xlu0.b32.cont [14/16] 0.0, 128
    %3527 = vxpose.xlu0.b32.cont [15/16] 0.0, 128
    %3528 = vxpose.xlu0.b32.end [16/16] 0.0, 128
    %v3529 = vpop.trf.xlu0
    %v3530 = vpop.trf.xlu0
    %v3531 = vpop.trf.xlu0
    %v3532 = vpop.trf.xlu0
    %v3533 = vpop.trf.xlu0
    %v3534 = vpop.trf.xlu0
    %v3535 = vpop.trf.xlu0
    %v3536 = vpop.trf.xlu0
    %v3537 = vpop.trf.xlu0
    %v3538 = vpop.trf.xlu0
    %v3539 = vpop.trf.xlu0
    %v3540 = vpop.trf.xlu0
    %v3541 = vpop.trf.xlu0
    %v3542 = vpop.trf.xlu0
    %v3543 = vpop.trf.xlu0
    %v3544 = vpop.trf.xlu0
    %3545 = vxpose.xlu0.b32.start [1/16] %v3444, 128
    %3546 = vxpose.xlu0.b32.cont [2/16] 0.0, 128
    %3547 = vxpose.xlu0.b32.cont [3/16] 0.0, 128
    %3548 = vxpose.xlu0.b32.cont [4/16] 0.0, 128
    %3549 = vxpose.xlu0.b32.cont [5/16] 0.0, 128
    %3550 = vxpose.xlu0.b32.cont [6/16] 0.0, 128
    %3551 = vxpose.xlu0.b32.cont [7/16] 0.0, 128
    %3552 = vxpose.xlu0.b32.cont [8/16] 0.0, 128
    %3553 = vxpose.xlu0.b32.cont [9/16] 0.0, 128
    %3554 = vxpose.xlu0.b32.cont [10/16] 0.0, 128
    %3555 = vxpose.xlu0.b32.cont [11/16] 0.0, 128
    %3556 = vxpose.xlu0.b32.cont [12/16] 0.0, 128
    %3557 = vxpose.xlu0.b32.cont [13/16] 0.0, 128
    %3558 = vxpose.xlu0.b32.cont [14/16] 0.0, 128
    %3559 = vxpose.xlu0.b32.cont [15/16] 0.0, 128
    %3560 = vxpose.xlu0.b32.end [16/16] 0.0, 128
    %v3561 = vpop.trf.xlu0
    %v3562 = vpop.trf.xlu0
    %v3563 = vpop.trf.xlu0
    %v3564 = vpop.trf.xlu0
    %v3565 = vpop.trf.xlu0
    %v3566 = vpop.trf.xlu0
    %v3567 = vpop.trf.xlu0
    %v3568 = vpop.trf.xlu0
    %v3569 = vpop.trf.xlu0
    %v3570 = vpop.trf.xlu0
    %v3571 = vpop.trf.xlu0
    %v3572 = vpop.trf.xlu0
    %v3573 = vpop.trf.xlu0
    %v3574 = vpop.trf.xlu0
    %v3575 = vpop.trf.xlu0
    %v3576 = vpop.trf.xlu0
    %v3577 = vlaneseq
    %v3578 = vshrl.u32 %v3577, 7
    %v3579 = vsub.s32 0, %v3578
    %v3580 = vrot.slane %v3432, %v3579
    %3582 = vrot.lane.b32.xlu0 %v2620, 112
    %v3583 = vpop.permute.xlu0 %3582
    %v3586 = vsel %vm510, %v3465, 0
    %3588 = vmatprep.subr.mxu0 0.0
    %3589 = vmatpush1.msra.mxu0 0.0
    %3590 = vmatprep.subr.mxu0 0.0
    %3591 = vmatpush1.msra.mxu0 0.0
    %3592 = vmatprep.subr.mxu0 0.0
    %3593 = vmatpush1.msra.mxu0 0.0
    %3594 = vmatprep.subr.mxu0 0.0
    %3595 = vmatpush1.msra.mxu0 0.0
    %3596 = vmatprep.subr.mxu0 0.0
    %3597 = vmatpush1.msra.mxu0 0.0
    %3598 = vmatprep.subr.mxu0 0.0
    %3599 = vmatpush1.msra.mxu0 0.0
    %3600 = vmatprep.subr.mxu0 0.0
    %3601 = vmatpush1.msra.mxu0 0.0
    %3602 = vmatprep.subr.mxu0 0.0
    %3603 = vmatpush1.msra.mxu0 0.0
    %3604 = vmatprep.subr.mxu0 0.0
    %3605 = vmatpush1.msra.mxu0 0.0
    %3606 = vmatprep.subr.mxu0 0.0
    %3607 = vmatpush1.msra.mxu0 0.0
    %3608 = vmatprep.subr.mxu0 0.0
    %3609 = vmatpush1.msra.mxu0 0.0
    %3610 = vmatprep.subr.mxu0 0.0
    %3611 = vmatpush1.msra.mxu0 0.0
    %3612 = vmatprep.subr.mxu0 0.0
    %3613 = vmatpush1.msra.mxu0 0.0
    %3614 = vmatprep.subr.mxu0 0.0
    %3615 = vmatpush1.msra.mxu0 0.0
    %3616 = vmatprep.subr.mxu0 0.0
    %3617 = vmatpush1.msra.mxu0 0.0
    %3618 = vmatprep.subr.mxu0 0.0
    %3619 = vmatpush1.msra.mxu0 %v3583
    %3620 = vmatprep.subr.mxu0 0.0
    %3621 = vmatpush2.msra.mxu0 0.0
    %3622 = vmatprep.subr.mxu0 0.0
    %3623 = vmatpush2.msra.mxu0 0.0
    %3624 = vmatprep.subr.mxu0 0.0
    %3625 = vmatpush2.msra.mxu0 0.0
    %3626 = vmatprep.subr.mxu0 0.0
    %3627 = vmatpush2.msra.mxu0 0.0
    %3628 = vmatprep.subr.mxu0 0.0
    %3629 = vmatpush2.msra.mxu0 0.0
    %3630 = vmatprep.subr.mxu0 0.0
    %3631 = vmatpush2.msra.mxu0 0.0
    %3632 = vmatprep.subr.mxu0 0.0
    %3633 = vmatpush2.msra.mxu0 0.0
    %3634 = vmatprep.subr.mxu0 0.0
    %3635 = vmatpush2.msra.mxu0 0.0
    %3636 = vmatprep.subr.mxu0 0.0
    %3637 = vmatpush2.msra.mxu0 0.0
    %3638 = vmatprep.subr.mxu0 0.0
    %3639 = vmatpush2.msra.mxu0 0.0
    %3640 = vmatprep.subr.mxu0 0.0
    %3641 = vmatpush2.msra.mxu0 0.0
    %3642 = vmatprep.subr.mxu0 0.0
    %3643 = vmatpush2.msra.mxu0 0.0
    %3644 = vmatprep.subr.mxu0 0.0
    %3645 = vmatpush2.msra.mxu0 0.0
    %3646 = vmatprep.subr.mxu0 0.0
    %3647 = vmatpush2.msra.mxu0 0.0
    %3648 = vmatprep.subr.mxu0 0.0
    %3649 = vmatpush2.msra.mxu0 0.0
    %3650 = vmatprep.subr.mxu0 0.0
    %3651 = vmatpush2.msra.mxu0 0.0
    %3652 = vmatprep.mubr.f32.mxu0 0.0
    %3653 = vmatmul.mubr.f32.gmra.mxu0 %v3586
    %v3654 = vpop.f32.mrf.mxu0
    %v3655 = vadd.f32 %v3580, %v3654
    %v3656 = vpop.f32.mrf.mxu0
    %3657 = vdwg.mxu0
    %3659 = vrot.lane.b32.xlu0 %v2625, 112
    %v3660 = vpop.permute.xlu0 %3659
    %v3663 = vsel %vm510, %v3497, 0
    %3665 = vmatprep.subr.mxu0 0.0
    %3666 = vmatpush1.msra.mxu0 0.0
    %3667 = vmatprep.subr.mxu0 0.0
    %3668 = vmatpush1.msra.mxu0 0.0
    %3669 = vmatprep.subr.mxu0 0.0
    %3670 = vmatpush1.msra.mxu0 0.0
    %3671 = vmatprep.subr.mxu0 0.0
    %3672 = vmatpush1.msra.mxu0 0.0
    %3673 = vmatprep.subr.mxu0 0.0
    %3674 = vmatpush1.msra.mxu0 0.0
    %3675 = vmatprep.subr.mxu0 0.0
    %3676 = vmatpush1.msra.mxu0 0.0
    %3677 = vmatprep.subr.mxu0 0.0
    %3678 = vmatpush1.msra.mxu0 0.0
    %3679 = vmatprep.subr.mxu0 0.0
    %3680 = vmatpush1.msra.mxu0 0.0
    %3681 = vmatprep.subr.mxu0 0.0
    %3682 = vmatpush1.msra.mxu0 0.0
    %3683 = vmatprep.subr.mxu0 0.0
    %3684 = vmatpush1.msra.mxu0 0.0
    %3685 = vmatprep.subr.mxu0 0.0
    %3686 = vmatpush1.msra.mxu0 0.0
    %3687 = vmatprep.subr.mxu0 0.0
    %3688 = vmatpush1.msra.mxu0 0.0
    %3689 = vmatprep.subr.mxu0 0.0
    %3690 = vmatpush1.msra.mxu0 0.0
    %3691 = vmatprep.subr.mxu0 0.0
    %3692 = vmatpush1.msra.mxu0 0.0
    %3693 = vmatprep.subr.mxu0 0.0
    %3694 = vmatpush1.msra.mxu0 0.0
    %3695 = vmatprep.subr.mxu0 0.0
    %3696 = vmatpush1.msra.mxu0 %v3660
    %3697 = vmatprep.subr.mxu0 0.0
    %3698 = vmatpush2.msra.mxu0 0.0
    %3699 = vmatprep.subr.mxu0 0.0
    %3700 = vmatpush2.msra.mxu0 0.0
    %3701 = vmatprep.subr.mxu0 0.0
    %3702 = vmatpush2.msra.mxu0 0.0
    %3703 = vmatprep.subr.mxu0 0.0
    %3704 = vmatpush2.msra.mxu0 0.0
    %3705 = vmatprep.subr.mxu0 0.0
    %3706 = vmatpush2.msra.mxu0 0.0
    %3707 = vmatprep.subr.mxu0 0.0
    %3708 = vmatpush2.msra.mxu0 0.0
    %3709 = vmatprep.subr.mxu0 0.0
    %3710 = vmatpush2.msra.mxu0 0.0
    %3711 = vmatprep.subr.mxu0 0.0
    %3712 = vmatpush2.msra.mxu0 0.0
    %3713 = vmatprep.subr.mxu0 0.0
    %3714 = vmatpush2.msra.mxu0 0.0
    %3715 = vmatprep.subr.mxu0 0.0
    %3716 = vmatpush2.msra.mxu0 0.0
    %3717 = vmatprep.subr.mxu0 0.0
    %3718 = vmatpush2.msra.mxu0 0.0
    %3719 = vmatprep.subr.mxu0 0.0
    %3720 = vmatpush2.msra.mxu0 0.0
    %3721 = vmatprep.subr.mxu0 0.0
    %3722 = vmatpush2.msra.mxu0 0.0
    %3723 = vmatprep.subr.mxu0 0.0
    %3724 = vmatpush2.msra.mxu0 0.0
    %3725 = vmatprep.subr.mxu0 0.0
    %3726 = vmatpush2.msra.mxu0 0.0
    %3727 = vmatprep.subr.mxu0 0.0
    %3728 = vmatpush2.msra.mxu0 0.0
    %3729 = vmatprep.mubr.f32.mxu0 0.0
    %3730 = vmatmul.mubr.f32.gmra.mxu0 %v3663
    %v3731 = vpop.f32.mrf.mxu0
    %v3732 = vadd.f32 %v3580, %v3731
    %v3733 = vpop.f32.mrf.mxu0
    %3734 = vdwg.mxu0
    %3736 = vrot.lane.b32.xlu0 %v2630, 112
    %v3737 = vpop.permute.xlu0 %3736
    %v3740 = vsel %vm510, %v3529, 0
    %3742 = vmatprep.subr.mxu0 0.0
    %3743 = vmatpush1.msra.mxu0 0.0
    %3744 = vmatprep.subr.mxu0 0.0
    %3745 = vmatpush1.msra.mxu0 0.0
    %3746 = vmatprep.subr.mxu0 0.0
    %3747 = vmatpush1.msra.mxu0 0.0
    %3748 = vmatprep.subr.mxu0 0.0
    %3749 = vmatpush1.msra.mxu0 0.0
    %3750 = vmatprep.subr.mxu0 0.0
    %3751 = vmatpush1.msra.mxu0 0.0
    %3752 = vmatprep.subr.mxu0 0.0
    %3753 = vmatpush1.msra.mxu0 0.0
    %3754 = vmatprep.subr.mxu0 0.0
    %3755 = vmatpush1.msra.mxu0 0.0
    %3756 = vmatprep.subr.mxu0 0.0
    %3757 = vmatpush1.msra.mxu0 0.0
    %3758 = vmatprep.subr.mxu0 0.0
    %3759 = vmatpush1.msra.mxu0 0.0
    %3760 = vmatprep.subr.mxu0 0.0
    %3761 = vmatpush1.msra.mxu0 0.0
    %3762 = vmatprep.subr.mxu0 0.0
    %3763 = vmatpush1.msra.mxu0 0.0
    %3764 = vmatprep.subr.mxu0 0.0
    %3765 = vmatpush1.msra.mxu0 0.0
    %3766 = vmatprep.subr.mxu0 0.0
    %3767 = vmatpush1.msra.mxu0 0.0
    %3768 = vmatprep.subr.mxu0 0.0
    %3769 = vmatpush1.msra.mxu0 0.0
    %3770 = vmatprep.subr.mxu0 0.0
    %3771 = vmatpush1.msra.mxu0 0.0
    %3772 = vmatprep.subr.mxu0 0.0
    %3773 = vmatpush1.msra.mxu0 %v3737
    %3774 = vmatprep.subr.mxu0 0.0
    %3775 = vmatpush2.msra.mxu0 0.0
    %3776 = vmatprep.subr.mxu0 0.0
    %3777 = vmatpush2.msra.mxu0 0.0
    %3778 = vmatprep.subr.mxu0 0.0
    %3779 = vmatpush2.msra.mxu0 0.0
    %3780 = vmatprep.subr.mxu0 0.0
    %3781 = vmatpush2.msra.mxu0 0.0
    %3782 = vmatprep.subr.mxu0 0.0
    %3783 = vmatpush2.msra.mxu0 0.0
    %3784 = vmatprep.subr.mxu0 0.0
    %3785 = vmatpush2.msra.mxu0 0.0
    %3786 = vmatprep.subr.mxu0 0.0
    %3787 = vmatpush2.msra.mxu0 0.0
    %3788 = vmatprep.subr.mxu0 0.0
    %3789 = vmatpush2.msra.mxu0 0.0
    %3790 = vmatprep.subr.mxu0 0.0
    %3791 = vmatpush2.msra.mxu0 0.0
    %3792 = vmatprep.subr.mxu0 0.0
    %3793 = vmatpush2.msra.mxu0 0.0
    %3794 = vmatprep.subr.mxu0 0.0
    %3795 = vmatpush2.msra.mxu0 0.0
    %3796 = vmatprep.subr.mxu0 0.0
    %3797 = vmatpush2.msra.mxu0 0.0
    %3798 = vmatprep.subr.mxu0 0.0
    %3799 = vmatpush2.msra.mxu0 0.0
    %3800 = vmatprep.subr.mxu0 0.0
    %3801 = vmatpush2.msra.mxu0 0.0
    %3802 = vmatprep.subr.mxu0 0.0
    %3803 = vmatpush2.msra.mxu0 0.0
    %3804 = vmatprep.subr.mxu0 0.0
    %3805 = vmatpush2.msra.mxu0 0.0
    %3806 = vmatprep.mubr.f32.mxu0 0.0
    %3807 = vmatmul.mubr.f32.gmra.mxu0 %v3740
    %v3808 = vpop.f32.mrf.mxu0
    %v3809 = vadd.f32 %v3580, %v3808
    %v3810 = vpop.f32.mrf.mxu0
    %3811 = vdwg.mxu0
    %3813 = vrot.lane.b32.xlu0 %v2635, 112
    %v3814 = vpop.permute.xlu0 %3813
    %v3817 = vsel %vm510, %v3561, 0
    %3819 = vmatprep.subr.mxu0 0.0
    %3820 = vmatpush1.msra.mxu0 0.0
    %3821 = vmatprep.subr.mxu0 0.0
    %3822 = vmatpush1.msra.mxu0 0.0
    %3823 = vmatprep.subr.mxu0 0.0
    %3824 = vmatpush1.msra.mxu0 0.0
    %3825 = vmatprep.subr.mxu0 0.0
    %3826 = vmatpush1.msra.mxu0 0.0
    %3827 = vmatprep.subr.mxu0 0.0
    %3828 = vmatpush1.msra.mxu0 0.0
    %3829 = vmatprep.subr.mxu0 0.0
    %3830 = vmatpush1.msra.mxu0 0.0
    %3831 = vmatprep.subr.mxu0 0.0
    %3832 = vmatpush1.msra.mxu0 0.0
    %3833 = vmatprep.subr.mxu0 0.0
    %3834 = vmatpush1.msra.mxu0 0.0
    %3835 = vmatprep.subr.mxu0 0.0
    %3836 = vmatpush1.msra.mxu0 0.0
    %3837 = vmatprep.subr.mxu0 0.0
    %3838 = vmatpush1.msra.mxu0 0.0
    %3839 = vmatprep.subr.mxu0 0.0
    %3840 = vmatpush1.msra.mxu0 0.0
    %3841 = vmatprep.subr.mxu0 0.0
    %3842 = vmatpush1.msra.mxu0 0.0
    %3843 = vmatprep.subr.mxu0 0.0
    %3844 = vmatpush1.msra.mxu0 0.0
    %3845 = vmatprep.subr.mxu0 0.0
    %3846 = vmatpush1.msra.mxu0 0.0
    %3847 = vmatprep.subr.mxu0 0.0
    %3848 = vmatpush1.msra.mxu0 0.0
    %3849 = vmatprep.subr.mxu0 0.0
    %3850 = vmatpush1.msra.mxu0 %v3814
    %3851 = vmatprep.subr.mxu0 0.0
    %3852 = vmatpush2.msra.mxu0 0.0
    %3853 = vmatprep.subr.mxu0 0.0
    %3854 = vmatpush2.msra.mxu0 0.0
    %3855 = vmatprep.subr.mxu0 0.0
    %3856 = vmatpush2.msra.mxu0 0.0
    %3857 = vmatprep.subr.mxu0 0.0
    %3858 = vmatpush2.msra.mxu0 0.0
    %3859 = vmatprep.subr.mxu0 0.0
    %3860 = vmatpush2.msra.mxu0 0.0
    %3861 = vmatprep.subr.mxu0 0.0
    %3862 = vmatpush2.msra.mxu0 0.0
    %3863 = vmatprep.subr.mxu0 0.0
    %3864 = vmatpush2.msra.mxu0 0.0
    %3865 = vmatprep.subr.mxu0 0.0
    %3866 = vmatpush2.msra.mxu0 0.0
    %3867 = vmatprep.subr.mxu0 0.0
    %3868 = vmatpush2.msra.mxu0 0.0
    %3869 = vmatprep.subr.mxu0 0.0
    %3870 = vmatpush2.msra.mxu0 0.0
    %3871 = vmatprep.subr.mxu0 0.0
    %3872 = vmatpush2.msra.mxu0 0.0
    %3873 = vmatprep.subr.mxu0 0.0
    %3874 = vmatpush2.msra.mxu0 0.0
    %3875 = vmatprep.subr.mxu0 0.0
    %3876 = vmatpush2.msra.mxu0 0.0
    %3877 = vmatprep.subr.mxu0 0.0
    %3878 = vmatpush2.msra.mxu0 0.0
    %3879 = vmatprep.subr.mxu0 0.0
    %3880 = vmatpush2.msra.mxu0 0.0
    %3881 = vmatprep.subr.mxu0 0.0
    %3882 = vmatpush2.msra.mxu0 0.0
    %3883 = vmatprep.mubr.f32.mxu0 0.0
    %3884 = vmatmul.mubr.f32.gmra.mxu0 %v3817
    %v3885 = vpop.f32.mrf.mxu0
    %v3886 = vadd.f32 %v3580, %v3885
    %v3887 = vpop.f32.mrf.mxu0
    %3888 = vdwg.mxu0
    %v3889 = vsel %vm3083, %v3655, -inf
    %3890 = vmax.xlane.f32.xlu0 %v3889
    %v3891 = vpop.xlane.xlu0 %3890
    %v3892 = vsel %vm3083, %v3732, -inf
    %3893 = vmax.xlane.f32.xlu0 %v3892
    %v3894 = vpop.xlane.xlu0 %3893
    %v3895 = vsel %vm3083, %v3809, -inf
    %3896 = vmax.xlane.f32.xlu0 %v3895
    %v3897 = vpop.xlane.xlu0 %3896
    %v3898 = vsel %vm3083, %v3886, -inf
    %3899 = vmax.xlane.f32.xlu0 %v3898
    %v3900 = vpop.xlane.xlu0 %3899
    %v3901 = vsub.f32 %v3655, %v3891
    %v3902 = vsub.f32 %v3732, %v3894
    %v3903 = vsub.f32 %v3809, %v3897
    %v3904 = vsub.f32 %v3886, %v3900
    %v3905 = vmul.f32 %v3901, 1.442695
    %v3906 = vpow.pop %v3905
    %v3907 = vmul.f32 %v3902, 1.442695
    %v3908 = vpow.pop %v3907
    %v3909 = vmul.f32 %v3903, 1.442695
    %v3910 = vpow.pop %v3909
    %v3911 = vmul.f32 %v3904, 1.442695
    %v3912 = vpow.pop %v3911
    %v3913 = vsel %vm3083, %v3906, 0.0
    %3914 = vadd.xlane.f32.xlu0 %v3913
    %v3915 = vpop.xlane.xlu0 %3914
    %v3916 = vsel %vm3083, %v3908, 0.0
    %3917 = vadd.xlane.f32.xlu0 %v3916
    %v3918 = vpop.xlane.xlu0 %3917
    %v3919 = vsel %vm3083, %v3910, 0.0
    %3920 = vadd.xlane.f32.xlu0 %v3919
    %v3921 = vpop.xlane.xlu0 %3920
    %v3922 = vsel %vm3083, %v3912, 0.0
    %3923 = vadd.xlane.f32.xlu0 %v3922
    %v3924 = vpop.xlane.xlu0 %3923
    %v3925 = vrcp.pop %v3915
    %v3926 = vrcp.pop %v3918
    %v3927 = vrcp.pop %v3921
    %v3928 = vrcp.pop %v3924
    %v3929 = vmul.f32 %v3906, %v3925
    %v3930 = vmul.f32 %v3908, %v3926
    %v3931 = vmul.f32 %v3910, %v3927
    %v3932 = vmul.f32 %v3912, %v3928
    %3933 = vrot.lane.b32.xlu0 %v2640, 112
    %v3934 = vpop.permute.xlu0 %3933
    %v3936 = vsel %vm3083, %v3929, 0
    %v3938 = vsel %vm3083, %v3934, 0
    %3940 = vmatprep.subr.mxu0 0.0
    %3941 = vmatpush1.xpose.msra.mxu0 0.0
    %3942 = vmatprep.subr.mxu0 0.0
    %3943 = vmatpush1.xpose.msra.mxu0 0.0
    %3944 = vmatprep.subr.mxu0 0.0
    %3945 = vmatpush1.xpose.msra.mxu0 0.0
    %3946 = vmatprep.subr.mxu0 0.0
    %3947 = vmatpush1.xpose.msra.mxu0 0.0
    %3948 = vmatprep.subr.mxu0 0.0
    %3949 = vmatpush1.xpose.msra.mxu0 0.0
    %3950 = vmatprep.subr.mxu0 0.0
    %3951 = vmatpush1.xpose.msra.mxu0 0.0
    %3952 = vmatprep.subr.mxu0 0.0
    %3953 = vmatpush1.xpose.msra.mxu0 0.0
    %3954 = vmatprep.subr.mxu0 0.0
    %3955 = vmatpush1.xpose.msra.mxu0 0.0
    %3956 = vmatprep.subr.mxu0 0.0
    %3957 = vmatpush1.xpose.msra.mxu0 0.0
    %3958 = vmatprep.subr.mxu0 0.0
    %3959 = vmatpush1.xpose.msra.mxu0 0.0
    %3960 = vmatprep.subr.mxu0 0.0
    %3961 = vmatpush1.xpose.msra.mxu0 0.0
    %3962 = vmatprep.subr.mxu0 0.0
    %3963 = vmatpush1.xpose.msra.mxu0 0.0
    %3964 = vmatprep.subr.mxu0 0.0
    %3965 = vmatpush1.xpose.msra.mxu0 0.0
    %3966 = vmatprep.subr.mxu0 0.0
    %3967 = vmatpush1.xpose.msra.mxu0 0.0
    %3968 = vmatprep.subr.mxu0 0.0
    %3969 = vmatpush1.xpose.msra.mxu0 0.0
    %3970 = vmatprep.subr.mxu0 0.0
    %3971 = vmatpush1.xpose.msra.mxu0 %v3938
    %3972 = vmatprep.subr.mxu0 0.0
    %3973 = vmatpush2.xpose.msra.mxu0 0.0
    %3974 = vmatprep.subr.mxu0 0.0
    %3975 = vmatpush2.xpose.msra.mxu0 0.0
    %3976 = vmatprep.subr.mxu0 0.0
    %3977 = vmatpush2.xpose.msra.mxu0 0.0
    %3978 = vmatprep.subr.mxu0 0.0
    %3979 = vmatpush2.xpose.msra.mxu0 0.0
    %3980 = vmatprep.subr.mxu0 0.0
    %3981 = vmatpush2.xpose.msra.mxu0 0.0
    %3982 = vmatprep.subr.mxu0 0.0
    %3983 = vmatpush2.xpose.msra.mxu0 0.0
    %3984 = vmatprep.subr.mxu0 0.0
    %3985 = vmatpush2.xpose.msra.mxu0 0.0
    %3986 = vmatprep.subr.mxu0 0.0
    %3987 = vmatpush2.xpose.msra.mxu0 0.0
    %3988 = vmatprep.subr.mxu0 0.0
    %3989 = vmatpush2.xpose.msra.mxu0 0.0
    %3990 = vmatprep.subr.mxu0 0.0
    %3991 = vmatpush2.xpose.msra.mxu0 0.0
    %3992 = vmatprep.subr.mxu0 0.0
    %3993 = vmatpush2.xpose.msra.mxu0 0.0
    %3994 = vmatprep.subr.mxu0 0.0
    %3995 = vmatpush2.xpose.msra.mxu0 0.0
    %3996 = vmatprep.subr.mxu0 0.0
    %3997 = vmatpush2.xpose.msra.mxu0 0.0
    %3998 = vmatprep.subr.mxu0 0.0
    %3999 = vmatpush2.xpose.msra.mxu0 0.0
    %4000 = vmatprep.subr.mxu0 0.0
    %4001 = vmatpush2.xpose.msra.mxu0 0.0
    %4002 = vmatprep.subr.mxu0 0.0
    %4003 = vmatpush2.xpose.msra.mxu0 0.0
    %4004 = vmatprep.mubr.f32.mxu0 0.0
    %4005 = vmatmul.mubr.f32.gmra.mxu0 %v3936
    %v4006 = vpop.f32.mrf.mxu0
    %v4007 = vadd.f32 0.0, %v4006
    %v4008 = vpop.f32.mrf.mxu0
    %4009 = vdwg.mxu0
    %4010 = vrot.lane.b32.xlu0 %v2645, 112
    %v4011 = vpop.permute.xlu0 %4010
    %v4013 = vsel %vm3083, %v3930, 0
    %v4015 = vsel %vm3083, %v4011, 0
    %4017 = vmatprep.subr.mxu0 0.0
    %4018 = vmatpush1.xpose.msra.mxu0 0.0
    %4019 = vmatprep.subr.mxu0 0.0
    %4020 = vmatpush1.xpose.msra.mxu0 0.0
    %4021 = vmatprep.subr.mxu0 0.0
    %4022 = vmatpush1.xpose.msra.mxu0 0.0
    %4023 = vmatprep.subr.mxu0 0.0
    %4024 = vmatpush1.xpose.msra.mxu0 0.0
    %4025 = vmatprep.subr.mxu0 0.0
    %4026 = vmatpush1.xpose.msra.mxu0 0.0
    %4027 = vmatprep.subr.mxu0 0.0
    %4028 = vmatpush1.xpose.msra.mxu0 0.0
    %4029 = vmatprep.subr.mxu0 0.0
    %4030 = vmatpush1.xpose.msra.mxu0 0.0
    %4031 = vmatprep.subr.mxu0 0.0
    %4032 = vmatpush1.xpose.msra.mxu0 0.0
    %4033 = vmatprep.subr.mxu0 0.0
    %4034 = vmatpush1.xpose.msra.mxu0 0.0
    %4035 = vmatprep.subr.mxu0 0.0
    %4036 = vmatpush1.xpose.msra.mxu0 0.0
    %4037 = vmatprep.subr.mxu0 0.0
    %4038 = vmatpush1.xpose.msra.mxu0 0.0
    %4039 = vmatprep.subr.mxu0 0.0
    %4040 = vmatpush1.xpose.msra.mxu0 0.0
    %4041 = vmatprep.subr.mxu0 0.0
    %4042 = vmatpush1.xpose.msra.mxu0 0.0
    %4043 = vmatprep.subr.mxu0 0.0
    %4044 = vmatpush1.xpose.msra.mxu0 0.0
    %4045 = vmatprep.subr.mxu0 0.0
    %4046 = vmatpush1.xpose.msra.mxu0 0.0
    %4047 = vmatprep.subr.mxu0 0.0
    %4048 = vmatpush1.xpose.msra.mxu0 %v4015
    %4049 = vmatprep.subr.mxu0 0.0
    %4050 = vmatpush2.xpose.msra.mxu0 0.0
    %4051 = vmatprep.subr.mxu0 0.0
    %4052 = vmatpush2.xpose.msra.mxu0 0.0
    %4053 = vmatprep.subr.mxu0 0.0
    %4054 = vmatpush2.xpose.msra.mxu0 0.0
    %4055 = vmatprep.subr.mxu0 0.0
    %4056 = vmatpush2.xpose.msra.mxu0 0.0
    %4057 = vmatprep.subr.mxu0 0.0
    %4058 = vmatpush2.xpose.msra.mxu0 0.0
    %4059 = vmatprep.subr.mxu0 0.0
    %4060 = vmatpush2.xpose.msra.mxu0 0.0
    %4061 = vmatprep.subr.mxu0 0.0
    %4062 = vmatpush2.xpose.msra.mxu0 0.0
    %4063 = vmatprep.subr.mxu0 0.0
    %4064 = vmatpush2.xpose.msra.mxu0 0.0
    %4065 = vmatprep.subr.mxu0 0.0
    %4066 = vmatpush2.xpose.msra.mxu0 0.0
    %4067 = vmatprep.subr.mxu0 0.0
    %4068 = vmatpush2.xpose.msra.mxu0 0.0
    %4069 = vmatprep.subr.mxu0 0.0
    %4070 = vmatpush2.xpose.msra.mxu0 0.0
    %4071 = vmatprep.subr.mxu0 0.0
    %4072 = vmatpush2.xpose.msra.mxu0 0.0
    %4073 = vmatprep.subr.mxu0 0.0
    %4074 = vmatpush2.xpose.msra.mxu0 0.0
    %4075 = vmatprep.subr.mxu0 0.0
    %4076 = vmatpush2.xpose.msra.mxu0 0.0
    %4077 = vmatprep.subr.mxu0 0.0
    %4078 = vmatpush2.xpose.msra.mxu0 0.0
    %4079 = vmatprep.subr.mxu0 0.0
    %4080 = vmatpush2.xpose.msra.mxu0 0.0
    %4081 = vmatprep.mubr.f32.mxu0 0.0
    %4082 = vmatmul.mubr.f32.gmra.mxu0 %v4013
    %v4083 = vpop.f32.mrf.mxu0
    %v4084 = vadd.f32 0.0, %v4083
    %v4085 = vpop.f32.mrf.mxu0
    %4086 = vdwg.mxu0
    %4087 = vrot.lane.b32.xlu0 %v2650, 112
    %v4088 = vpop.permute.xlu0 %4087
    %v4090 = vsel %vm3083, %v3931, 0
    %v4092 = vsel %vm3083, %v4088, 0
    %4094 = vmatprep.subr.mxu0 0.0
    %4095 = vmatpush1.xpose.msra.mxu0 0.0
    %4096 = vmatprep.subr.mxu0 0.0
    %4097 = vmatpush1.xpose.msra.mxu0 0.0
    %4098 = vmatprep.subr.mxu0 0.0
    %4099 = vmatpush1.xpose.msra.mxu0 0.0
    %4100 = vmatprep.subr.mxu0 0.0
    %4101 = vmatpush1.xpose.msra.mxu0 0.0
    %4102 = vmatprep.subr.mxu0 0.0
    %4103 = vmatpush1.xpose.msra.mxu0 0.0
    %4104 = vmatprep.subr.mxu0 0.0
    %4105 = vmatpush1.xpose.msra.mxu0 0.0
    %4106 = vmatprep.subr.mxu0 0.0
    %4107 = vmatpush1.xpose.msra.mxu0 0.0
    %4108 = vmatprep.subr.mxu0 0.0
    %4109 = vmatpush1.xpose.msra.mxu0 0.0
    %4110 = vmatprep.subr.mxu0 0.0
    %4111 = vmatpush1.xpose.msra.mxu0 0.0
    %4112 = vmatprep.subr.mxu0 0.0
    %4113 = vmatpush1.xpose.msra.mxu0 0.0
    %4114 = vmatprep.subr.mxu0 0.0
    %4115 = vmatpush1.xpose.msra.mxu0 0.0
    %4116 = vmatprep.subr.mxu0 0.0
    %4117 = vmatpush1.xpose.msra.mxu0 0.0
    %4118 = vmatprep.subr.mxu0 0.0
    %4119 = vmatpush1.xpose.msra.mxu0 0.0
    %4120 = vmatprep.subr.mxu0 0.0
    %4121 = vmatpush1.xpose.msra.mxu0 0.0
    %4122 = vmatprep.subr.mxu0 0.0
    %4123 = vmatpush1.xpose.msra.mxu0 0.0
    %4124 = vmatprep.subr.mxu0 0.0
    %4125 = vmatpush1.xpose.msra.mxu0 %v4092
    %4126 = vmatprep.subr.mxu0 0.0
    %4127 = vmatpush2.xpose.msra.mxu0 0.0
    %4128 = vmatprep.subr.mxu0 0.0
    %4129 = vmatpush2.xpose.msra.mxu0 0.0
    %4130 = vmatprep.subr.mxu0 0.0
    %4131 = vmatpush2.xpose.msra.mxu0 0.0
    %4132 = vmatprep.subr.mxu0 0.0
    %4133 = vmatpush2.xpose.msra.mxu0 0.0
    %4134 = vmatprep.subr.mxu0 0.0
    %4135 = vmatpush2.xpose.msra.mxu0 0.0
    %4136 = vmatprep.subr.mxu0 0.0
    %4137 = vmatpush2.xpose.msra.mxu0 0.0
    %4138 = vmatprep.subr.mxu0 0.0
    %4139 = vmatpush2.xpose.msra.mxu0 0.0
    %4140 = vmatprep.subr.mxu0 0.0
    %4141 = vmatpush2.xpose.msra.mxu0 0.0
    %4142 = vmatprep.subr.mxu0 0.0
    %4143 = vmatpush2.xpose.msra.mxu0 0.0
    %4144 = vmatprep.subr.mxu0 0.0
    %4145 = vmatpush2.xpose.msra.mxu0 0.0
    %4146 = vmatprep.subr.mxu0 0.0
    %4147 = vmatpush2.xpose.msra.mxu0 0.0
    %4148 = vmatprep.subr.mxu0 0.0
    %4149 = vmatpush2.xpose.msra.mxu0 0.0
    %4150 = vmatprep.subr.mxu0 0.0
    %4151 = vmatpush2.xpose.msra.mxu0 0.0
    %4152 = vmatprep.subr.mxu0 0.0
    %4153 = vmatpush2.xpose.msra.mxu0 0.0
    %4154 = vmatprep.subr.mxu0 0.0
    %4155 = vmatpush2.xpose.msra.mxu0 0.0
    %4156 = vmatprep.subr.mxu0 0.0
    %4157 = vmatpush2.xpose.msra.mxu0 0.0
    %4158 = vmatprep.mubr.f32.mxu0 0.0
    %4159 = vmatmul.mubr.f32.gmra.mxu0 %v4090
    %v4160 = vpop.f32.mrf.mxu0
    %v4161 = vadd.f32 0.0, %v4160
    %v4162 = vpop.f32.mrf.mxu0
    %4163 = vdwg.mxu0
    %4164 = vrot.lane.b32.xlu0 %v2655, 112
    %v4165 = vpop.permute.xlu0 %4164
    %v4167 = vsel %vm3083, %v3932, 0
    %v4169 = vsel %vm3083, %v4165, 0
    %4171 = vmatprep.subr.mxu0 0.0
    %4172 = vmatpush1.xpose.msra.mxu0 0.0
    %4173 = vmatprep.subr.mxu0 0.0
    %4174 = vmatpush1.xpose.msra.mxu0 0.0
    %4175 = vmatprep.subr.mxu0 0.0
    %4176 = vmatpush1.xpose.msra.mxu0 0.0
    %4177 = vmatprep.subr.mxu0 0.0
    %4178 = vmatpush1.xpose.msra.mxu0 0.0
    %4179 = vmatprep.subr.mxu0 0.0
    %4180 = vmatpush1.xpose.msra.mxu0 0.0
    %4181 = vmatprep.subr.mxu0 0.0
    %4182 = vmatpush1.xpose.msra.mxu0 0.0
    %4183 = vmatprep.subr.mxu0 0.0
    %4184 = vmatpush1.xpose.msra.mxu0 0.0
    %4185 = vmatprep.subr.mxu0 0.0
    %4186 = vmatpush1.xpose.msra.mxu0 0.0
    %4187 = vmatprep.subr.mxu0 0.0
    %4188 = vmatpush1.xpose.msra.mxu0 0.0
    %4189 = vmatprep.subr.mxu0 0.0
    %4190 = vmatpush1.xpose.msra.mxu0 0.0
    %4191 = vmatprep.subr.mxu0 0.0
    %4192 = vmatpush1.xpose.msra.mxu0 0.0
    %4193 = vmatprep.subr.mxu0 0.0
    %4194 = vmatpush1.xpose.msra.mxu0 0.0
    %4195 = vmatprep.subr.mxu0 0.0
    %4196 = vmatpush1.xpose.msra.mxu0 0.0
    %4197 = vmatprep.subr.mxu0 0.0
    %4198 = vmatpush1.xpose.msra.mxu0 0.0
    %4199 = vmatprep.subr.mxu0 0.0
    %4200 = vmatpush1.xpose.msra.mxu0 0.0
    %4201 = vmatprep.subr.mxu0 0.0
    %4202 = vmatpush1.xpose.msra.mxu0 %v4169
    %4203 = vmatprep.subr.mxu0 0.0
    %4204 = vmatpush2.xpose.msra.mxu0 0.0
    %4205 = vmatprep.subr.mxu0 0.0
    %4206 = vmatpush2.xpose.msra.mxu0 0.0
    %4207 = vmatprep.subr.mxu0 0.0
    %4208 = vmatpush2.xpose.msra.mxu0 0.0
    %4209 = vmatprep.subr.mxu0 0.0
    %4210 = vmatpush2.xpose.msra.mxu0 0.0
    %4211 = vmatprep.subr.mxu0 0.0
    %4212 = vmatpush2.xpose.msra.mxu0 0.0
    %4213 = vmatprep.subr.mxu0 0.0
    %4214 = vmatpush2.xpose.msra.mxu0 0.0
    %4215 = vmatprep.subr.mxu0 0.0
    %4216 = vmatpush2.xpose.msra.mxu0 0.0
    %4217 = vmatprep.subr.mxu0 0.0
    %4218 = vmatpush2.xpose.msra.mxu0 0.0
    %4219 = vmatprep.subr.mxu0 0.0
    %4220 = vmatpush2.xpose.msra.mxu0 0.0
    %4221 = vmatprep.subr.mxu0 0.0
    %4222 = vmatpush2.xpose.msra.mxu0 0.0
    %4223 = vmatprep.subr.mxu0 0.0
    %4224 = vmatpush2.xpose.msra.mxu0 0.0
    %4225 = vmatprep.subr.mxu0 0.0
    %4226 = vmatpush2.xpose.msra.mxu0 0.0
    %4227 = vmatprep.subr.mxu0 0.0
    %4228 = vmatpush2.xpose.msra.mxu0 0.0
    %4229 = vmatprep.subr.mxu0 0.0
    %4230 = vmatpush2.xpose.msra.mxu0 0.0
    %4231 = vmatprep.subr.mxu0 0.0
    %4232 = vmatpush2.xpose.msra.mxu0 0.0
    %4233 = vmatprep.subr.mxu0 0.0
    %4234 = vmatpush2.xpose.msra.mxu0 0.0
    %4235 = vmatprep.mubr.f32.mxu0 0.0
    %4236 = vmatmul.mubr.f32.gmra.mxu0 %v4167
    %v4237 = vpop.f32.mrf.mxu0
    %v4238 = vadd.f32 0.0, %v4237
    %v4239 = vpop.f32.mrf.mxu0
    %4240 = vdwg.mxu0
    %v4242 = vsel %vm510, %v3201, 0
    %v4245 = vsel %vm510, %v4007, 0
    %4247 = vmatprep.subr.mxu0 0.0
    %4248 = vmatpush1.msra.mxu0 0.0
    %4249 = vmatprep.subr.mxu0 0.0
    %4250 = vmatpush1.msra.mxu0 0.0
    %4251 = vmatprep.subr.mxu0 0.0
    %4252 = vmatpush1.msra.mxu0 0.0
    %4253 = vmatprep.subr.mxu0 0.0
    %4254 = vmatpush1.msra.mxu0 0.0
    %4255 = vmatprep.subr.mxu0 0.0
    %4256 = vmatpush1.msra.mxu0 0.0
    %4257 = vmatprep.subr.mxu0 0.0
    %4258 = vmatpush1.msra.mxu0 0.0
    %4259 = vmatprep.subr.mxu0 0.0
    %4260 = vmatpush1.msra.mxu0 0.0
    %4261 = vmatprep.subr.mxu0 0.0
    %4262 = vmatpush1.msra.mxu0 0.0
    %4263 = vmatprep.subr.mxu0 0.0
    %4264 = vmatpush1.msra.mxu0 0.0
    %4265 = vmatprep.subr.mxu0 0.0
    %4266 = vmatpush1.msra.mxu0 0.0
    %4267 = vmatprep.subr.mxu0 0.0
    %4268 = vmatpush1.msra.mxu0 0.0
    %4269 = vmatprep.subr.mxu0 0.0
    %4270 = vmatpush1.msra.mxu0 0.0
    %4271 = vmatprep.subr.mxu0 0.0
    %4272 = vmatpush1.msra.mxu0 0.0
    %4273 = vmatprep.subr.mxu0 0.0
    %4274 = vmatpush1.msra.mxu0 0.0
    %4275 = vmatprep.subr.mxu0 0.0
    %4276 = vmatpush1.msra.mxu0 0.0
    %4277 = vmatprep.subr.mxu0 0.0
    %4278 = vmatpush1.msra.mxu0 %v94
    %4279 = vmatprep.subr.mxu0 0.0
    %4280 = vmatpush2.msra.mxu0 0.0
    %4281 = vmatprep.subr.mxu0 0.0
    %4282 = vmatpush2.msra.mxu0 0.0
    %4283 = vmatprep.subr.mxu0 0.0
    %4284 = vmatpush2.msra.mxu0 0.0
    %4285 = vmatprep.subr.mxu0 0.0
    %4286 = vmatpush2.msra.mxu0 0.0
    %4287 = vmatprep.subr.mxu0 0.0
    %4288 = vmatpush2.msra.mxu0 0.0
    %4289 = vmatprep.subr.mxu0 0.0
    %4290 = vmatpush2.msra.mxu0 0.0
    %4291 = vmatprep.subr.mxu0 0.0
    %4292 = vmatpush2.msra.mxu0 0.0
    %4293 = vmatprep.subr.mxu0 0.0
    %4294 = vmatpush2.msra.mxu0 0.0
    %4295 = vmatprep.subr.mxu0 0.0
    %4296 = vmatpush2.msra.mxu0 0.0
    %4297 = vmatprep.subr.mxu0 0.0
    %4298 = vmatpush2.msra.mxu0 0.0
    %4299 = vmatprep.subr.mxu0 0.0
    %4300 = vmatpush2.msra.mxu0 0.0
    %4301 = vmatprep.subr.mxu0 0.0
    %4302 = vmatpush2.msra.mxu0 0.0
    %4303 = vmatprep.subr.mxu0 0.0
    %4304 = vmatpush2.msra.mxu0 0.0
    %4305 = vmatprep.subr.mxu0 0.0
    %4306 = vmatpush2.msra.mxu0 0.0
    %4307 = vmatprep.subr.mxu0 0.0
    %4308 = vmatpush2.msra.mxu0 0.0
    %4309 = vmatprep.subr.mxu0 0.0
    %4310 = vmatpush2.msra.mxu0 0.0
    %4311 = vmatprep.mubr.f32.mxu0 0.0
    %4312 = vmatmul.mubr.f32.gmra.mxu0 %v4242
    %v4313 = vpop.f32.mrf.mxu0
    %v4314 = vadd.f32 0.0, %v4313
    %v4315 = vpop.f32.mrf.mxu0
    %4316 = vmatprep.mubr.f32.mxu0 0.0
    %4317 = vmatmul.mubr.f32.gmra.mxu0 %v4245
    %v4318 = vpop.f32.mrf.mxu0
    %v4319 = vadd.f32 0.0, %v4318
    %v4320 = vpop.f32.mrf.mxu0
    %4321 = vdwg.mxu0
    %v4323 = vsel %vm510, %v3277, 0
    %v4326 = vsel %vm510, %v4084, 0
    %4328 = vmatprep.subr.mxu0 0.0
    %4329 = vmatpush1.msra.mxu0 0.0
    %4330 = vmatprep.subr.mxu0 0.0
    %4331 = vmatpush1.msra.mxu0 0.0
    %4332 = vmatprep.subr.mxu0 0.0
    %4333 = vmatpush1.msra.mxu0 0.0
    %4334 = vmatprep.subr.mxu0 0.0
    %4335 = vmatpush1.msra.mxu0 0.0
    %4336 = vmatprep.subr.mxu0 0.0
    %4337 = vmatpush1.msra.mxu0 0.0
    %4338 = vmatprep.subr.mxu0 0.0
    %4339 = vmatpush1.msra.mxu0 0.0
    %4340 = vmatprep.subr.mxu0 0.0
    %4341 = vmatpush1.msra.mxu0 0.0
    %4342 = vmatprep.subr.mxu0 0.0
    %4343 = vmatpush1.msra.mxu0 0.0
    %4344 = vmatprep.subr.mxu0 0.0
    %4345 = vmatpush1.msra.mxu0 0.0
    %4346 = vmatprep.subr.mxu0 0.0
    %4347 = vmatpush1.msra.mxu0 0.0
    %4348 = vmatprep.subr.mxu0 0.0
    %4349 = vmatpush1.msra.mxu0 0.0
    %4350 = vmatprep.subr.mxu0 0.0
    %4351 = vmatpush1.msra.mxu0 0.0
    %4352 = vmatprep.subr.mxu0 0.0
    %4353 = vmatpush1.msra.mxu0 0.0
    %4354 = vmatprep.subr.mxu0 0.0
    %4355 = vmatpush1.msra.mxu0 0.0
    %4356 = vmatprep.subr.mxu0 0.0
    %4357 = vmatpush1.msra.mxu0 0.0
    %4358 = vmatprep.subr.mxu0 0.0
    %4359 = vmatpush1.msra.mxu0 %v95
    %4360 = vmatprep.subr.mxu0 0.0
    %4361 = vmatpush2.msra.mxu0 0.0
    %4362 = vmatprep.subr.mxu0 0.0
    %4363 = vmatpush2.msra.mxu0 0.0
    %4364 = vmatprep.subr.mxu0 0.0
    %4365 = vmatpush2.msra.mxu0 0.0
    %4366 = vmatprep.subr.mxu0 0.0
    %4367 = vmatpush2.msra.mxu0 0.0
    %4368 = vmatprep.subr.mxu0 0.0
    %4369 = vmatpush2.msra.mxu0 0.0
    %4370 = vmatprep.subr.mxu0 0.0
    %4371 = vmatpush2.msra.mxu0 0.0
    %4372 = vmatprep.subr.mxu0 0.0
    %4373 = vmatpush2.msra.mxu0 0.0
    %4374 = vmatprep.subr.mxu0 0.0
    %4375 = vmatpush2.msra.mxu0 0.0
    %4376 = vmatprep.subr.mxu0 0.0
    %4377 = vmatpush2.msra.mxu0 0.0
    %4378 = vmatprep.subr.mxu0 0.0
    %4379 = vmatpush2.msra.mxu0 0.0
    %4380 = vmatprep.subr.mxu0 0.0
    %4381 = vmatpush2.msra.mxu0 0.0
    %4382 = vmatprep.subr.mxu0 0.0
    %4383 = vmatpush2.msra.mxu0 0.0
    %4384 = vmatprep.subr.mxu0 0.0
    %4385 = vmatpush2.msra.mxu0 0.0
    %4386 = vmatprep.subr.mxu0 0.0
    %4387 = vmatpush2.msra.mxu0 0.0
    %4388 = vmatprep.subr.mxu0 0.0
    %4389 = vmatpush2.msra.mxu0 0.0
    %4390 = vmatprep.subr.mxu0 0.0
    %4391 = vmatpush2.msra.mxu0 0.0
    %4392 = vmatprep.mubr.f32.mxu0 0.0
    %4393 = vmatmul.mubr.f32.gmra.mxu0 %v4323
    %v4394 = vpop.f32.mrf.mxu0
    %v4395 = vadd.f32 0.0, %v4394
    %v4396 = vpop.f32.mrf.mxu0
    %4397 = vmatprep.mubr.f32.mxu0 0.0
    %4398 = vmatmul.mubr.f32.gmra.mxu0 %v4326
    %v4399 = vpop.f32.mrf.mxu0
    %v4400 = vadd.f32 0.0, %v4399
    %v4401 = vpop.f32.mrf.mxu0
    %4402 = vdwg.mxu0
    %v4404 = vsel %vm510, %v3353, 0
    %v4407 = vsel %vm510, %v4161, 0
    %4409 = vmatprep.subr.mxu0 0.0
    %4410 = vmatpush1.msra.mxu0 0.0
    %4411 = vmatprep.subr.mxu0 0.0
    %4412 = vmatpush1.msra.mxu0 0.0
    %4413 = vmatprep.subr.mxu0 0.0
    %4414 = vmatpush1.msra.mxu0 0.0
    %4415 = vmatprep.subr.mxu0 0.0
    %4416 = vmatpush1.msra.mxu0 0.0
    %4417 = vmatprep.subr.mxu0 0.0
    %4418 = vmatpush1.msra.mxu0 0.0
    %4419 = vmatprep.subr.mxu0 0.0
    %4420 = vmatpush1.msra.mxu0 0.0
    %4421 = vmatprep.subr.mxu0 0.0
    %4422 = vmatpush1.msra.mxu0 0.0
    %4423 = vmatprep.subr.mxu0 0.0
    %4424 = vmatpush1.msra.mxu0 0.0
    %4425 = vmatprep.subr.mxu0 0.0
    %4426 = vmatpush1.msra.mxu0 0.0
    %4427 = vmatprep.subr.mxu0 0.0
    %4428 = vmatpush1.msra.mxu0 0.0
    %4429 = vmatprep.subr.mxu0 0.0
    %4430 = vmatpush1.msra.mxu0 0.0
    %4431 = vmatprep.subr.mxu0 0.0
    %4432 = vmatpush1.msra.mxu0 0.0
    %4433 = vmatprep.subr.mxu0 0.0
    %4434 = vmatpush1.msra.mxu0 0.0
    %4435 = vmatprep.subr.mxu0 0.0
    %4436 = vmatpush1.msra.mxu0 0.0
    %4437 = vmatprep.subr.mxu0 0.0
    %4438 = vmatpush1.msra.mxu0 0.0
    %4439 = vmatprep.subr.mxu0 0.0
    %4440 = vmatpush1.msra.mxu0 %v96
    %4441 = vmatprep.subr.mxu0 0.0
    %4442 = vmatpush2.msra.mxu0 0.0
    %4443 = vmatprep.subr.mxu0 0.0
    %4444 = vmatpush2.msra.mxu0 0.0
    %4445 = vmatprep.subr.mxu0 0.0
    %4446 = vmatpush2.msra.mxu0 0.0
    %4447 = vmatprep.subr.mxu0 0.0
    %4448 = vmatpush2.msra.mxu0 0.0
    %4449 = vmatprep.subr.mxu0 0.0
    %4450 = vmatpush2.msra.mxu0 0.0
    %4451 = vmatprep.subr.mxu0 0.0
    %4452 = vmatpush2.msra.mxu0 0.0
    %4453 = vmatprep.subr.mxu0 0.0
    %4454 = vmatpush2.msra.mxu0 0.0
    %4455 = vmatprep.subr.mxu0 0.0
    %4456 = vmatpush2.msra.mxu0 0.0
    %4457 = vmatprep.subr.mxu0 0.0
    %4458 = vmatpush2.msra.mxu0 0.0
    %4459 = vmatprep.subr.mxu0 0.0
    %4460 = vmatpush2.msra.mxu0 0.0
    %4461 = vmatprep.subr.mxu0 0.0
    %4462 = vmatpush2.msra.mxu0 0.0
    %4463 = vmatprep.subr.mxu0 0.0
    %4464 = vmatpush2.msra.mxu0 0.0
    %4465 = vmatprep.subr.mxu0 0.0
    %4466 = vmatpush2.msra.mxu0 0.0
    %4467 = vmatprep.subr.mxu0 0.0
    %4468 = vmatpush2.msra.mxu0 0.0
    %4469 = vmatprep.subr.mxu0 0.0
    %4470 = vmatpush2.msra.mxu0 0.0
    %4471 = vmatprep.subr.mxu0 0.0
    %4472 = vmatpush2.msra.mxu0 0.0
    %4473 = vmatprep.mubr.f32.mxu0 0.0
    %4474 = vmatmul.mubr.f32.gmra.mxu0 %v4404
    %v4475 = vpop.f32.mrf.mxu0
    %v4476 = vadd.f32 0.0, %v4475
    %v4477 = vpop.f32.mrf.mxu0
    %4478 = vmatprep.mubr.f32.mxu0 0.0
    %4479 = vmatmul.mubr.f32.gmra.mxu0 %v4407
    %v4480 = vpop.f32.mrf.mxu0
    %v4481 = vadd.f32 0.0, %v4480
    %v4482 = vpop.f32.mrf.mxu0
    %4483 = vdwg.mxu0
    %v4485 = vsel %vm510, %v3429, 0
    %v4488 = vsel %vm510, %v4238, 0
    %4490 = vmatprep.subr.mxu0 0.0
    %4491 = vmatpush1.msra.mxu0 0.0
    %4492 = vmatprep.subr.mxu0 0.0
    %4493 = vmatpush1.msra.mxu0 0.0
    %4494 = vmatprep.subr.mxu0 0.0
    %4495 = vmatpush1.msra.mxu0 0.0
    %4496 = vmatprep.subr.mxu0 0.0
    %4497 = vmatpush1.msra.mxu0 0.0
    %4498 = vmatprep.subr.mxu0 0.0
    %4499 = vmatpush1.msra.mxu0 0.0
    %4500 = vmatprep.subr.mxu0 0.0
    %4501 = vmatpush1.msra.mxu0 0.0
    %4502 = vmatprep.subr.mxu0 0.0
    %4503 = vmatpush1.msra.mxu0 0.0
    %4504 = vmatprep.subr.mxu0 0.0
    %4505 = vmatpush1.msra.mxu0 0.0
    %4506 = vmatprep.subr.mxu0 0.0
    %4507 = vmatpush1.msra.mxu0 0.0
    %4508 = vmatprep.subr.mxu0 0.0
    %4509 = vmatpush1.msra.mxu0 0.0
    %4510 = vmatprep.subr.mxu0 0.0
    %4511 = vmatpush1.msra.mxu0 0.0
    %4512 = vmatprep.subr.mxu0 0.0
    %4513 = vmatpush1.msra.mxu0 0.0
    %4514 = vmatprep.subr.mxu0 0.0
    %4515 = vmatpush1.msra.mxu0 0.0
    %4516 = vmatprep.subr.mxu0 0.0
    %4517 = vmatpush1.msra.mxu0 0.0
    %4518 = vmatprep.subr.mxu0 0.0
    %4519 = vmatpush1.msra.mxu0 0.0
    %4520 = vmatprep.subr.mxu0 0.0
    %4521 = vmatpush1.msra.mxu0 %v97
    %4522 = vmatprep.subr.mxu0 0.0
    %4523 = vmatpush2.msra.mxu0 0.0
    %4524 = vmatprep.subr.mxu0 0.0
    %4525 = vmatpush2.msra.mxu0 0.0
    %4526 = vmatprep.subr.mxu0 0.0
    %4527 = vmatpush2.msra.mxu0 0.0
    %4528 = vmatprep.subr.mxu0 0.0
    %4529 = vmatpush2.msra.mxu0 0.0
    %4530 = vmatprep.subr.mxu0 0.0
    %4531 = vmatpush2.msra.mxu0 0.0
    %4532 = vmatprep.subr.mxu0 0.0
    %4533 = vmatpush2.msra.mxu0 0.0
    %4534 = vmatprep.subr.mxu0 0.0
    %4535 = vmatpush2.msra.mxu0 0.0
    %4536 = vmatprep.subr.mxu0 0.0
    %4537 = vmatpush2.msra.mxu0 0.0
    %4538 = vmatprep.subr.mxu0 0.0
    %4539 = vmatpush2.msra.mxu0 0.0
    %4540 = vmatprep.subr.mxu0 0.0
    %4541 = vmatpush2.msra.mxu0 0.0
    %4542 = vmatprep.subr.mxu0 0.0
    %4543 = vmatpush2.msra.mxu0 0.0
    %4544 = vmatprep.subr.mxu0 0.0
    %4545 = vmatpush2.msra.mxu0 0.0
    %4546 = vmatprep.subr.mxu0 0.0
    %4547 = vmatpush2.msra.mxu0 0.0
    %4548 = vmatprep.subr.mxu0 0.0
    %4549 = vmatpush2.msra.mxu0 0.0
    %4550 = vmatprep.subr.mxu0 0.0
    %4551 = vmatpush2.msra.mxu0 0.0
    %4552 = vmatprep.subr.mxu0 0.0
    %4553 = vmatpush2.msra.mxu0 0.0
    %4554 = vmatprep.mubr.f32.mxu0 0.0
    %4555 = vmatmul.mubr.f32.gmra.mxu0 %v4485
    %v4556 = vpop.f32.mrf.mxu0
    %v4557 = vadd.f32 0.0, %v4556
    %v4558 = vpop.f32.mrf.mxu0
    %4559 = vmatprep.mubr.f32.mxu0 0.0
    %4560 = vmatmul.mubr.f32.gmra.mxu0 %v4488
    %v4561 = vpop.f32.mrf.mxu0
    %v4562 = vadd.f32 0.0, %v4561
    %v4563 = vpop.f32.mrf.mxu0
    %4564 = vdwg.mxu0
    %v4565 = vsel %vm100, %v4314, 0.0
    %v4566 = vsel %vm100, %v4395, 0.0
    %v4567 = vadd.f32 %v4565, %v4566
    %v4568 = vsel %vm100, %v4476, 0.0
    %v4569 = vadd.f32 %v4567, %v4568
    %v4570 = vsel %vm100, %v4557, 0.0
    %v4571 = vadd.f32 %v4569, %v4570
    %v4572 = vsel %vm100, %v4319, 0.0
    %v4573 = vsel %vm100, %v4400, 0.0
    %v4574 = vadd.f32 %v4572, %v4573
    %v4575 = vsel %vm100, %v4481, 0.0
    %v4576 = vadd.f32 %v4574, %v4575
    %v4577 = vsel %vm100, %v4562, 0.0
    %v4578 = vadd.f32 %v4576, %v4577
    %v4579 = vlaneseq
    %v4580 = vshrl.u32 %v4579, 7
    %v4581 = vsub.s32 7, %v4580
    %v4582 = vrot.slane %v98, %v4581
    %v4583 = vadd.f32 %v4571, %v4582
    %v4584 = vadd.f32 %v4578, %v4582
    %v4585 = vadd.f32 %v4583, %v2300
    %v4586 = vadd.f32 %v4584, %v2301
    %v4587 = vsel %vm100, %v4585, 0.0
    %4588 = vadd.xlane.f32.xlu0 %v4587
    %v4589 = vpop.xlane.xlu0 %4588
    %v4590 = vsel %vm100, %v4586, 0.0
    %4591 = vadd.xlane.f32.xlu0 %v4590
    %v4592 = vpop.xlane.xlu0 %4591
    %v4593 = vmul.f32 %v4589, %v107
    %v4594 = vmul.f32 %v4592, %v107
    %v4595 = vsub.f32 %v4585, %v4593
    %v4596 = vsub.f32 %v4586, %v4594
    %v4597 = vmul.f32 %v4595, %v4595
    %v4598 = vmul.f32 %v4596, %v4596
    %v4599 = vsel %vm100, %v4597, 0.0
    %4600 = vadd.xlane.f32.xlu0 %v4599
    %v4601 = vpop.xlane.xlu0 %4600
    %v4602 = vsel %vm100, %v4598, 0.0
    %4603 = vadd.xlane.f32.xlu0 %v4602
    %v4604 = vpop.xlane.xlu0 %4603
    %v4605 = vmul.f32 %v4601, %v107
    %v4606 = vmul.f32 %v4604, %v107
    %v4607 = vlaneseq
    %v4608 = vshrl.u32 %v4607, 7
    %v4609 = vsub.s32 4, %v4608
    %v4610 = vrot.slane %v98, %v4609
    %v4611 = vmul.f32 %v4610, %v4595
    %v4612 = vmul.f32 %v4610, %v4596
    %v4613 = vadd.f32 %v4605, 1e-06
    %v4614 = vadd.f32 %v4606, 1e-06
    %v4615 = vrsqrt.pop %v4613
    %v4616 = vmul.f32 %v4613, %v4615
    %vm4617 = vcmp.eq.f32.partialorder %v4613, inf
    %v4618 = vsel %vm4617, %v4613, %v4616
    %vm4619 = vcmp.eq.f32.partialorder %v4613, 0.0
    %v4620 = vand.u32 %v4613, 2147483648
    %v4621 = vsel %vm4619, %v4620, %v4618
    %v4622 = vrsqrt.pop %v4614
    %v4623 = vmul.f32 %v4614, %v4622
    %vm4624 = vcmp.eq.f32.partialorder %v4614, inf
    %v4625 = vsel %vm4624, %v4614, %v4623
    %vm4626 = vcmp.eq.f32.partialorder %v4614, 0.0
    %v4627 = vand.u32 %v4614, 2147483648
    %v4628 = vsel %vm4626, %v4627, %v4625
    %v4629 = vrcp.pop %v4621
    %v4630 = vmul.f32 %v4611, %v4629
    %v4631 = vrcp.pop %v4628
    %v4632 = vmul.f32 %v4612, %v4631
    %v4633 = vlaneseq
    %v4634 = vshrl.u32 %v4633, 7
    %v4635 = vsub.s32 5, %v4634
    %v4636 = vrot.slane %v98, %v4635
    %v4637 = vadd.f32 %v4630, %v4636
    %v4638 = vadd.f32 %v4632, %v4636
    %v4639 = vld [vmem:[%s7] sm:$0xff]
    %v4640 = vld [vmem:[%s7 + $0x8] sm:$0xff]
    %v4641 = vld [vmem:[%s7 + $0x10] sm:$0xff]
    %v4642 = vld [vmem:[%s7 + $0x18] sm:$0xff]
    %v4643 = vld [vmem:[%s9] sm:$0x1]
    %v4645 = vlaneseq
    %v4646 = vshrl.u32 %v4645, 7
    %v4647 = vsub.s32 0, %v4646
    %v4648 = vrot.slane %v4643, %v4647
    %v4651 = vsel %vm100, %v4637, 0
    %v4654 = vsel %vm100, %v4638, 0
    %4656 = vmatprep.subr.mxu0 0.0
    %4657 = vmatpush1.msra.mxu0 0.0
    %4658 = vmatprep.subr.mxu0 0.0
    %4659 = vmatpush1.msra.mxu0 0.0
    %4660 = vmatprep.subr.mxu0 0.0
    %4661 = vmatpush1.msra.mxu0 0.0
    %4662 = vmatprep.subr.mxu0 0.0
    %4663 = vmatpush1.msra.mxu0 0.0
    %4664 = vmatprep.subr.mxu0 0.0
    %4665 = vmatpush1.msra.mxu0 0.0
    %4666 = vmatprep.subr.mxu0 0.0
    %4667 = vmatpush1.msra.mxu0 0.0
    %4668 = vmatprep.subr.mxu0 0.0
    %4669 = vmatpush1.msra.mxu0 0.0
    %4670 = vmatprep.subr.mxu0 0.0
    %4671 = vmatpush1.msra.mxu0 0.0
    %4672 = vmatprep.subr.mxu0 0.0
    %4673 = vmatpush1.msra.mxu0 0.0
    %4674 = vmatprep.subr.mxu0 0.0
    %4675 = vmatpush1.msra.mxu0 0.0
    %4676 = vmatprep.subr.mxu0 0.0
    %4677 = vmatpush1.msra.mxu0 0.0
    %4678 = vmatprep.subr.mxu0 0.0
    %4679 = vmatpush1.msra.mxu0 0.0
    %4680 = vmatprep.subr.mxu0 0.0
    %4681 = vmatpush1.msra.mxu0 %v4642
    %4682 = vmatprep.subr.mxu0 0.0
    %4683 = vmatpush1.msra.mxu0 %v4641
    %4684 = vmatprep.subr.mxu0 0.0
    %4685 = vmatpush1.msra.mxu0 %v4640
    %4686 = vmatprep.subr.mxu0 0.0
    %4687 = vmatpush1.msra.mxu0 %v4639
    %4688 = vmatprep.subr.mxu0 0.0
    %4689 = vmatpush2.msra.mxu0 0.0
    %4690 = vmatprep.subr.mxu0 0.0
    %4691 = vmatpush2.msra.mxu0 0.0
    %4692 = vmatprep.subr.mxu0 0.0
    %4693 = vmatpush2.msra.mxu0 0.0
    %4694 = vmatprep.subr.mxu0 0.0
    %4695 = vmatpush2.msra.mxu0 0.0
    %4696 = vmatprep.subr.mxu0 0.0
    %4697 = vmatpush2.msra.mxu0 0.0
    %4698 = vmatprep.subr.mxu0 0.0
    %4699 = vmatpush2.msra.mxu0 0.0
    %4700 = vmatprep.subr.mxu0 0.0
    %4701 = vmatpush2.msra.mxu0 0.0
    %4702 = vmatprep.subr.mxu0 0.0
    %4703 = vmatpush2.msra.mxu0 0.0
    %4704 = vmatprep.subr.mxu0 0.0
    %4705 = vmatpush2.msra.mxu0 0.0
    %4706 = vmatprep.subr.mxu0 0.0
    %4707 = vmatpush2.msra.mxu0 0.0
    %4708 = vmatprep.subr.mxu0 0.0
    %4709 = vmatpush2.msra.mxu0 0.0
    %4710 = vmatprep.subr.mxu0 0.0
    %4711 = vmatpush2.msra.mxu0 0.0
    %4712 = vmatprep.subr.mxu0 0.0
    %4713 = vmatpush2.msra.mxu0 0.0
    %4714 = vmatprep.subr.mxu0 0.0
    %4715 = vmatpush2.msra.mxu0 0.0
    %4716 = vmatprep.subr.mxu0 0.0
    %4717 = vmatpush2.msra.mxu0 0.0
    %4718 = vmatprep.subr.mxu0 0.0
    %4719 = vmatpush2.msra.mxu0 0.0
    %4720 = vmatprep.mubr.f32.mxu0 0.0
    %4721 = vmatmul.mubr.f32.gmra.mxu0 %v4651
    %v4722 = vpop.f32.mrf.mxu0
    %v4723 = vadd.f32 %v4648, %v4722
    %v4724 = vpop.f32.mrf.mxu0
    %4725 = vmatprep.mubr.f32.mxu0 0.0
    %4726 = vmatmul.mubr.f32.gmra.mxu0 %v4654
    %v4727 = vpop.f32.mrf.mxu0
    %v4728 = vadd.f32 %v4648, %v4727
    %v4729 = vpop.f32.mrf.mxu0
    %4730 = vdwg.mxu0
    %v4731 = vmax.f32 %v4723, 0.0
    %v4732 = vmax.f32 %v4728, 0.0
    %s4733 = scalar_lea.vmem %s7, 32
    %v4734 = vld [vmem:[%s4733] sm:$0xff]
    %v4735 = vld [vmem:[%s4733 + $0x8] sm:$0xff]
    %v4736 = vld [vmem:[%s4733 + $0x10] sm:$0xff]
    %v4737 = vld [vmem:[%s4733 + $0x18] sm:$0xff]
    %v4738 = vlaneseq
    %v4739 = vshrl.u32 %v4738, 7
    %v4740 = vsub.s32 0, %v4739
    %v4741 = vrot.slane %v99, %v4740
    %vm4742 = vcmask 523264
    %v4744 = vsel %vm4742, %v4731, 0
    %v4747 = vsel %vm4742, %v4732, 0
    %v4750 = vsel %vm4742, %v4734, 0
    %v4753 = vsel %vm4742, %v4735, 0
    %v4756 = vsel %vm4742, %v4736, 0
    %v4759 = vsel %vm4742, %v4737, 0
    %4761 = vmatprep.subr.mxu0 0.0
    %4762 = vmatpush1.xpose.msra.mxu0 0.0
    %4763 = vmatprep.subr.mxu0 0.0
    %4764 = vmatpush1.xpose.msra.mxu0 0.0
    %4765 = vmatprep.subr.mxu0 0.0
    %4766 = vmatpush1.xpose.msra.mxu0 0.0
    %4767 = vmatprep.subr.mxu0 0.0
    %4768 = vmatpush1.xpose.msra.mxu0 0.0
    %4769 = vmatprep.subr.mxu0 0.0
    %4770 = vmatpush1.xpose.msra.mxu0 0.0
    %4771 = vmatprep.subr.mxu0 0.0
    %4772 = vmatpush1.xpose.msra.mxu0 0.0
    %4773 = vmatprep.subr.mxu0 0.0
    %4774 = vmatpush1.xpose.msra.mxu0 0.0
    %4775 = vmatprep.subr.mxu0 0.0
    %4776 = vmatpush1.xpose.msra.mxu0 0.0
    %4777 = vmatprep.subr.mxu0 0.0
    %4778 = vmatpush1.xpose.msra.mxu0 0.0
    %4779 = vmatprep.subr.mxu0 0.0
    %4780 = vmatpush1.xpose.msra.mxu0 0.0
    %4781 = vmatprep.subr.mxu0 0.0
    %4782 = vmatpush1.xpose.msra.mxu0 0.0
    %4783 = vmatprep.subr.mxu0 0.0
    %4784 = vmatpush1.xpose.msra.mxu0 0.0
    %4785 = vmatprep.subr.mxu0 0.0
    %4786 = vmatpush1.xpose.msra.mxu0 %v4759
    %4787 = vmatprep.subr.mxu0 0.0
    %4788 = vmatpush1.xpose.msra.mxu0 %v4756
    %4789 = vmatprep.subr.mxu0 0.0
    %4790 = vmatpush1.xpose.msra.mxu0 %v4753
    %4791 = vmatprep.subr.mxu0 0.0
    %4792 = vmatpush1.xpose.msra.mxu0 %v4750
    %4793 = vmatprep.subr.mxu0 0.0
    %4794 = vmatpush2.xpose.msra.mxu0 0.0
    %4795 = vmatprep.subr.mxu0 0.0
    %4796 = vmatpush2.xpose.msra.mxu0 0.0
    %4797 = vmatprep.subr.mxu0 0.0
    %4798 = vmatpush2.xpose.msra.mxu0 0.0
    %4799 = vmatprep.subr.mxu0 0.0
    %4800 = vmatpush2.xpose.msra.mxu0 0.0
    %4801 = vmatprep.subr.mxu0 0.0
    %4802 = vmatpush2.xpose.msra.mxu0 0.0
    %4803 = vmatprep.subr.mxu0 0.0
    %4804 = vmatpush2.xpose.msra.mxu0 0.0
    %4805 = vmatprep.subr.mxu0 0.0
    %4806 = vmatpush2.xpose.msra.mxu0 0.0
    %4807 = vmatprep.subr.mxu0 0.0
    %4808 = vmatpush2.xpose.msra.mxu0 0.0
    %4809 = vmatprep.subr.mxu0 0.0
    %4810 = vmatpush2.xpose.msra.mxu0 0.0
    %4811 = vmatprep.subr.mxu0 0.0
    %4812 = vmatpush2.xpose.msra.mxu0 0.0
    %4813 = vmatprep.subr.mxu0 0.0
    %4814 = vmatpush2.xpose.msra.mxu0 0.0
    %4815 = vmatprep.subr.mxu0 0.0
    %4816 = vmatpush2.xpose.msra.mxu0 0.0
    %4817 = vmatprep.subr.mxu0 0.0
    %4818 = vmatpush2.xpose.msra.mxu0 0.0
    %4819 = vmatprep.subr.mxu0 0.0
    %4820 = vmatpush2.xpose.msra.mxu0 0.0
    %4821 = vmatprep.subr.mxu0 0.0
    %4822 = vmatpush2.xpose.msra.mxu0 0.0
    %4823 = vmatprep.subr.mxu0 0.0
    %4824 = vmatpush2.xpose.msra.mxu0 0.0
    %4825 = vmatprep.mubr.f32.mxu0 0.0
    %4826 = vmatmul.mubr.f32.gmra.mxu0 %v4744
    %v4827 = vpop.f32.mrf.mxu0
    %v4828 = vadd.f32 %v4741, %v4827
    %v4829 = vpop.f32.mrf.mxu0
    %4830 = vmatprep.mubr.f32.mxu0 0.0
    %4831 = vmatmul.mubr.f32.gmra.mxu0 %v4747
    %v4832 = vpop.f32.mrf.mxu0
    %v4833 = vadd.f32 %v4741, %v4832
    %v4834 = vpop.f32.mrf.mxu0
    %4835 = vdwg.mxu0
    %v4836 = vadd.f32 %v4828, %v4585
    %v4837 = vadd.f32 %v4833, %v4586
    %4838 = vst.msk [vmem:[#allocation2] sm:$0xff] %vm100, %v4836
    %4839 = vst.msk [vmem:[#allocation2 + $0x8] sm:$0xff] %vm100, %v4837
    // Predicated region
    $region42: #{tpu_custom_call.1} parent=1 // pred_check
      _
    $region43: #{tpu_custom_call.1} parent=1 // pred_check_branch
      %4841 = sbr.rel (0) target = $region45
    $region44: #{tpu_custom_call.1} parent=1 // pred_region
      %s4843 = ssub.s32 256, 256
      %4844 = vsyncadd [#allocation3], %s4843
      %s4845 = sshll.u32 [#allocation2], 4
      %s4846 = int_to_ptr.vmem [resolvable:$true] %s4845
      %4851 = dma.vmem_to_hbm [thread:$0]  %s4846, 256, %s10, [#allocation3], 128, 128, 8
    $region45: #{tpu_custom_call.1} parent=1 // pred_fallthru
      _
    // Predicated region
    $region46: #{tpu_custom_call.1} parent=1 // pred_check
      _
    $region47: #{tpu_custom_call.1} parent=1 // pred_check_branch
      %4853 = sbr.rel (0) target = $region49
    $region48: #{tpu_custom_call.1} parent=1 // pred_region
      %4854 = dma.done [#allocation3], 256
    $region49: #{tpu_custom_call.1} parent=1 // pred_fallthru
      _
    %4855 = vsyncpa [#allocation3], 1

</llo_original>
